<compile_context>
chip_gen: v7x
topology: tpu7x:2x2x1
jax: 0.10.0
libtpu: 0.0.40
codegen_flags: <defaults>
</compile_context>

<pallas_src>
import numpy as np
import jax
import jax.numpy as jnp
from jax.experimental import pallas as pl
from jax.experimental.pallas import tpu as pltpu


# ---------------------------------------------------------------------------
# Static geometry of SimpleCNN (1x32x32 input, 5x5 convs, pad=2).
# ---------------------------------------------------------------------------
_KS = 5
_PAD = 2
_IMG = 32
_NF = 12          # real filter count
_NFP = 16         # padded to the bf16 sublane granule
_NCLS_MAX = 128   # lane-dense output width

# conv1 (host im2col over the padded 36x36 canvas, stride 2 -> 16x16 out):
_L1 = 1111        # pseudo length: 72*15 + 2*15 + 1
_L1P = 1152       # padded to a multiple of 128 = per-image lane stride of sig1
# canvas1 (zero-padded 20x20 conv1 output), flattened per image:
_S2 = 400
_L2SPAN = 296     # conv2 output lanes needed per image (40*7 + 16)
# canvas2/canvas3 (zero-padded 12x12 feature maps), flattened per image:
_S3 = 144
_L3 = 92          # conv3/conv4 pseudo length: 12*7 + 7 + 1


# ---------------------------------------------------------------------------
# One-time parameter preprocessing (hoisted out of the hot path).
# ---------------------------------------------------------------------------
def preprocess_params(params):
    nf = int(params["w1"].shape[0])
    ncls = int(params["wfc"].shape[0])
    assert nf == _NF

    def conv_w(w, pad_ic):
        oc, ic, kh, kw = (int(s) for s in w.shape)
        icp = _NFP if pad_ic else ic
        wp = np.zeros((_NFP, icp, kh, kw), np.float32)
        wp[:oc, :ic] = np.asarray(w, np.float32)
        # column order (dh, dw, ic) matches in-kernel patch row order tap*icp+ic
        wm = np.transpose(wp, (0, 2, 3, 1)).reshape(_NFP, kh * kw * icp)
        return jnp.asarray(wm, jnp.bfloat16)

    def conv_b(b):
        bp = np.zeros((_NFP, 1), np.float32)
        bp[: int(b.shape[0]), 0] = np.asarray(b, np.float32)
        return jnp.asarray(bp)

    # Shared within-row stride-2 column-select + left/right re-pad matrices.
    cs1 = np.zeros((32, 20), np.float32)       # conv1 rows: 16 valid cols -> 20
    for x in range(16):
        cs1[2 * x, x + 2] = 1.0
    cs2 = np.zeros((16, 12), np.float32)       # conv2 rows: 8 valid cols -> 12
    for x in range(8):
        cs2[2 * x, x + 2] = 1.0

    # 12x12 canvas pad-ring mask: keeps the central 8x8 data block only.
    ring = np.zeros((1, _S3), np.float32)
    for p in range(_S3):
        if 2 <= p // 12 <= 9 and 2 <= p % 12 <= 9:
            ring[0, p] = 1.0

    # FC weights: fold (a) selection of valid conv4 pseudo-columns (q = 12y+x)
    # and (b) torch's NCHW .view(B,-1) flatten order into the matrix.
    wfc = np.asarray(params["wfc"], np.float32)          # [ncls, nf*8*8]
    wfc_p = np.zeros((nf * _L3, ncls), np.float32)
    for c in range(nf):
        for y in range(8):
            for x in range(8):
                wfc_p[c * _L3 + 12 * y + x, :] = wfc[:, c * 64 + y * 8 + x]

    return {
        "w1": conv_w(params["w1"], False), "b1": conv_b(params["b1"]),
        "w2": conv_w(params["w2"], True),  "b2": conv_b(params["b2"]),
        "w3": conv_w(params["w3"], True),  "b3": conv_b(params["b3"]),
        "w4": conv_w(params["w4"], True),  "b4": conv_b(params["b4"]),
        "cs1": jnp.asarray(cs1, jnp.bfloat16),
        "cs2": jnp.asarray(cs2, jnp.bfloat16),
        "ring": jnp.asarray(ring, jnp.bfloat16),
        "wfc": jnp.asarray(wfc_p, jnp.bfloat16),
        "bfc": jnp.asarray(np.asarray(params["bfc"], np.float32).reshape(1, -1)),
    }


# ---------------------------------------------------------------------------
# Fused kernel: B_TILE images per grid step, everything VMEM-resident.
# ---------------------------------------------------------------------------
def _make_kernel(bt, ncls):
    n2 = (bt - 1) * _S2 + _L2SPAN          # conv2 output lane span
    n3 = (bt - 1) * _S3 + _L3              # conv3/conv4 output lane span
    f32 = jnp.float32
    bf16 = jnp.bfloat16

    def _sig(z, b_ref):
        # sigmoid(z) = 0.5*tanh(z/2) + 0.5  -> single EUP push per element,
        # then one bf16 cast per layer (all downstream work is bf16).
        return (0.5 * jnp.tanh(0.5 * (z + b_ref[...])) + 0.5).astype(bf16)

    def kernel(p1_ref, w1_ref, b1_ref, w2_ref, b2_ref, w3_ref, b3_ref, w4_ref,
               b4_ref, cs1_ref, cs2_ref, ring_ref, wfc_ref, bfc_ref, out_ref):
        # ---- conv1: host-prepared im2col, one batched matmul ---------------
        z1 = jnp.dot(w1_ref[...], p1_ref[...], preferred_element_type=f32)
        s1 = _sig(z1, b1_ref)                                   # [16, bt*1152]

        # ---- conv1 -> canvas1 (compact zero-padded 20x20 per image) --------
        rows = [s1[:, b * _L1P + 72 * y: b * _L1P + 72 * y + 32]
                for b in range(bt) for y in range(16)]
        comp = jnp.dot(jnp.concatenate(rows, axis=0), cs1_ref[...],
                       preferred_element_type=f32).astype(bf16)  # [bt*256, 20]
        zpad = jnp.zeros((_NFP, 2 * 20), bf16)
        imgs = []
        for b in range(bt):
            pieces = [zpad]
            pieces += [comp[(b * 16 + y) * _NFP:(b * 16 + y + 1) * _NFP, :]
                       for y in range(16)]
            pieces.append(zpad)
            imgs.append(jnp.concatenate(pieces, axis=1))         # [16, 400]
        canvas1 = jnp.concatenate(imgs, axis=1)                  # [16, bt*400]

        # ---- conv2 (stride 2): 25 batched tap slices + one matmul ----------
        taps = [canvas1[:, 20 * dh + dw: 20 * dh + dw + n2]
                for dh in range(_KS) for dw in range(_KS)]
        z2 = jnp.dot(w2_ref[...], jnp.concatenate(taps, axis=0),
                     preferred_element_type=f32)                 # [16, n2]
        s2 = _sig(z2, b2_ref)

        # ---- conv2 -> canvas2 (compact zero-padded 12x12 per image) --------
        rows = [s2[:, b * _S2 + 40 * y: b * _S2 + 40 * y + 16]
                for b in range(bt) for y in range(8)]
        comp = jnp.dot(jnp.concatenate(rows, axis=0), cs2_ref[...],
                       preferred_element_type=f32).astype(bf16)  # [bt*128, 12]
        zpad = jnp.zeros((_NFP, 2 * 12), bf16)
        imgs = []
        for b in range(bt):
            pieces = [zpad]
            pieces += [comp[(b * 8 + y) * _NFP:(b * 8 + y + 1) * _NFP, :]
                       for y in range(8)]
            pieces.append(zpad)
            imgs.append(jnp.concatenate(pieces, axis=1))         # [16, 144]
        canvas2 = jnp.concatenate(imgs, axis=1)                  # [16, bt*144]

        # ---- conv3 (stride 1) ----------------------------------------------
        taps = [canvas2[:, 12 * dh + dw: 12 * dh + dw + n3]
                for dh in range(_KS) for dw in range(_KS)]
        z3 = jnp.dot(w3_ref[...], jnp.concatenate(taps, axis=0),
                     preferred_element_type=f32)                 # [16, n3]
        s3 = _sig(z3, b3_ref)

        # ---- conv3 -> canvas3: lane shift + pad-ring mask (no matmul) ------
        zpad = jnp.zeros((_NFP, 26), bf16)
        imgs = [jnp.concatenate([zpad, s3[:, b * _S3: b * _S3 + _L3], zpad],
                                axis=1) for b in range(bt)]
        canvas3 = jnp.concatenate(imgs, axis=1) * ring_ref[...]  # [16, bt*144]

        # ---- conv4 (stride 1) ----------------------------------------------
        taps = [canvas3[:, 12 * dh + dw: 12 * dh + dw + n3]
                for dh in range(_KS) for dw in range(_KS)]
        z4 = jnp.dot(w4_ref[...], jnp.concatenate(taps, axis=0),
                     preferred_element_type=f32)
        s4 = _sig(z4, b4_ref)                                    # [16, n3]

        # ---- FC: one [bt, nf*92] tile, single matmul with M = bt ------------
        flats = []
        for b in range(bt):
            chans = [s4[c:c + 1, b * _S3: b * _S3 + _L3] for c in range(_NF)]
            flats.append(jnp.concatenate(chans, axis=1))         # [1, 1104]
        flat = jnp.concatenate(flats, axis=0)                    # [bt, 1104]
        logits = jnp.dot(flat, wfc_ref[...],
                         preferred_element_type=f32) + bfc_ref[...]
        out_ref[...] = jnp.concatenate(
            [logits, jnp.zeros((bt, _NCLS_MAX - ncls), f32)], axis=1)

    return kernel


# ---------------------------------------------------------------------------
# Forward pass (matches SimpleCNN.forward).
# ---------------------------------------------------------------------------
def simple_cnn_forward(x_nchw, prep):
    B, C, H, W = x_nchw.shape
    assert C == 1 and H == _IMG and W == _IMG, "SimpleCNN expects 1x32x32 inputs"
    ncls = int(prep["bfc"].shape[1])
    assert ncls <= _NCLS_MAX

    bt = 8 if B >= 8 else B                 # images per grid step
    n_tiles = -(-B // bt)
    b_pad = n_tiles * bt

    x = x_nchw.astype(jnp.float32)
    if b_pad != B:
        x = jnp.concatenate(
            [x, jnp.zeros((b_pad - B,) + tuple(x.shape[1:]), jnp.float32)], 0)

    # Host-side layout prep for conv1 only: zero-pad the single input channel
    # and build the 25-tap flat-shift im2col, padded to a 128-multiple stride.
    xp = jnp.pad(x[:, 0], ((0, 0), (_PAD, _PAD), (_PAD, _PAD)))
    xp = xp.reshape(b_pad, 36 * 36)
    taps = [xp[:, 36 * dh + dw: 36 * dh + dw + _L1]
            for dh in range(_KS) for dw in range(_KS)]
    p1 = jnp.stack(taps, axis=0)                                  # [25,b,1111]
    p1 = jnp.pad(p1, ((0, 0), (0, 0), (0, _L1P - _L1)))
    p1 = p1.reshape(25, b_pad * _L1P).astype(jnp.bfloat16)

    ring = jnp.tile(prep["ring"], (1, bt))                        # [1, bt*144]

    consts = (prep["w1"], prep["b1"], prep["w2"], prep["b2"], prep["w3"],
              prep["b3"], prep["w4"], prep["b4"], prep["cs1"], prep["cs2"],
              ring, prep["wfc"], prep["bfc"])

    def _const_spec(a):
        return pl.BlockSpec(a.shape, lambda i: (0,) * a.ndim)

    in_specs = [pl.BlockSpec((25, bt * _L1P), lambda i: (0, i))]
    in_specs += [_const_spec(a) for a in consts]

    # Advisory cost estimate (scatter matmuls are gone; tanh count included).
    n2 = (bt - 1) * _S2 + _L2SPAN
    n3 = (bt - 1) * _S3 + _L3
    flops_t = 2 * (_NFP * 25 * bt * _L1P + bt * 256 * 32 * 20
                   + _NFP * 400 * n2 + bt * 128 * 16 * 12
                   + 2 * _NFP * 400 * n3 + bt * _NF * _L3 * ncls)
    trans_t = _NFP * (bt * _L1P + n2 + 2 * n3)
    const_b = sum(int(np.prod(a.shape)) * a.dtype.itemsize for a in consts)
    bytes_t = 25 * bt * _L1P * 2 + bt * _NCLS_MAX * 4
    cost = pl.CostEstimate(flops=n_tiles * flops_t,
                           transcendentals=n_tiles * trans_t,
                           bytes_accessed=n_tiles * bytes_t + const_b)

    out = pl.pallas_call(
        _make_kernel(bt, ncls),
        out_shape=jax.ShapeDtypeStruct((b_pad, _NCLS_MAX), jnp.float32),
        grid=(n_tiles,),
        in_specs=in_specs,
        out_specs=pl.BlockSpec((bt, _NCLS_MAX), lambda i: (i, 0)),
        compiler_params=pltpu.CompilerParams(
            dimension_semantics=("parallel",),
            vmem_limit_bytes=32 * 1024 * 1024),
        cost_estimate=cost,
    )(p1, *consts)
    return out[:B, :ncls]


# ---------------------------------------------------------------------------
# Parameters + pure-JAX reference (sanity check only).
# ---------------------------------------------------------------------------
def init_params(key, num_classes=10, num_channels=1, num_filters=12):
    ks = jax.random.split(key, 10)
    s = 0.1
    return {
        "w1": s * jax.random.normal(ks[0], (num_filters, num_channels, 5, 5), jnp.float32),
        "b1": s * jax.random.normal(ks[1], (num_filters,), jnp.float32),
        "w2": s * jax.random.normal(ks[2], (num_filters, num_filters, 5, 5), jnp.float32),
        "b2": s * jax.random.normal(ks[3], (num_filters,), jnp.float32),
        "w3": s * jax.random.normal(ks[4], (num_filters, num_filters, 5, 5), jnp.float32),
        "b3": s * jax.random.normal(ks[5], (num_filters,), jnp.float32),
        "w4": s * jax.random.normal(ks[6], (num_filters, num_filters, 5, 5), jnp.float32),
        "b4": s * jax.random.normal(ks[7], (num_filters,), jnp.float32),
        "wfc": s * jax.random.normal(ks[8], (num_classes, num_filters * 8 * 8), jnp.float32),
        "bfc": s * jax.random.normal(ks[9], (num_classes,), jnp.float32),
    }


def reference_forward(x, params):
    def conv_sig(h, w, b, stride):
        y = jax.lax.conv_general_dilated(
            h, w, window_strides=(stride, stride),
            padding=((_PAD, _PAD), (_PAD, _PAD)),
            dimension_numbers=("NCHW", "OIHW", "NCHW"))
        return jax.nn.sigmoid(y + b.reshape(1, -1, 1, 1))

    h = conv_sig(x, params["w1"], params["b1"], 2)
    h = conv_sig(h, params["w2"], params["b2"], 2)
    h = conv_sig(h, params["w3"], params["b3"], 1)
    h = conv_sig(h, params["w4"], params["b4"], 1)
    flat = h.reshape(h.shape[0], -1)
    return flat @ params["wfc"].T + params["bfc"][None, :]


if __name__ == "__main__":
    key = jax.random.PRNGKey(0)
    kx, kp = jax.random.split(key)
    x = jax.random.normal(kx, (2, 1, 32, 32), jnp.float32)
    params = init_params(kp)
    prep = preprocess_params(params)          # one-time layout work (hoisted)

    fwd = jax.jit(simple_cnn_forward)
    out = jax.block_until_ready(fwd(x, prep))
    assert out.shape == (2, 10), out.shape

    # Sanity check vs. a pure-JAX reference (bf16 activations/weights).
    ref = reference_forward(x, params)
    err = float(jnp.max(jnp.abs(out - ref)))
    assert err < 0.25, f"max |diff| vs reference too large: {err}"
    print("KERNEL_OK")
</pallas_src>

<mosaic_0001>
module attributes {stable_mosaic.version = 11 : i64} {
  func.func @kernel(%arg0: i32, %arg1: memref<25x2304xbf16, #tpu.memory_space<vmem>>, %arg2: memref<16x25xbf16, #tpu.memory_space<vmem>>, %arg3: memref<16x1xf32, #tpu.memory_space<vmem>>, %arg4: memref<16x400xbf16, #tpu.memory_space<vmem>>, %arg5: memref<16x1xf32, #tpu.memory_space<vmem>>, %arg6: memref<16x400xbf16, #tpu.memory_space<vmem>>, %arg7: memref<16x1xf32, #tpu.memory_space<vmem>>, %arg8: memref<16x400xbf16, #tpu.memory_space<vmem>>, %arg9: memref<16x1xf32, #tpu.memory_space<vmem>>, %arg10: memref<32x20xbf16, #tpu.memory_space<vmem>>, %arg11: memref<16x12xbf16, #tpu.memory_space<vmem>>, %arg12: memref<1x288xbf16, #tpu.memory_space<vmem>>, %arg13: memref<1104x10xbf16, #tpu.memory_space<vmem>>, %arg14: memref<1x10xf32, #tpu.memory_space<vmem>>, %arg15: memref<2x128xf32, #tpu.memory_space<vmem>>) attributes {dimension_semantics = [#tpu.dimension_semantics<parallel>], iteration_bounds = array<i64: 1>, scalar_prefetch = 0 : i64, scratch_operands = 0 : i64, tpu.core_type = #tpu.core_type<tc>, window_params = [{transform_indices = @transform_0, window_bounds = array<i64: 25, 2304>}, {pipeline_mode = #tpu.pipeline_mode<synchronous>, transform_indices = @transform_1, window_bounds = array<i64: 16, 25>}, {pipeline_mode = #tpu.pipeline_mode<synchronous>, transform_indices = @transform_2, window_bounds = array<i64: 16, 1>}, {pipeline_mode = #tpu.pipeline_mode<synchronous>, transform_indices = @transform_3, window_bounds = array<i64: 16, 400>}, {pipeline_mode = #tpu.pipeline_mode<synchronous>, transform_indices = @transform_4, window_bounds = array<i64: 16, 1>}, {pipeline_mode = #tpu.pipeline_mode<synchronous>, transform_indices = @transform_5, window_bounds = array<i64: 16, 400>}, {pipeline_mode = #tpu.pipeline_mode<synchronous>, transform_indices = @transform_6, window_bounds = array<i64: 16, 1>}, {pipeline_mode = #tpu.pipeline_mode<synchronous>, transform_indices = @transform_7, window_bounds = array<i64: 16, 400>}, {pipeline_mode = #tpu.pipeline_mode<synchronous>, transform_indices = @transform_8, window_bounds = array<i64: 16, 1>}, {pipeline_mode = #tpu.pipeline_mode<synchronous>, transform_indices = @transform_9, window_bounds = array<i64: 32, 20>}, {pipeline_mode = #tpu.pipeline_mode<synchronous>, transform_indices = @transform_10, window_bounds = array<i64: 16, 12>}, {pipeline_mode = #tpu.pipeline_mode<synchronous>, transform_indices = @transform_11, window_bounds = array<i64: 1, 288>}, {pipeline_mode = #tpu.pipeline_mode<synchronous>, transform_indices = @transform_12, window_bounds = array<i64: 1104, 10>}, {pipeline_mode = #tpu.pipeline_mode<synchronous>, transform_indices = @transform_13, window_bounds = array<i64: 1, 10>}, {transform_indices = @transform_14, window_bounds = array<i64: 2, 128>}]} {
    %c0 = arith.constant 0 : index
    %c0_0 = arith.constant 0 : index
    %0 = vector.load %arg2[%c0, %c0_0] : memref<16x25xbf16, #tpu.memory_space<vmem>>, vector<16x25xbf16>
    %c0_1 = arith.constant 0 : index
    %c0_2 = arith.constant 0 : index
    %1 = vector.load %arg1[%c0_1, %c0_2] : memref<25x2304xbf16, #tpu.memory_space<vmem>>, vector<25x2304xbf16>
    %cst = arith.constant dense<0.000000e+00> : vector<16x2304xf32>
    %2 = tpu.matmul %0, %1, %cst {dimension_numbers = #tpu.dot_dimension_numbers<[1], [0], [0], [1], [0, 0, 1, 1], [], []>} : vector<16x25xbf16>, vector<25x2304xbf16>, vector<16x2304xf32> -> vector<16x2304xf32>
    %c0_3 = arith.constant 0 : index
    %c0_4 = arith.constant 0 : index
    %3 = vector.load %arg3[%c0_3, %c0_4] : memref<16x1xf32, #tpu.memory_space<vmem>>, vector<16x1xf32>
    %4 = vector.broadcast %3 : vector<16x1xf32> to vector<16x2304xf32>
    %5 = arith.addf %2, %4 : vector<16x2304xf32>
    %cst_5 = arith.constant 5.000000e-01 : f32
    %6 = vector.broadcast %cst_5 : f32 to vector<16x2304xf32>
    %7 = arith.mulf %6, %5 : vector<16x2304xf32>
    %8 = math.tanh %7 : vector<16x2304xf32>
    %cst_6 = arith.constant 5.000000e-01 : f32
    %9 = vector.broadcast %cst_6 : f32 to vector<16x2304xf32>
    %10 = arith.mulf %9, %8 : vector<16x2304xf32>
    %cst_7 = arith.constant 5.000000e-01 : f32
    %11 = vector.broadcast %cst_7 : f32 to vector<16x2304xf32>
    %12 = arith.addf %10, %11 : vector<16x2304xf32>
    %13 = arith.truncf %12 : vector<16x2304xf32> to vector<16x2304xbf16>
    %14 = vector.extract_strided_slice %13 {offsets = [0, 0], sizes = [16, 32], strides = [1, 1]} : vector<16x2304xbf16> to vector<16x32xbf16>
    %15 = vector.extract_strided_slice %13 {offsets = [0, 72], sizes = [16, 32], strides = [1, 1]} : vector<16x2304xbf16> to vector<16x32xbf16>
    %16 = vector.extract_strided_slice %13 {offsets = [0, 144], sizes = [16, 32], strides = [1, 1]} : vector<16x2304xbf16> to vector<16x32xbf16>
    %17 = vector.extract_strided_slice %13 {offsets = [0, 216], sizes = [16, 32], strides = [1, 1]} : vector<16x2304xbf16> to vector<16x32xbf16>
    %18 = vector.extract_strided_slice %13 {offsets = [0, 288], sizes = [16, 32], strides = [1, 1]} : vector<16x2304xbf16> to vector<16x32xbf16>
    %19 = vector.extract_strided_slice %13 {offsets = [0, 360], sizes = [16, 32], strides = [1, 1]} : vector<16x2304xbf16> to vector<16x32xbf16>
    %20 = vector.extract_strided_slice %13 {offsets = [0, 432], sizes = [16, 32], strides = [1, 1]} : vector<16x2304xbf16> to vector<16x32xbf16>
    %21 = vector.extract_strided_slice %13 {offsets = [0, 504], sizes = [16, 32], strides = [1, 1]} : vector<16x2304xbf16> to vector<16x32xbf16>
    %22 = vector.extract_strided_slice %13 {offsets = [0, 576], sizes = [16, 32], strides = [1, 1]} : vector<16x2304xbf16> to vector<16x32xbf16>
    %23 = vector.extract_strided_slice %13 {offsets = [0, 648], sizes = [16, 32], strides = [1, 1]} : vector<16x2304xbf16> to vector<16x32xbf16>
    %24 = vector.extract_strided_slice %13 {offsets = [0, 720], sizes = [16, 32], strides = [1, 1]} : vector<16x2304xbf16> to vector<16x32xbf16>
    %25 = vector.extract_strided_slice %13 {offsets = [0, 792], sizes = [16, 32], strides = [1, 1]} : vector<16x2304xbf16> to vector<16x32xbf16>
    %26 = vector.extract_strided_slice %13 {offsets = [0, 864], sizes = [16, 32], strides = [1, 1]} : vector<16x2304xbf16> to vector<16x32xbf16>
    %27 = vector.extract_strided_slice %13 {offsets = [0, 936], sizes = [16, 32], strides = [1, 1]} : vector<16x2304xbf16> to vector<16x32xbf16>
    %28 = vector.extract_strided_slice %13 {offsets = [0, 1008], sizes = [16, 32], strides = [1, 1]} : vector<16x2304xbf16> to vector<16x32xbf16>
    %29 = vector.extract_strided_slice %13 {offsets = [0, 1080], sizes = [16, 32], strides = [1, 1]} : vector<16x2304xbf16> to vector<16x32xbf16>
    %30 = vector.extract_strided_slice %13 {offsets = [0, 1152], sizes = [16, 32], strides = [1, 1]} : vector<16x2304xbf16> to vector<16x32xbf16>
    %31 = vector.extract_strided_slice %13 {offsets = [0, 1224], sizes = [16, 32], strides = [1, 1]} : vector<16x2304xbf16> to vector<16x32xbf16>
    %32 = vector.extract_strided_slice %13 {offsets = [0, 1296], sizes = [16, 32], strides = [1, 1]} : vector<16x2304xbf16> to vector<16x32xbf16>
    %33 = vector.extract_strided_slice %13 {offsets = [0, 1368], sizes = [16, 32], strides = [1, 1]} : vector<16x2304xbf16> to vector<16x32xbf16>
    %34 = vector.extract_strided_slice %13 {offsets = [0, 1440], sizes = [16, 32], strides = [1, 1]} : vector<16x2304xbf16> to vector<16x32xbf16>
    %35 = vector.extract_strided_slice %13 {offsets = [0, 1512], sizes = [16, 32], strides = [1, 1]} : vector<16x2304xbf16> to vector<16x32xbf16>
    %36 = vector.extract_strided_slice %13 {offsets = [0, 1584], sizes = [16, 32], strides = [1, 1]} : vector<16x2304xbf16> to vector<16x32xbf16>
    %37 = vector.extract_strided_slice %13 {offsets = [0, 1656], sizes = [16, 32], strides = [1, 1]} : vector<16x2304xbf16> to vector<16x32xbf16>
    %38 = vector.extract_strided_slice %13 {offsets = [0, 1728], sizes = [16, 32], strides = [1, 1]} : vector<16x2304xbf16> to vector<16x32xbf16>
    %39 = vector.extract_strided_slice %13 {offsets = [0, 1800], sizes = [16, 32], strides = [1, 1]} : vector<16x2304xbf16> to vector<16x32xbf16>
    %40 = vector.extract_strided_slice %13 {offsets = [0, 1872], sizes = [16, 32], strides = [1, 1]} : vector<16x2304xbf16> to vector<16x32xbf16>
    %41 = vector.extract_strided_slice %13 {offsets = [0, 1944], sizes = [16, 32], strides = [1, 1]} : vector<16x2304xbf16> to vector<16x32xbf16>
    %42 = vector.extract_strided_slice %13 {offsets = [0, 2016], sizes = [16, 32], strides = [1, 1]} : vector<16x2304xbf16> to vector<16x32xbf16>
    %43 = vector.extract_strided_slice %13 {offsets = [0, 2088], sizes = [16, 32], strides = [1, 1]} : vector<16x2304xbf16> to vector<16x32xbf16>
    %44 = vector.extract_strided_slice %13 {offsets = [0, 2160], sizes = [16, 32], strides = [1, 1]} : vector<16x2304xbf16> to vector<16x32xbf16>
    %45 = vector.extract_strided_slice %13 {offsets = [0, 2232], sizes = [16, 32], strides = [1, 1]} : vector<16x2304xbf16> to vector<16x32xbf16>
    %46 = tpu.concatenate %14, %15, %16, %17, %18, %19, %20, %21, %22, %23, %24, %25, %26, %27, %28, %29 in 0 : vector<16x32xbf16>, vector<16x32xbf16>, vector<16x32xbf16>, vector<16x32xbf16>, vector<16x32xbf16>, vector<16x32xbf16>, vector<16x32xbf16>, vector<16x32xbf16>, vector<16x32xbf16>, vector<16x32xbf16>, vector<16x32xbf16>, vector<16x32xbf16>, vector<16x32xbf16>, vector<16x32xbf16>, vector<16x32xbf16>, vector<16x32xbf16> -> vector<256x32xbf16>
    %47 = tpu.concatenate %30, %31, %32, %33, %34, %35, %36, %37, %38, %39, %40, %41, %42, %43, %44, %45 in 0 : vector<16x32xbf16>, vector<16x32xbf16>, vector<16x32xbf16>, vector<16x32xbf16>, vector<16x32xbf16>, vector<16x32xbf16>, vector<16x32xbf16>, vector<16x32xbf16>, vector<16x32xbf16>, vector<16x32xbf16>, vector<16x32xbf16>, vector<16x32xbf16>, vector<16x32xbf16>, vector<16x32xbf16>, vector<16x32xbf16>, vector<16x32xbf16> -> vector<256x32xbf16>
    %48 = tpu.concatenate %46, %47 in 0 : vector<256x32xbf16>, vector<256x32xbf16> -> vector<512x32xbf16>
    %c0_8 = arith.constant 0 : index
    %c0_9 = arith.constant 0 : index
    %49 = vector.load %arg10[%c0_8, %c0_9] : memref<32x20xbf16, #tpu.memory_space<vmem>>, vector<32x20xbf16>
    %cst_10 = arith.constant dense<0.000000e+00> : vector<512x20xf32>
    %50 = tpu.matmul %48, %49, %cst_10 {dimension_numbers = #tpu.dot_dimension_numbers<[1], [0], [0], [1], [0, 0, 1, 1], [], []>} : vector<512x32xbf16>, vector<32x20xbf16>, vector<512x20xf32> -> vector<512x20xf32>
    %51 = arith.truncf %50 : vector<512x20xf32> to vector<512x20xbf16>
    %cst_11 = arith.constant 0.000000e+00 : bf16
    %52 = vector.broadcast %cst_11 : bf16 to vector<16x40xbf16>
    %53 = vector.extract_strided_slice %51 {offsets = [0, 0], sizes = [16, 20], strides = [1, 1]} : vector<512x20xbf16> to vector<16x20xbf16>
    %54 = vector.extract_strided_slice %51 {offsets = [16, 0], sizes = [16, 20], strides = [1, 1]} : vector<512x20xbf16> to vector<16x20xbf16>
    %55 = vector.extract_strided_slice %51 {offsets = [32, 0], sizes = [16, 20], strides = [1, 1]} : vector<512x20xbf16> to vector<16x20xbf16>
    %56 = vector.extract_strided_slice %51 {offsets = [48, 0], sizes = [16, 20], strides = [1, 1]} : vector<512x20xbf16> to vector<16x20xbf16>
    %57 = vector.extract_strided_slice %51 {offsets = [64, 0], sizes = [16, 20], strides = [1, 1]} : vector<512x20xbf16> to vector<16x20xbf16>
    %58 = vector.extract_strided_slice %51 {offsets = [80, 0], sizes = [16, 20], strides = [1, 1]} : vector<512x20xbf16> to vector<16x20xbf16>
    %59 = vector.extract_strided_slice %51 {offsets = [96, 0], sizes = [16, 20], strides = [1, 1]} : vector<512x20xbf16> to vector<16x20xbf16>
    %60 = vector.extract_strided_slice %51 {offsets = [112, 0], sizes = [16, 20], strides = [1, 1]} : vector<512x20xbf16> to vector<16x20xbf16>
    %61 = vector.extract_strided_slice %51 {offsets = [128, 0], sizes = [16, 20], strides = [1, 1]} : vector<512x20xbf16> to vector<16x20xbf16>
    %62 = vector.extract_strided_slice %51 {offsets = [144, 0], sizes = [16, 20], strides = [1, 1]} : vector<512x20xbf16> to vector<16x20xbf16>
    %63 = vector.extract_strided_slice %51 {offsets = [160, 0], sizes = [16, 20], strides = [1, 1]} : vector<512x20xbf16> to vector<16x20xbf16>
    %64 = vector.extract_strided_slice %51 {offsets = [176, 0], sizes = [16, 20], strides = [1, 1]} : vector<512x20xbf16> to vector<16x20xbf16>
    %65 = vector.extract_strided_slice %51 {offsets = [192, 0], sizes = [16, 20], strides = [1, 1]} : vector<512x20xbf16> to vector<16x20xbf16>
    %66 = vector.extract_strided_slice %51 {offsets = [208, 0], sizes = [16, 20], strides = [1, 1]} : vector<512x20xbf16> to vector<16x20xbf16>
    %67 = vector.extract_strided_slice %51 {offsets = [224, 0], sizes = [16, 20], strides = [1, 1]} : vector<512x20xbf16> to vector<16x20xbf16>
    %68 = vector.extract_strided_slice %51 {offsets = [240, 0], sizes = [16, 20], strides = [1, 1]} : vector<512x20xbf16> to vector<16x20xbf16>
    %69 = tpu.concatenate %52, %53, %54, %55, %56, %57, %58, %59, %60, %61, %62, %63, %64, %65, %66, %67 in 1 : vector<16x40xbf16>, vector<16x20xbf16>, vector<16x20xbf16>, vector<16x20xbf16>, vector<16x20xbf16>, vector<16x20xbf16>, vector<16x20xbf16>, vector<16x20xbf16>, vector<16x20xbf16>, vector<16x20xbf16>, vector<16x20xbf16>, vector<16x20xbf16>, vector<16x20xbf16>, vector<16x20xbf16>, vector<16x20xbf16>, vector<16x20xbf16> -> vector<16x340xbf16>
    %70 = tpu.concatenate %68, %52 in 1 : vector<16x20xbf16>, vector<16x40xbf16> -> vector<16x60xbf16>
    %71 = tpu.concatenate %69, %70 in 1 : vector<16x340xbf16>, vector<16x60xbf16> -> vector<16x400xbf16>
    %72 = vector.extract_strided_slice %51 {offsets = [256, 0], sizes = [16, 20], strides = [1, 1]} : vector<512x20xbf16> to vector<16x20xbf16>
    %73 = vector.extract_strided_slice %51 {offsets = [272, 0], sizes = [16, 20], strides = [1, 1]} : vector<512x20xbf16> to vector<16x20xbf16>
    %74 = vector.extract_strided_slice %51 {offsets = [288, 0], sizes = [16, 20], strides = [1, 1]} : vector<512x20xbf16> to vector<16x20xbf16>
    %75 = vector.extract_strided_slice %51 {offsets = [304, 0], sizes = [16, 20], strides = [1, 1]} : vector<512x20xbf16> to vector<16x20xbf16>
    %76 = vector.extract_strided_slice %51 {offsets = [320, 0], sizes = [16, 20], strides = [1, 1]} : vector<512x20xbf16> to vector<16x20xbf16>
    %77 = vector.extract_strided_slice %51 {offsets = [336, 0], sizes = [16, 20], strides = [1, 1]} : vector<512x20xbf16> to vector<16x20xbf16>
    %78 = vector.extract_strided_slice %51 {offsets = [352, 0], sizes = [16, 20], strides = [1, 1]} : vector<512x20xbf16> to vector<16x20xbf16>
    %79 = vector.extract_strided_slice %51 {offsets = [368, 0], sizes = [16, 20], strides = [1, 1]} : vector<512x20xbf16> to vector<16x20xbf16>
    %80 = vector.extract_strided_slice %51 {offsets = [384, 0], sizes = [16, 20], strides = [1, 1]} : vector<512x20xbf16> to vector<16x20xbf16>
    %81 = vector.extract_strided_slice %51 {offsets = [400, 0], sizes = [16, 20], strides = [1, 1]} : vector<512x20xbf16> to vector<16x20xbf16>
    %82 = vector.extract_strided_slice %51 {offsets = [416, 0], sizes = [16, 20], strides = [1, 1]} : vector<512x20xbf16> to vector<16x20xbf16>
    %83 = vector.extract_strided_slice %51 {offsets = [432, 0], sizes = [16, 20], strides = [1, 1]} : vector<512x20xbf16> to vector<16x20xbf16>
    %84 = vector.extract_strided_slice %51 {offsets = [448, 0], sizes = [16, 20], strides = [1, 1]} : vector<512x20xbf16> to vector<16x20xbf16>
    %85 = vector.extract_strided_slice %51 {offsets = [464, 0], sizes = [16, 20], strides = [1, 1]} : vector<512x20xbf16> to vector<16x20xbf16>
    %86 = vector.extract_strided_slice %51 {offsets = [480, 0], sizes = [16, 20], strides = [1, 1]} : vector<512x20xbf16> to vector<16x20xbf16>
    %87 = vector.extract_strided_slice %51 {offsets = [496, 0], sizes = [16, 20], strides = [1, 1]} : vector<512x20xbf16> to vector<16x20xbf16>
    %88 = tpu.concatenate %52, %72, %73, %74, %75, %76, %77, %78, %79, %80, %81, %82, %83, %84, %85, %86 in 1 : vector<16x40xbf16>, vector<16x20xbf16>, vector<16x20xbf16>, vector<16x20xbf16>, vector<16x20xbf16>, vector<16x20xbf16>, vector<16x20xbf16>, vector<16x20xbf16>, vector<16x20xbf16>, vector<16x20xbf16>, vector<16x20xbf16>, vector<16x20xbf16>, vector<16x20xbf16>, vector<16x20xbf16>, vector<16x20xbf16>, vector<16x20xbf16> -> vector<16x340xbf16>
    %89 = tpu.concatenate %87, %52 in 1 : vector<16x20xbf16>, vector<16x40xbf16> -> vector<16x60xbf16>
    %90 = tpu.concatenate %88, %89 in 1 : vector<16x340xbf16>, vector<16x60xbf16> -> vector<16x400xbf16>
    %91 = tpu.concatenate %71, %90 in 1 : vector<16x400xbf16>, vector<16x400xbf16> -> vector<16x800xbf16>
    %92 = vector.extract_strided_slice %91 {offsets = [0, 0], sizes = [16, 696], strides = [1, 1]} : vector<16x800xbf16> to vector<16x696xbf16>
    %93 = vector.extract_strided_slice %91 {offsets = [0, 1], sizes = [16, 696], strides = [1, 1]} : vector<16x800xbf16> to vector<16x696xbf16>
    %94 = vector.extract_strided_slice %91 {offsets = [0, 2], sizes = [16, 696], strides = [1, 1]} : vector<16x800xbf16> to vector<16x696xbf16>
    %95 = vector.extract_strided_slice %91 {offsets = [0, 3], sizes = [16, 696], strides = [1, 1]} : vector<16x800xbf16> to vector<16x696xbf16>
    %96 = vector.extract_strided_slice %91 {offsets = [0, 4], sizes = [16, 696], strides = [1, 1]} : vector<16x800xbf16> to vector<16x696xbf16>
    %97 = vector.extract_strided_slice %91 {offsets = [0, 20], sizes = [16, 696], strides = [1, 1]} : vector<16x800xbf16> to vector<16x696xbf16>
    %98 = vector.extract_strided_slice %91 {offsets = [0, 21], sizes = [16, 696], strides = [1, 1]} : vector<16x800xbf16> to vector<16x696xbf16>
    %99 = vector.extract_strided_slice %91 {offsets = [0, 22], sizes = [16, 696], strides = [1, 1]} : vector<16x800xbf16> to vector<16x696xbf16>
    %100 = vector.extract_strided_slice %91 {offsets = [0, 23], sizes = [16, 696], strides = [1, 1]} : vector<16x800xbf16> to vector<16x696xbf16>
    %101 = vector.extract_strided_slice %91 {offsets = [0, 24], sizes = [16, 696], strides = [1, 1]} : vector<16x800xbf16> to vector<16x696xbf16>
    %102 = vector.extract_strided_slice %91 {offsets = [0, 40], sizes = [16, 696], strides = [1, 1]} : vector<16x800xbf16> to vector<16x696xbf16>
    %103 = vector.extract_strided_slice %91 {offsets = [0, 41], sizes = [16, 696], strides = [1, 1]} : vector<16x800xbf16> to vector<16x696xbf16>
    %104 = vector.extract_strided_slice %91 {offsets = [0, 42], sizes = [16, 696], strides = [1, 1]} : vector<16x800xbf16> to vector<16x696xbf16>
    %105 = vector.extract_strided_slice %91 {offsets = [0, 43], sizes = [16, 696], strides = [1, 1]} : vector<16x800xbf16> to vector<16x696xbf16>
    %106 = vector.extract_strided_slice %91 {offsets = [0, 44], sizes = [16, 696], strides = [1, 1]} : vector<16x800xbf16> to vector<16x696xbf16>
    %107 = vector.extract_strided_slice %91 {offsets = [0, 60], sizes = [16, 696], strides = [1, 1]} : vector<16x800xbf16> to vector<16x696xbf16>
    %108 = vector.extract_strided_slice %91 {offsets = [0, 61], sizes = [16, 696], strides = [1, 1]} : vector<16x800xbf16> to vector<16x696xbf16>
    %109 = vector.extract_strided_slice %91 {offsets = [0, 62], sizes = [16, 696], strides = [1, 1]} : vector<16x800xbf16> to vector<16x696xbf16>
    %110 = vector.extract_strided_slice %91 {offsets = [0, 63], sizes = [16, 696], strides = [1, 1]} : vector<16x800xbf16> to vector<16x696xbf16>
    %111 = vector.extract_strided_slice %91 {offsets = [0, 64], sizes = [16, 696], strides = [1, 1]} : vector<16x800xbf16> to vector<16x696xbf16>
    %112 = vector.extract_strided_slice %91 {offsets = [0, 80], sizes = [16, 696], strides = [1, 1]} : vector<16x800xbf16> to vector<16x696xbf16>
    %113 = vector.extract_strided_slice %91 {offsets = [0, 81], sizes = [16, 696], strides = [1, 1]} : vector<16x800xbf16> to vector<16x696xbf16>
    %114 = vector.extract_strided_slice %91 {offsets = [0, 82], sizes = [16, 696], strides = [1, 1]} : vector<16x800xbf16> to vector<16x696xbf16>
    %115 = vector.extract_strided_slice %91 {offsets = [0, 83], sizes = [16, 696], strides = [1, 1]} : vector<16x800xbf16> to vector<16x696xbf16>
    %116 = vector.extract_strided_slice %91 {offsets = [0, 84], sizes = [16, 696], strides = [1, 1]} : vector<16x800xbf16> to vector<16x696xbf16>
    %c0_12 = arith.constant 0 : index
    %c0_13 = arith.constant 0 : index
    %117 = vector.load %arg4[%c0_12, %c0_13] : memref<16x400xbf16, #tpu.memory_space<vmem>>, vector<16x400xbf16>
    %118 = tpu.concatenate %92, %93, %94, %95, %96, %97, %98, %99, %100, %101, %102, %103, %104, %105, %106, %107 in 0 : vector<16x696xbf16>, vector<16x696xbf16>, vector<16x696xbf16>, vector<16x696xbf16>, vector<16x696xbf16>, vector<16x696xbf16>, vector<16x696xbf16>, vector<16x696xbf16>, vector<16x696xbf16>, vector<16x696xbf16>, vector<16x696xbf16>, vector<16x696xbf16>, vector<16x696xbf16>, vector<16x696xbf16>, vector<16x696xbf16>, vector<16x696xbf16> -> vector<256x696xbf16>
    %119 = tpu.concatenate %108, %109, %110, %111, %112, %113, %114, %115, %116 in 0 : vector<16x696xbf16>, vector<16x696xbf16>, vector<16x696xbf16>, vector<16x696xbf16>, vector<16x696xbf16>, vector<16x696xbf16>, vector<16x696xbf16>, vector<16x696xbf16>, vector<16x696xbf16> -> vector<144x696xbf16>
    %120 = tpu.concatenate %118, %119 in 0 : vector<256x696xbf16>, vector<144x696xbf16> -> vector<400x696xbf16>
    %cst_14 = arith.constant dense<0.000000e+00> : vector<16x696xf32>
    %121 = tpu.matmul %117, %120, %cst_14 {dimension_numbers = #tpu.dot_dimension_numbers<[1], [0], [0], [1], [0, 0, 1, 1], [], []>} : vector<16x400xbf16>, vector<400x696xbf16>, vector<16x696xf32> -> vector<16x696xf32>
    %c0_15 = arith.constant 0 : index
    %c0_16 = arith.constant 0 : index
    %122 = vector.load %arg5[%c0_15, %c0_16] : memref<16x1xf32, #tpu.memory_space<vmem>>, vector<16x1xf32>
    %123 = vector.broadcast %122 : vector<16x1xf32> to vector<16x696xf32>
    %124 = arith.addf %121, %123 : vector<16x696xf32>
    %cst_17 = arith.constant 5.000000e-01 : f32
    %125 = vector.broadcast %cst_17 : f32 to vector<16x696xf32>
    %126 = arith.mulf %125, %124 : vector<16x696xf32>
    %127 = math.tanh %126 : vector<16x696xf32>
    %cst_18 = arith.constant 5.000000e-01 : f32
    %128 = vector.broadcast %cst_18 : f32 to vector<16x696xf32>
    %129 = arith.mulf %128, %127 : vector<16x696xf32>
    %cst_19 = arith.constant 5.000000e-01 : f32
    %130 = vector.broadcast %cst_19 : f32 to vector<16x696xf32>
    %131 = arith.addf %129, %130 : vector<16x696xf32>
    %132 = arith.truncf %131 : vector<16x696xf32> to vector<16x696xbf16>
    %133 = vector.extract_strided_slice %132 {offsets = [0, 0], sizes = [16, 16], strides = [1, 1]} : vector<16x696xbf16> to vector<16x16xbf16>
    %134 = vector.extract_strided_slice %132 {offsets = [0, 40], sizes = [16, 16], strides = [1, 1]} : vector<16x696xbf16> to vector<16x16xbf16>
    %135 = vector.extract_strided_slice %132 {offsets = [0, 80], sizes = [16, 16], strides = [1, 1]} : vector<16x696xbf16> to vector<16x16xbf16>
    %136 = vector.extract_strided_slice %132 {offsets = [0, 120], sizes = [16, 16], strides = [1, 1]} : vector<16x696xbf16> to vector<16x16xbf16>
    %137 = vector.extract_strided_slice %132 {offsets = [0, 160], sizes = [16, 16], strides = [1, 1]} : vector<16x696xbf16> to vector<16x16xbf16>
    %138 = vector.extract_strided_slice %132 {offsets = [0, 200], sizes = [16, 16], strides = [1, 1]} : vector<16x696xbf16> to vector<16x16xbf16>
    %139 = vector.extract_strided_slice %132 {offsets = [0, 240], sizes = [16, 16], strides = [1, 1]} : vector<16x696xbf16> to vector<16x16xbf16>
    %140 = vector.extract_strided_slice %132 {offsets = [0, 280], sizes = [16, 16], strides = [1, 1]} : vector<16x696xbf16> to vector<16x16xbf16>
    %141 = vector.extract_strided_slice %132 {offsets = [0, 400], sizes = [16, 16], strides = [1, 1]} : vector<16x696xbf16> to vector<16x16xbf16>
    %142 = vector.extract_strided_slice %132 {offsets = [0, 440], sizes = [16, 16], strides = [1, 1]} : vector<16x696xbf16> to vector<16x16xbf16>
    %143 = vector.extract_strided_slice %132 {offsets = [0, 480], sizes = [16, 16], strides = [1, 1]} : vector<16x696xbf16> to vector<16x16xbf16>
    %144 = vector.extract_strided_slice %132 {offsets = [0, 520], sizes = [16, 16], strides = [1, 1]} : vector<16x696xbf16> to vector<16x16xbf16>
    %145 = vector.extract_strided_slice %132 {offsets = [0, 560], sizes = [16, 16], strides = [1, 1]} : vector<16x696xbf16> to vector<16x16xbf16>
    %146 = vector.extract_strided_slice %132 {offsets = [0, 600], sizes = [16, 16], strides = [1, 1]} : vector<16x696xbf16> to vector<16x16xbf16>
    %147 = vector.extract_strided_slice %132 {offsets = [0, 640], sizes = [16, 16], strides = [1, 1]} : vector<16x696xbf16> to vector<16x16xbf16>
    %148 = vector.extract_strided_slice %132 {offsets = [0, 680], sizes = [16, 16], strides = [1, 1]} : vector<16x696xbf16> to vector<16x16xbf16>
    %149 = tpu.concatenate %133, %134, %135, %136, %137, %138, %139, %140, %141, %142, %143, %144, %145, %146, %147, %148 in 0 : vector<16x16xbf16>, vector<16x16xbf16>, vector<16x16xbf16>, vector<16x16xbf16>, vector<16x16xbf16>, vector<16x16xbf16>, vector<16x16xbf16>, vector<16x16xbf16>, vector<16x16xbf16>, vector<16x16xbf16>, vector<16x16xbf16>, vector<16x16xbf16>, vector<16x16xbf16>, vector<16x16xbf16>, vector<16x16xbf16>, vector<16x16xbf16> -> vector<256x16xbf16>
    %c0_20 = arith.constant 0 : index
    %c0_21 = arith.constant 0 : index
    %150 = vector.load %arg11[%c0_20, %c0_21] : memref<16x12xbf16, #tpu.memory_space<vmem>>, vector<16x12xbf16>
    %cst_22 = arith.constant dense<0.000000e+00> : vector<256x12xf32>
    %151 = tpu.matmul %149, %150, %cst_22 {dimension_numbers = #tpu.dot_dimension_numbers<[1], [0], [0], [1], [0, 0, 1, 1], [], []>} : vector<256x16xbf16>, vector<16x12xbf16>, vector<256x12xf32> -> vector<256x12xf32>
    %152 = arith.truncf %151 : vector<256x12xf32> to vector<256x12xbf16>
    %cst_23 = arith.constant 0.000000e+00 : bf16
    %153 = vector.broadcast %cst_23 : bf16 to vector<16x24xbf16>
    %154 = vector.extract_strided_slice %152 {offsets = [0, 0], sizes = [16, 12], strides = [1, 1]} : vector<256x12xbf16> to vector<16x12xbf16>
    %155 = vector.extract_strided_slice %152 {offsets = [16, 0], sizes = [16, 12], strides = [1, 1]} : vector<256x12xbf16> to vector<16x12xbf16>
    %156 = vector.extract_strided_slice %152 {offsets = [32, 0], sizes = [16, 12], strides = [1, 1]} : vector<256x12xbf16> to vector<16x12xbf16>
    %157 = vector.extract_strided_slice %152 {offsets = [48, 0], sizes = [16, 12], strides = [1, 1]} : vector<256x12xbf16> to vector<16x12xbf16>
    %158 = vector.extract_strided_slice %152 {offsets = [64, 0], sizes = [16, 12], strides = [1, 1]} : vector<256x12xbf16> to vector<16x12xbf16>
    %159 = vector.extract_strided_slice %152 {offsets = [80, 0], sizes = [16, 12], strides = [1, 1]} : vector<256x12xbf16> to vector<16x12xbf16>
    %160 = vector.extract_strided_slice %152 {offsets = [96, 0], sizes = [16, 12], strides = [1, 1]} : vector<256x12xbf16> to vector<16x12xbf16>
    %161 = vector.extract_strided_slice %152 {offsets = [112, 0], sizes = [16, 12], strides = [1, 1]} : vector<256x12xbf16> to vector<16x12xbf16>
    %162 = tpu.concatenate %153, %154, %155, %156, %157, %158, %159, %160, %161, %153 in 1 : vector<16x24xbf16>, vector<16x12xbf16>, vector<16x12xbf16>, vector<16x12xbf16>, vector<16x12xbf16>, vector<16x12xbf16>, vector<16x12xbf16>, vector<16x12xbf16>, vector<16x12xbf16>, vector<16x24xbf16> -> vector<16x144xbf16>
    %163 = vector.extract_strided_slice %152 {offsets = [128, 0], sizes = [16, 12], strides = [1, 1]} : vector<256x12xbf16> to vector<16x12xbf16>
    %164 = vector.extract_strided_slice %152 {offsets = [144, 0], sizes = [16, 12], strides = [1, 1]} : vector<256x12xbf16> to vector<16x12xbf16>
    %165 = vector.extract_strided_slice %152 {offsets = [160, 0], sizes = [16, 12], strides = [1, 1]} : vector<256x12xbf16> to vector<16x12xbf16>
    %166 = vector.extract_strided_slice %152 {offsets = [176, 0], sizes = [16, 12], strides = [1, 1]} : vector<256x12xbf16> to vector<16x12xbf16>
    %167 = vector.extract_strided_slice %152 {offsets = [192, 0], sizes = [16, 12], strides = [1, 1]} : vector<256x12xbf16> to vector<16x12xbf16>
    %168 = vector.extract_strided_slice %152 {offsets = [208, 0], sizes = [16, 12], strides = [1, 1]} : vector<256x12xbf16> to vector<16x12xbf16>
    %169 = vector.extract_strided_slice %152 {offsets = [224, 0], sizes = [16, 12], strides = [1, 1]} : vector<256x12xbf16> to vector<16x12xbf16>
    %170 = vector.extract_strided_slice %152 {offsets = [240, 0], sizes = [16, 12], strides = [1, 1]} : vector<256x12xbf16> to vector<16x12xbf16>
    %171 = tpu.concatenate %153, %163, %164, %165, %166, %167, %168, %169, %170, %153 in 1 : vector<16x24xbf16>, vector<16x12xbf16>, vector<16x12xbf16>, vector<16x12xbf16>, vector<16x12xbf16>, vector<16x12xbf16>, vector<16x12xbf16>, vector<16x12xbf16>, vector<16x12xbf16>, vector<16x24xbf16> -> vector<16x144xbf16>
    %172 = tpu.concatenate %162, %171 in 1 : vector<16x144xbf16>, vector<16x144xbf16> -> vector<16x288xbf16>
    %173 = vector.extract_strided_slice %172 {offsets = [0, 0], sizes = [16, 236], strides = [1, 1]} : vector<16x288xbf16> to vector<16x236xbf16>
    %174 = vector.extract_strided_slice %172 {offsets = [0, 1], sizes = [16, 236], strides = [1, 1]} : vector<16x288xbf16> to vector<16x236xbf16>
    %175 = vector.extract_strided_slice %172 {offsets = [0, 2], sizes = [16, 236], strides = [1, 1]} : vector<16x288xbf16> to vector<16x236xbf16>
    %176 = vector.extract_strided_slice %172 {offsets = [0, 3], sizes = [16, 236], strides = [1, 1]} : vector<16x288xbf16> to vector<16x236xbf16>
    %177 = vector.extract_strided_slice %172 {offsets = [0, 4], sizes = [16, 236], strides = [1, 1]} : vector<16x288xbf16> to vector<16x236xbf16>
    %178 = vector.extract_strided_slice %172 {offsets = [0, 12], sizes = [16, 236], strides = [1, 1]} : vector<16x288xbf16> to vector<16x236xbf16>
    %179 = vector.extract_strided_slice %172 {offsets = [0, 13], sizes = [16, 236], strides = [1, 1]} : vector<16x288xbf16> to vector<16x236xbf16>
    %180 = vector.extract_strided_slice %172 {offsets = [0, 14], sizes = [16, 236], strides = [1, 1]} : vector<16x288xbf16> to vector<16x236xbf16>
    %181 = vector.extract_strided_slice %172 {offsets = [0, 15], sizes = [16, 236], strides = [1, 1]} : vector<16x288xbf16> to vector<16x236xbf16>
    %182 = vector.extract_strided_slice %172 {offsets = [0, 16], sizes = [16, 236], strides = [1, 1]} : vector<16x288xbf16> to vector<16x236xbf16>
    %183 = vector.extract_strided_slice %172 {offsets = [0, 24], sizes = [16, 236], strides = [1, 1]} : vector<16x288xbf16> to vector<16x236xbf16>
    %184 = vector.extract_strided_slice %172 {offsets = [0, 25], sizes = [16, 236], strides = [1, 1]} : vector<16x288xbf16> to vector<16x236xbf16>
    %185 = vector.extract_strided_slice %172 {offsets = [0, 26], sizes = [16, 236], strides = [1, 1]} : vector<16x288xbf16> to vector<16x236xbf16>
    %186 = vector.extract_strided_slice %172 {offsets = [0, 27], sizes = [16, 236], strides = [1, 1]} : vector<16x288xbf16> to vector<16x236xbf16>
    %187 = vector.extract_strided_slice %172 {offsets = [0, 28], sizes = [16, 236], strides = [1, 1]} : vector<16x288xbf16> to vector<16x236xbf16>
    %188 = vector.extract_strided_slice %172 {offsets = [0, 36], sizes = [16, 236], strides = [1, 1]} : vector<16x288xbf16> to vector<16x236xbf16>
    %189 = vector.extract_strided_slice %172 {offsets = [0, 37], sizes = [16, 236], strides = [1, 1]} : vector<16x288xbf16> to vector<16x236xbf16>
    %190 = vector.extract_strided_slice %172 {offsets = [0, 38], sizes = [16, 236], strides = [1, 1]} : vector<16x288xbf16> to vector<16x236xbf16>
    %191 = vector.extract_strided_slice %172 {offsets = [0, 39], sizes = [16, 236], strides = [1, 1]} : vector<16x288xbf16> to vector<16x236xbf16>
    %192 = vector.extract_strided_slice %172 {offsets = [0, 40], sizes = [16, 236], strides = [1, 1]} : vector<16x288xbf16> to vector<16x236xbf16>
    %193 = vector.extract_strided_slice %172 {offsets = [0, 48], sizes = [16, 236], strides = [1, 1]} : vector<16x288xbf16> to vector<16x236xbf16>
    %194 = vector.extract_strided_slice %172 {offsets = [0, 49], sizes = [16, 236], strides = [1, 1]} : vector<16x288xbf16> to vector<16x236xbf16>
    %195 = vector.extract_strided_slice %172 {offsets = [0, 50], sizes = [16, 236], strides = [1, 1]} : vector<16x288xbf16> to vector<16x236xbf16>
    %196 = vector.extract_strided_slice %172 {offsets = [0, 51], sizes = [16, 236], strides = [1, 1]} : vector<16x288xbf16> to vector<16x236xbf16>
    %197 = vector.extract_strided_slice %172 {offsets = [0, 52], sizes = [16, 236], strides = [1, 1]} : vector<16x288xbf16> to vector<16x236xbf16>
    %c0_24 = arith.constant 0 : index
    %c0_25 = arith.constant 0 : index
    %198 = vector.load %arg6[%c0_24, %c0_25] : memref<16x400xbf16, #tpu.memory_space<vmem>>, vector<16x400xbf16>
    %199 = tpu.concatenate %173, %174, %175, %176, %177, %178, %179, %180, %181, %182, %183, %184, %185, %186, %187, %188 in 0 : vector<16x236xbf16>, vector<16x236xbf16>, vector<16x236xbf16>, vector<16x236xbf16>, vector<16x236xbf16>, vector<16x236xbf16>, vector<16x236xbf16>, vector<16x236xbf16>, vector<16x236xbf16>, vector<16x236xbf16>, vector<16x236xbf16>, vector<16x236xbf16>, vector<16x236xbf16>, vector<16x236xbf16>, vector<16x236xbf16>, vector<16x236xbf16> -> vector<256x236xbf16>
    %200 = tpu.concatenate %189, %190, %191, %192, %193, %194, %195, %196, %197 in 0 : vector<16x236xbf16>, vector<16x236xbf16>, vector<16x236xbf16>, vector<16x236xbf16>, vector<16x236xbf16>, vector<16x236xbf16>, vector<16x236xbf16>, vector<16x236xbf16>, vector<16x236xbf16> -> vector<144x236xbf16>
    %201 = tpu.concatenate %199, %200 in 0 : vector<256x236xbf16>, vector<144x236xbf16> -> vector<400x236xbf16>
    %cst_26 = arith.constant dense<0.000000e+00> : vector<16x236xf32>
    %202 = tpu.matmul %198, %201, %cst_26 {dimension_numbers = #tpu.dot_dimension_numbers<[1], [0], [0], [1], [0, 0, 1, 1], [], []>} : vector<16x400xbf16>, vector<400x236xbf16>, vector<16x236xf32> -> vector<16x236xf32>
    %c0_27 = arith.constant 0 : index
    %c0_28 = arith.constant 0 : index
    %203 = vector.load %arg7[%c0_27, %c0_28] : memref<16x1xf32, #tpu.memory_space<vmem>>, vector<16x1xf32>
    %204 = vector.broadcast %203 : vector<16x1xf32> to vector<16x236xf32>
    %205 = arith.addf %202, %204 : vector<16x236xf32>
    %cst_29 = arith.constant 5.000000e-01 : f32
    %206 = vector.broadcast %cst_29 : f32 to vector<16x236xf32>
    %207 = arith.mulf %206, %205 : vector<16x236xf32>
    %208 = math.tanh %207 : vector<16x236xf32>
    %cst_30 = arith.constant 5.000000e-01 : f32
    %209 = vector.broadcast %cst_30 : f32 to vector<16x236xf32>
    %210 = arith.mulf %209, %208 : vector<16x236xf32>
    %cst_31 = arith.constant 5.000000e-01 : f32
    %211 = vector.broadcast %cst_31 : f32 to vector<16x236xf32>
    %212 = arith.addf %210, %211 : vector<16x236xf32>
    %213 = arith.truncf %212 : vector<16x236xf32> to vector<16x236xbf16>
    %cst_32 = arith.constant 0.000000e+00 : bf16
    %214 = vector.broadcast %cst_32 : bf16 to vector<16x26xbf16>
    %215 = vector.extract_strided_slice %213 {offsets = [0, 0], sizes = [16, 92], strides = [1, 1]} : vector<16x236xbf16> to vector<16x92xbf16>
    %216 = tpu.concatenate %214, %215, %214 in 1 : vector<16x26xbf16>, vector<16x92xbf16>, vector<16x26xbf16> -> vector<16x144xbf16>
    %217 = vector.extract_strided_slice %213 {offsets = [0, 144], sizes = [16, 92], strides = [1, 1]} : vector<16x236xbf16> to vector<16x92xbf16>
    %218 = tpu.concatenate %214, %217, %214 in 1 : vector<16x26xbf16>, vector<16x92xbf16>, vector<16x26xbf16> -> vector<16x144xbf16>
    %219 = tpu.concatenate %216, %218 in 1 : vector<16x144xbf16>, vector<16x144xbf16> -> vector<16x288xbf16>
    %c0_33 = arith.constant 0 : index
    %c0_34 = arith.constant 0 : index
    %220 = vector.load %arg12[%c0_33, %c0_34] : memref<1x288xbf16, #tpu.memory_space<vmem>>, vector<1x288xbf16>
    %221 = vector.broadcast %220 : vector<1x288xbf16> to vector<16x288xbf16>
    %222 = arith.mulf %219, %221 : vector<16x288xbf16>
    %223 = vector.extract_strided_slice %222 {offsets = [0, 0], sizes = [16, 236], strides = [1, 1]} : vector<16x288xbf16> to vector<16x236xbf16>
    %224 = vector.extract_strided_slice %222 {offsets = [0, 1], sizes = [16, 236], strides = [1, 1]} : vector<16x288xbf16> to vector<16x236xbf16>
    %225 = vector.extract_strided_slice %222 {offsets = [0, 2], sizes = [16, 236], strides = [1, 1]} : vector<16x288xbf16> to vector<16x236xbf16>
    %226 = vector.extract_strided_slice %222 {offsets = [0, 3], sizes = [16, 236], strides = [1, 1]} : vector<16x288xbf16> to vector<16x236xbf16>
    %227 = vector.extract_strided_slice %222 {offsets = [0, 4], sizes = [16, 236], strides = [1, 1]} : vector<16x288xbf16> to vector<16x236xbf16>
    %228 = vector.extract_strided_slice %222 {offsets = [0, 12], sizes = [16, 236], strides = [1, 1]} : vector<16x288xbf16> to vector<16x236xbf16>
    %229 = vector.extract_strided_slice %222 {offsets = [0, 13], sizes = [16, 236], strides = [1, 1]} : vector<16x288xbf16> to vector<16x236xbf16>
    %230 = vector.extract_strided_slice %222 {offsets = [0, 14], sizes = [16, 236], strides = [1, 1]} : vector<16x288xbf16> to vector<16x236xbf16>
    %231 = vector.extract_strided_slice %222 {offsets = [0, 15], sizes = [16, 236], strides = [1, 1]} : vector<16x288xbf16> to vector<16x236xbf16>
    %232 = vector.extract_strided_slice %222 {offsets = [0, 16], sizes = [16, 236], strides = [1, 1]} : vector<16x288xbf16> to vector<16x236xbf16>
    %233 = vector.extract_strided_slice %222 {offsets = [0, 24], sizes = [16, 236], strides = [1, 1]} : vector<16x288xbf16> to vector<16x236xbf16>
    %234 = vector.extract_strided_slice %222 {offsets = [0, 25], sizes = [16, 236], strides = [1, 1]} : vector<16x288xbf16> to vector<16x236xbf16>
    %235 = vector.extract_strided_slice %222 {offsets = [0, 26], sizes = [16, 236], strides = [1, 1]} : vector<16x288xbf16> to vector<16x236xbf16>
    %236 = vector.extract_strided_slice %222 {offsets = [0, 27], sizes = [16, 236], strides = [1, 1]} : vector<16x288xbf16> to vector<16x236xbf16>
    %237 = vector.extract_strided_slice %222 {offsets = [0, 28], sizes = [16, 236], strides = [1, 1]} : vector<16x288xbf16> to vector<16x236xbf16>
    %238 = vector.extract_strided_slice %222 {offsets = [0, 36], sizes = [16, 236], strides = [1, 1]} : vector<16x288xbf16> to vector<16x236xbf16>
    %239 = vector.extract_strided_slice %222 {offsets = [0, 37], sizes = [16, 236], strides = [1, 1]} : vector<16x288xbf16> to vector<16x236xbf16>
    %240 = vector.extract_strided_slice %222 {offsets = [0, 38], sizes = [16, 236], strides = [1, 1]} : vector<16x288xbf16> to vector<16x236xbf16>
    %241 = vector.extract_strided_slice %222 {offsets = [0, 39], sizes = [16, 236], strides = [1, 1]} : vector<16x288xbf16> to vector<16x236xbf16>
    %242 = vector.extract_strided_slice %222 {offsets = [0, 40], sizes = [16, 236], strides = [1, 1]} : vector<16x288xbf16> to vector<16x236xbf16>
    %243 = vector.extract_strided_slice %222 {offsets = [0, 48], sizes = [16, 236], strides = [1, 1]} : vector<16x288xbf16> to vector<16x236xbf16>
    %244 = vector.extract_strided_slice %222 {offsets = [0, 49], sizes = [16, 236], strides = [1, 1]} : vector<16x288xbf16> to vector<16x236xbf16>
    %245 = vector.extract_strided_slice %222 {offsets = [0, 50], sizes = [16, 236], strides = [1, 1]} : vector<16x288xbf16> to vector<16x236xbf16>
    %246 = vector.extract_strided_slice %222 {offsets = [0, 51], sizes = [16, 236], strides = [1, 1]} : vector<16x288xbf16> to vector<16x236xbf16>
    %247 = vector.extract_strided_slice %222 {offsets = [0, 52], sizes = [16, 236], strides = [1, 1]} : vector<16x288xbf16> to vector<16x236xbf16>
    %c0_35 = arith.constant 0 : index
    %c0_36 = arith.constant 0 : index
    %248 = vector.load %arg8[%c0_35, %c0_36] : memref<16x400xbf16, #tpu.memory_space<vmem>>, vector<16x400xbf16>
    %249 = tpu.concatenate %223, %224, %225, %226, %227, %228, %229, %230, %231, %232, %233, %234, %235, %236, %237, %238 in 0 : vector<16x236xbf16>, vector<16x236xbf16>, vector<16x236xbf16>, vector<16x236xbf16>, vector<16x236xbf16>, vector<16x236xbf16>, vector<16x236xbf16>, vector<16x236xbf16>, vector<16x236xbf16>, vector<16x236xbf16>, vector<16x236xbf16>, vector<16x236xbf16>, vector<16x236xbf16>, vector<16x236xbf16>, vector<16x236xbf16>, vector<16x236xbf16> -> vector<256x236xbf16>
    %250 = tpu.concatenate %239, %240, %241, %242, %243, %244, %245, %246, %247 in 0 : vector<16x236xbf16>, vector<16x236xbf16>, vector<16x236xbf16>, vector<16x236xbf16>, vector<16x236xbf16>, vector<16x236xbf16>, vector<16x236xbf16>, vector<16x236xbf16>, vector<16x236xbf16> -> vector<144x236xbf16>
    %251 = tpu.concatenate %249, %250 in 0 : vector<256x236xbf16>, vector<144x236xbf16> -> vector<400x236xbf16>
    %cst_37 = arith.constant dense<0.000000e+00> : vector<16x236xf32>
    %252 = tpu.matmul %248, %251, %cst_37 {dimension_numbers = #tpu.dot_dimension_numbers<[1], [0], [0], [1], [0, 0, 1, 1], [], []>} : vector<16x400xbf16>, vector<400x236xbf16>, vector<16x236xf32> -> vector<16x236xf32>
    %c0_38 = arith.constant 0 : index
    %c0_39 = arith.constant 0 : index
    %253 = vector.load %arg9[%c0_38, %c0_39] : memref<16x1xf32, #tpu.memory_space<vmem>>, vector<16x1xf32>
    %254 = vector.broadcast %253 : vector<16x1xf32> to vector<16x236xf32>
    %255 = arith.addf %252, %254 : vector<16x236xf32>
    %cst_40 = arith.constant 5.000000e-01 : f32
    %256 = vector.broadcast %cst_40 : f32 to vector<16x236xf32>
    %257 = arith.mulf %256, %255 : vector<16x236xf32>
    %258 = math.tanh %257 : vector<16x236xf32>
    %cst_41 = arith.constant 5.000000e-01 : f32
    %259 = vector.broadcast %cst_41 : f32 to vector<16x236xf32>
    %260 = arith.mulf %259, %258 : vector<16x236xf32>
    %cst_42 = arith.constant 5.000000e-01 : f32
    %261 = vector.broadcast %cst_42 : f32 to vector<16x236xf32>
    %262 = arith.addf %260, %261 : vector<16x236xf32>
    %263 = arith.truncf %262 : vector<16x236xf32> to vector<16x236xbf16>
    %264 = vector.extract_strided_slice %263 {offsets = [0, 0], sizes = [1, 92], strides = [1, 1]} : vector<16x236xbf16> to vector<1x92xbf16>
    %265 = vector.extract_strided_slice %263 {offsets = [1, 0], sizes = [1, 92], strides = [1, 1]} : vector<16x236xbf16> to vector<1x92xbf16>
    %266 = vector.extract_strided_slice %263 {offsets = [2, 0], sizes = [1, 92], strides = [1, 1]} : vector<16x236xbf16> to vector<1x92xbf16>
    %267 = vector.extract_strided_slice %263 {offsets = [3, 0], sizes = [1, 92], strides = [1, 1]} : vector<16x236xbf16> to vector<1x92xbf16>
    %268 = vector.extract_strided_slice %263 {offsets = [4, 0], sizes = [1, 92], strides = [1, 1]} : vector<16x236xbf16> to vector<1x92xbf16>
    %269 = vector.extract_strided_slice %263 {offsets = [5, 0], sizes = [1, 92], strides = [1, 1]} : vector<16x236xbf16> to vector<1x92xbf16>
    %270 = vector.extract_strided_slice %263 {offsets = [6, 0], sizes = [1, 92], strides = [1, 1]} : vector<16x236xbf16> to vector<1x92xbf16>
    %271 = vector.extract_strided_slice %263 {offsets = [7, 0], sizes = [1, 92], strides = [1, 1]} : vector<16x236xbf16> to vector<1x92xbf16>
    %272 = vector.extract_strided_slice %263 {offsets = [8, 0], sizes = [1, 92], strides = [1, 1]} : vector<16x236xbf16> to vector<1x92xbf16>
    %273 = vector.extract_strided_slice %263 {offsets = [9, 0], sizes = [1, 92], strides = [1, 1]} : vector<16x236xbf16> to vector<1x92xbf16>
    %274 = vector.extract_strided_slice %263 {offsets = [10, 0], sizes = [1, 92], strides = [1, 1]} : vector<16x236xbf16> to vector<1x92xbf16>
    %275 = vector.extract_strided_slice %263 {offsets = [11, 0], sizes = [1, 92], strides = [1, 1]} : vector<16x236xbf16> to vector<1x92xbf16>
    %276 = tpu.concatenate %264, %265, %266, %267, %268, %269, %270, %271, %272, %273, %274, %275 in 1 : vector<1x92xbf16>, vector<1x92xbf16>, vector<1x92xbf16>, vector<1x92xbf16>, vector<1x92xbf16>, vector<1x92xbf16>, vector<1x92xbf16>, vector<1x92xbf16>, vector<1x92xbf16>, vector<1x92xbf16>, vector<1x92xbf16>, vector<1x92xbf16> -> vector<1x1104xbf16>
    %277 = vector.extract_strided_slice %263 {offsets = [0, 144], sizes = [1, 92], strides = [1, 1]} : vector<16x236xbf16> to vector<1x92xbf16>
    %278 = vector.extract_strided_slice %263 {offsets = [1, 144], sizes = [1, 92], strides = [1, 1]} : vector<16x236xbf16> to vector<1x92xbf16>
    %279 = vector.extract_strided_slice %263 {offsets = [2, 144], sizes = [1, 92], strides = [1, 1]} : vector<16x236xbf16> to vector<1x92xbf16>
    %280 = vector.extract_strided_slice %263 {offsets = [3, 144], sizes = [1, 92], strides = [1, 1]} : vector<16x236xbf16> to vector<1x92xbf16>
    %281 = vector.extract_strided_slice %263 {offsets = [4, 144], sizes = [1, 92], strides = [1, 1]} : vector<16x236xbf16> to vector<1x92xbf16>
    %282 = vector.extract_strided_slice %263 {offsets = [5, 144], sizes = [1, 92], strides = [1, 1]} : vector<16x236xbf16> to vector<1x92xbf16>
    %283 = vector.extract_strided_slice %263 {offsets = [6, 144], sizes = [1, 92], strides = [1, 1]} : vector<16x236xbf16> to vector<1x92xbf16>
    %284 = vector.extract_strided_slice %263 {offsets = [7, 144], sizes = [1, 92], strides = [1, 1]} : vector<16x236xbf16> to vector<1x92xbf16>
    %285 = vector.extract_strided_slice %263 {offsets = [8, 144], sizes = [1, 92], strides = [1, 1]} : vector<16x236xbf16> to vector<1x92xbf16>
    %286 = vector.extract_strided_slice %263 {offsets = [9, 144], sizes = [1, 92], strides = [1, 1]} : vector<16x236xbf16> to vector<1x92xbf16>
    %287 = vector.extract_strided_slice %263 {offsets = [10, 144], sizes = [1, 92], strides = [1, 1]} : vector<16x236xbf16> to vector<1x92xbf16>
    %288 = vector.extract_strided_slice %263 {offsets = [11, 144], sizes = [1, 92], strides = [1, 1]} : vector<16x236xbf16> to vector<1x92xbf16>
    %289 = tpu.concatenate %277, %278, %279, %280, %281, %282, %283, %284, %285, %286, %287, %288 in 1 : vector<1x92xbf16>, vector<1x92xbf16>, vector<1x92xbf16>, vector<1x92xbf16>, vector<1x92xbf16>, vector<1x92xbf16>, vector<1x92xbf16>, vector<1x92xbf16>, vector<1x92xbf16>, vector<1x92xbf16>, vector<1x92xbf16>, vector<1x92xbf16> -> vector<1x1104xbf16>
    %290 = tpu.concatenate %276, %289 in 0 : vector<1x1104xbf16>, vector<1x1104xbf16> -> vector<2x1104xbf16>
    %c0_43 = arith.constant 0 : index
    %c0_44 = arith.constant 0 : index
    %291 = vector.load %arg13[%c0_43, %c0_44] : memref<1104x10xbf16, #tpu.memory_space<vmem>>, vector<1104x10xbf16>
    %cst_45 = arith.constant dense<0.000000e+00> : vector<2x10xf32>
    %292 = tpu.matmul %290, %291, %cst_45 {dimension_numbers = #tpu.dot_dimension_numbers<[1], [0], [0], [1], [0, 0, 1, 1], [], []>} : vector<2x1104xbf16>, vector<1104x10xbf16>, vector<2x10xf32> -> vector<2x10xf32>
    %c0_46 = arith.constant 0 : index
    %c0_47 = arith.constant 0 : index
    %293 = vector.load %arg14[%c0_46, %c0_47] : memref<1x10xf32, #tpu.memory_space<vmem>>, vector<1x10xf32>
    %294 = vector.broadcast %293 : vector<1x10xf32> to vector<2x10xf32>
    %295 = arith.addf %292, %294 : vector<2x10xf32>
    %cst_48 = arith.constant 0.000000e+00 : f32
    %296 = vector.broadcast %cst_48 : f32 to vector<2x118xf32>
    %297 = tpu.concatenate %295, %296 in 1 : vector<2x10xf32>, vector<2x118xf32> -> vector<2x128xf32>
    %c0_49 = arith.constant 0 : index
    %c0_50 = arith.constant 0 : index
    %298 = vector.load %arg15[%c0_49, %c0_50] : memref<2x128xf32, #tpu.memory_space<vmem>>, vector<2x128xf32>
    tpu.vector_store %arg15[%c0_49, %c0_50], %297 {strides = array<i32>} : memref<2x128xf32, #tpu.memory_space<vmem>>, vector<2x128xf32>,
    return
  }
  func.func @transform_0(%arg0: i32) -> (i32, i32) {
    %c0_i32 = arith.constant 0 : i32
    %c0_i32_0 = arith.constant 0 : i32
    return %c0_i32, %arg0 : i32, i32
  }
  func.func @transform_1(%arg0: i32) -> (i32, i32) {
    %c0_i32 = arith.constant 0 : i32
    %c0_i32_0 = arith.constant 0 : i32
    %c0_i32_1 = arith.constant 0 : i32
    return %c0_i32, %c0_i32_0 : i32, i32
  }
  func.func @transform_2(%arg0: i32) -> (i32, i32) {
    %c0_i32 = arith.constant 0 : i32
    %c0_i32_0 = arith.constant 0 : i32
    %c0_i32_1 = arith.constant 0 : i32
    return %c0_i32, %c0_i32_0 : i32, i32
  }
  func.func @transform_3(%arg0: i32) -> (i32, i32) {
    %c0_i32 = arith.constant 0 : i32
    %c0_i32_0 = arith.constant 0 : i32
    %c0_i32_1 = arith.constant 0 : i32
    return %c0_i32, %c0_i32_0 : i32, i32
  }
  func.func @transform_4(%arg0: i32) -> (i32, i32) {
    %c0_i32 = arith.constant 0 : i32
    %c0_i32_0 = arith.constant 0 : i32
    %c0_i32_1 = arith.constant 0 : i32
    return %c0_i32, %c0_i32_0 : i32, i32
  }
  func.func @transform_5(%arg0: i32) -> (i32, i32) {
    %c0_i32 = arith.constant 0 : i32
    %c0_i32_0 = arith.constant 0 : i32
    %c0_i32_1 = arith.constant 0 : i32
    return %c0_i32, %c0_i32_0 : i32, i32
  }
  func.func @transform_6(%arg0: i32) -> (i32, i32) {
    %c0_i32 = arith.constant 0 : i32
    %c0_i32_0 = arith.constant 0 : i32
    %c0_i32_1 = arith.constant 0 : i32
    return %c0_i32, %c0_i32_0 : i32, i32
  }
  func.func @transform_7(%arg0: i32) -> (i32, i32) {
    %c0_i32 = arith.constant 0 : i32
    %c0_i32_0 = arith.constant 0 : i32
    %c0_i32_1 = arith.constant 0 : i32
    return %c0_i32, %c0_i32_0 : i32, i32
  }
  func.func @transform_8(%arg0: i32) -> (i32, i32) {
    %c0_i32 = arith.constant 0 : i32
    %c0_i32_0 = arith.constant 0 : i32
    %c0_i32_1 = arith.constant 0 : i32
    return %c0_i32, %c0_i32_0 : i32, i32
  }
  func.func @transform_9(%arg0: i32) -> (i32, i32) {
    %c0_i32 = arith.constant 0 : i32
    %c0_i32_0 = arith.constant 0 : i32
    %c0_i32_1 = arith.constant 0 : i32
    return %c0_i32, %c0_i32_0 : i32, i32
  }
  func.func @transform_10(%arg0: i32) -> (i32, i32) {
    %c0_i32 = arith.constant 0 : i32
    %c0_i32_0 = arith.constant 0 : i32
    %c0_i32_1 = arith.constant 0 : i32
    return %c0_i32, %c0_i32_0 : i32, i32
  }
  func.func @transform_11(%arg0: i32) -> (i32, i32) {
    %c0_i32 = arith.constant 0 : i32
    %c0_i32_0 = arith.constant 0 : i32
    %c0_i32_1 = arith.constant 0 : i32
    return %c0_i32, %c0_i32_0 : i32, i32
  }
  func.func @transform_12(%arg0: i32) -> (i32, i32) {
    %c0_i32 = arith.constant 0 : i32
    %c0_i32_0 = arith.constant 0 : i32
    %c0_i32_1 = arith.constant 0 : i32
    return %c0_i32, %c0_i32_0 : i32, i32
  }
  func.func @transform_13(%arg0: i32) -> (i32, i32) {
    %c0_i32 = arith.constant 0 : i32
    %c0_i32_0 = arith.constant 0 : i32
    %c0_i32_1 = arith.constant 0 : i32
    return %c0_i32, %c0_i32_0 : i32, i32
  }
  func.func @transform_14(%arg0: i32) -> (i32, i32) {
    %c0_i32 = arith.constant 0 : i32
    %c0_i32_0 = arith.constant 0 : i32
    return %arg0, %c0_i32 : i32, i32
  }
}

</mosaic_0001>

<llo_original>
// kernel: simple_cnn_forward.1
$region0: #{simple_cnn_forward.1}
  #allocation0 [shape = 'u32[]', space=smem, size = 0x4, offset = 0x4, fixed_abs, tag = 'smem constant byte address 0x4 - core index']
  #allocation1 [shape = 'u32[144,128]{1,0:T(1,128)}', space=vmem, size = 0x12000, scoped, tag = 'internal scratch']
  %s0 = inlined_call_operand.vmem [shape: bf16[25,2304], index: 0, kind: input, shape index: {}]
  %s1 = inlined_call_operand.vmem [shape: bf16[16,25], index: 1, kind: input, shape index: {}]
  %s2 = inlined_call_operand.vmem [shape: f32[16,1], index: 2, kind: input, shape index: {}]
  %s3 = inlined_call_operand.vmem [shape: bf16[16,400], index: 3, kind: input, shape index: {}]
  %s4 = inlined_call_operand.vmem [shape: f32[16,1], index: 4, kind: input, shape index: {}]
  %s5 = inlined_call_operand.vmem [shape: bf16[16,400], index: 5, kind: input, shape index: {}]
  %s6 = inlined_call_operand.vmem [shape: f32[16,1], index: 6, kind: input, shape index: {}]
  %s7 = inlined_call_operand.vmem [shape: bf16[16,400], index: 7, kind: input, shape index: {}]
  %s8 = inlined_call_operand.vmem [shape: f32[16,1], index: 8, kind: input, shape index: {}]
  %s9 = inlined_call_operand.vmem [shape: bf16[32,20], index: 9, kind: input, shape index: {}]
  %s10 = inlined_call_operand.vmem [shape: bf16[16,12], index: 10, kind: input, shape index: {}]
  %s11 = inlined_call_operand.vmem [shape: bf16[1,288], index: 11, kind: input, shape index: {}]
  %s12 = inlined_call_operand.vmem [shape: bf16[1104,10], index: 12, kind: input, shape index: {}]
  %s13 = inlined_call_operand.vmem [shape: f32[1,10], index: 13, kind: input, shape index: {}]
  %s14 = inlined_call_operand.hbm [shape: f32[2,128], index: 14, kind: output, shape index: {}]
  %s15 = sld [smem:[#allocation0]]
  $region66: #{simple_cnn_forward.1} parent=0
    _
  %s17 = ssub.s32 1, %s15
  %s18 = scalar_select 0, %s17, %s15
  $region1: #{simple_cnn_forward.1} parent=0
    #allocation2 [shape = 'u8[1024]{0}', space=vmem, size = 0x400, scoped, tag = 'output window, operand 0, single buffered']
    #allocation3 [shape = 's32[1]{0}', space=sflag, size = 0x4, scoped, tag = 'scoped memory for simple_cnn_forward.1']
    %19 = vsyncpa [#allocation3], 0
    // Predicated region
    $region2: #{simple_cnn_forward.1} parent=1 // pred_check
      _
    $region3: #{simple_cnn_forward.1} parent=1 // pred_check_branch
      %21 = sbr.rel (0) target = $region5
    $region4: #{simple_cnn_forward.1} parent=1 // pred_region
      _
    $region5: #{simple_cnn_forward.1} parent=1 // pred_fallthru
      _
    // Predicated region
    $region6: #{simple_cnn_forward.1} parent=1 // pred_check
      _
    $region7: #{simple_cnn_forward.1} parent=1 // pred_check_branch
      %23 = sbr.rel (0) target = $region9
    $region8: #{simple_cnn_forward.1} parent=1 // pred_region
      _
    $region9: #{simple_cnn_forward.1} parent=1 // pred_fallthru
      _
    // Predicated region
    $region10: #{simple_cnn_forward.1} parent=1 // pred_check
      _
    $region11: #{simple_cnn_forward.1} parent=1 // pred_check_branch
      %25 = sbr.rel (0) target = $region13
    $region12: #{simple_cnn_forward.1} parent=1 // pred_region
      _
    $region13: #{simple_cnn_forward.1} parent=1 // pred_fallthru
      _
    // Predicated region
    $region14: #{simple_cnn_forward.1} parent=1 // pred_check
      _
    $region15: #{simple_cnn_forward.1} parent=1 // pred_check_branch
      %27 = sbr.rel (0) target = $region17
    $region16: #{simple_cnn_forward.1} parent=1 // pred_region
      _
    $region17: #{simple_cnn_forward.1} parent=1 // pred_fallthru
      _
    // Predicated region
    $region18: #{simple_cnn_forward.1} parent=1 // pred_check
      _
    $region19: #{simple_cnn_forward.1} parent=1 // pred_check_branch
      %29 = sbr.rel (0) target = $region21
    $region20: #{simple_cnn_forward.1} parent=1 // pred_region
      _
    $region21: #{simple_cnn_forward.1} parent=1 // pred_fallthru
      _
    // Predicated region
    $region22: #{simple_cnn_forward.1} parent=1 // pred_check
      _
    $region23: #{simple_cnn_forward.1} parent=1 // pred_check_branch
      %31 = sbr.rel (0) target = $region25
    $region24: #{simple_cnn_forward.1} parent=1 // pred_region
      _
    $region25: #{simple_cnn_forward.1} parent=1 // pred_fallthru
      _
    // Predicated region
    $region26: #{simple_cnn_forward.1} parent=1 // pred_check
      _
    $region27: #{simple_cnn_forward.1} parent=1 // pred_check_branch
      %33 = sbr.rel (0) target = $region29
    $region28: #{simple_cnn_forward.1} parent=1 // pred_region
      _
    $region29: #{simple_cnn_forward.1} parent=1 // pred_fallthru
      _
    // Predicated region
    $region30: #{simple_cnn_forward.1} parent=1 // pred_check
      _
    $region31: #{simple_cnn_forward.1} parent=1 // pred_check_branch
      %35 = sbr.rel (0) target = $region33
    $region32: #{simple_cnn_forward.1} parent=1 // pred_region
      _
    $region33: #{simple_cnn_forward.1} parent=1 // pred_fallthru
      _
    // Predicated region
    $region34: #{simple_cnn_forward.1} parent=1 // pred_check
      _
    $region35: #{simple_cnn_forward.1} parent=1 // pred_check_branch
      %37 = sbr.rel (0) target = $region37
    $region36: #{simple_cnn_forward.1} parent=1 // pred_region
      _
    $region37: #{simple_cnn_forward.1} parent=1 // pred_fallthru
      _
    // Predicated region
    $region38: #{simple_cnn_forward.1} parent=1 // pred_check
      _
    $region39: #{simple_cnn_forward.1} parent=1 // pred_check_branch
      %39 = sbr.rel (0) target = $region41
    $region40: #{simple_cnn_forward.1} parent=1 // pred_region
      _
    $region41: #{simple_cnn_forward.1} parent=1 // pred_fallthru
      _
    // Predicated region
    $region42: #{simple_cnn_forward.1} parent=1 // pred_check
      _
    $region43: #{simple_cnn_forward.1} parent=1 // pred_check_branch
      %41 = sbr.rel (0) target = $region45
    $region44: #{simple_cnn_forward.1} parent=1 // pred_region
      _
    $region45: #{simple_cnn_forward.1} parent=1 // pred_fallthru
      _
    // Predicated region
    $region46: #{simple_cnn_forward.1} parent=1 // pred_check
      _
    $region47: #{simple_cnn_forward.1} parent=1 // pred_check_branch
      %43 = sbr.rel (0) target = $region49
    $region48: #{simple_cnn_forward.1} parent=1 // pred_region
      _
    $region49: #{simple_cnn_forward.1} parent=1 // pred_fallthru
      _
    // Predicated region
    $region50: #{simple_cnn_forward.1} parent=1 // pred_check
      _
    $region51: #{simple_cnn_forward.1} parent=1 // pred_check_branch
      %45 = sbr.rel (0) target = $region53
    $region52: #{simple_cnn_forward.1} parent=1 // pred_region
      _
    $region53: #{simple_cnn_forward.1} parent=1 // pred_fallthru
      _
    // Predicated region
    $region54: #{simple_cnn_forward.1} parent=1 // pred_check
      _
    $region55: #{simple_cnn_forward.1} parent=1 // pred_check_branch
      %47 = sbr.rel (0) target = $region57
    $region56: #{simple_cnn_forward.1} parent=1 // pred_region
      _
    $region57: #{simple_cnn_forward.1} parent=1 // pred_fallthru
      _
    %v49 = vld [vmem:[%s1] sm:$0xf]
    %v50 = vld [vmem:[%s1 + $0x4] sm:$0xf]
    %v51 = vld [vmem:[%s0] sm:$0xff]
    %v52 = vld [vmem:[%s0 + $0x8] sm:$0xff]
    %v53 = vld [vmem:[%s0 + $0x10] sm:$0xff]
    %v54 = vld [vmem:[%s0 + $0x18] sm:$0xff]
    %v55 = vld [vmem:[%s0 + $0x20] sm:$0xff]
    %v56 = vld [vmem:[%s0 + $0x28] sm:$0xff]
    %v57 = vld [vmem:[%s0 + $0x30] sm:$0xff]
    %v58 = vld [vmem:[%s0 + $0x38] sm:$0xff]
    %v59 = vld [vmem:[%s0 + $0x40] sm:$0xff]
    %v60 = vld [vmem:[%s0 + $0x48] sm:$0xff]
    %v61 = vld [vmem:[%s0 + $0x50] sm:$0xff]
    %v62 = vld [vmem:[%s0 + $0x58] sm:$0xff]
    %v63 = vld [vmem:[%s0 + $0x60] sm:$0xff]
    %v64 = vld [vmem:[%s0 + $0x68] sm:$0xff]
    %v65 = vld [vmem:[%s0 + $0x70] sm:$0xff]
    %v66 = vld [vmem:[%s0 + $0x78] sm:$0xff]
    %v67 = vld [vmem:[%s0 + $0x80] sm:$0xff]
    %v68 = vld [vmem:[%s0 + $0x88] sm:$0xff]
    %v69 = vld [vmem:[%s0 + $0x90] sm:$0xff]
    %v70 = vld [vmem:[%s0 + $0x98] sm:$0xff]
    %v71 = vld [vmem:[%s0 + $0xa0] sm:$0xff]
    %v72 = vld [vmem:[%s0 + $0xa8] sm:$0xff]
    %v73 = vld [vmem:[%s0 + $0xb0] sm:$0xff]
    %v74 = vld [vmem:[%s0 + $0xb8] sm:$0xff]
    %v75 = vld [vmem:[%s0 + $0xc0] sm:$0xff]
    %v76 = vld [vmem:[%s0 + $0xc8] sm:$0xff]
    %v77 = vld [vmem:[%s0 + $0xd0] sm:$0xff]
    %v78 = vld [vmem:[%s0 + $0xd8] sm:$0x11]
    %v79 = vld [vmem:[%s0 + $0xe0] sm:$0x11]
    %v80 = vld [vmem:[%s0 + $0xe8] sm:$0x11]
    %v81 = vld [vmem:[%s0 + $0xf0] sm:$0x11]
    %v82 = vld [vmem:[%s0 + $0xf8] sm:$0x11]
    %v83 = vld [vmem:[%s0 + $0x100] sm:$0x11]
    %v84 = vld [vmem:[%s0 + $0x108] sm:$0x11]
    %v85 = vld [vmem:[%s0 + $0x110] sm:$0x11]
    %v86 = vld [vmem:[%s0 + $0x118] sm:$0x11]
    %v87 = vld [vmem:[%s2] sm:$0xff]
    %v88 = vld [vmem:[%s2 + $0x8] sm:$0xff]
    %90 = vset.pattern.permute.xlu0 0
    %91 = vperm.xlu0 %90, %v87
    %v92 = vpop.permute.xlu0 %91
    %95 = vset.pattern.permute.xlu0 0
    %96 = vperm.xlu0 %95, %v88
    %v97 = vpop.permute.xlu0 %96
    %v101 = vunpack.c.l.b16 %v49
    %v102 = vunpack.c.l.b16 %v50
    %v103 = vpack.c.b16 %v102, %v101
    %v140 = vunpack.c.l.b16 %v51
    %v141 = vunpack.c.h.b16 %v51
    %v142 = vunpack.c.l.b16 %v52
    %v143 = vunpack.c.h.b16 %v52
    %v144 = vunpack.c.l.b16 %v53
    %v145 = vunpack.c.h.b16 %v53
    %v146 = vunpack.c.l.b16 %v54
    %v147 = vunpack.c.h.b16 %v54
    %v148 = vunpack.c.l.b16 %v55
    %v149 = vunpack.c.h.b16 %v55
    %v150 = vunpack.c.l.b16 %v56
    %v151 = vunpack.c.h.b16 %v56
    %v152 = vunpack.c.l.b16 %v57
    %v153 = vunpack.c.h.b16 %v57
    %v154 = vunpack.c.l.b16 %v58
    %v155 = vunpack.c.h.b16 %v58
    %v156 = vunpack.c.l.b16 %v59
    %v157 = vunpack.c.h.b16 %v59
    %v158 = vunpack.c.l.b16 %v60
    %v159 = vunpack.c.h.b16 %v60
    %v160 = vunpack.c.l.b16 %v61
    %v161 = vunpack.c.h.b16 %v61
    %v162 = vunpack.c.l.b16 %v62
    %v163 = vunpack.c.h.b16 %v62
    %v164 = vunpack.c.l.b16 %v63
    %v165 = vunpack.c.h.b16 %v63
    %v166 = vunpack.c.l.b16 %v64
    %v167 = vunpack.c.h.b16 %v64
    %v168 = vunpack.c.l.b16 %v65
    %v169 = vunpack.c.h.b16 %v65
    %v170 = vunpack.c.l.b16 %v66
    %v171 = vunpack.c.h.b16 %v66
    %v172 = vunpack.c.l.b16 %v67
    %v173 = vunpack.c.h.b16 %v67
    %v174 = vunpack.c.l.b16 %v68
    %v175 = vunpack.c.h.b16 %v68
    %v176 = vunpack.c.l.b16 %v69
    %v177 = vunpack.c.h.b16 %v69
    %v178 = vunpack.c.l.b16 %v70
    %v179 = vunpack.c.h.b16 %v70
    %v180 = vunpack.c.l.b16 %v71
    %v181 = vunpack.c.h.b16 %v71
    %v182 = vunpack.c.l.b16 %v72
    %v183 = vunpack.c.h.b16 %v72
    %v184 = vunpack.c.l.b16 %v73
    %v185 = vunpack.c.h.b16 %v73
    %v186 = vunpack.c.l.b16 %v74
    %v187 = vunpack.c.h.b16 %v74
    %v188 = vunpack.c.l.b16 %v75
    %v189 = vunpack.c.h.b16 %v75
    %v190 = vunpack.c.l.b16 %v76
    %v191 = vunpack.c.h.b16 %v76
    %v192 = vunpack.c.l.b16 %v77
    %v193 = vunpack.c.h.b16 %v77
    %v194 = vunpack.c.l.b16 %v78
    %v195 = vunpack.c.h.b16 %v78
    %v196 = vunpack.c.l.b16 %v79
    %v197 = vunpack.c.h.b16 %v79
    %v198 = vunpack.c.l.b16 %v80
    %v199 = vunpack.c.h.b16 %v80
    %v200 = vunpack.c.l.b16 %v81
    %v201 = vunpack.c.h.b16 %v81
    %v202 = vunpack.c.l.b16 %v82
    %v203 = vunpack.c.h.b16 %v82
    %v204 = vunpack.c.l.b16 %v83
    %v205 = vunpack.c.h.b16 %v83
    %v206 = vunpack.c.l.b16 %v84
    %v207 = vunpack.c.h.b16 %v84
    %v208 = vunpack.c.l.b16 %v85
    %v209 = vunpack.c.h.b16 %v85
    %v210 = vunpack.c.l.b16 %v86
    %v211 = vunpack.c.h.b16 %v86
    %v212 = vpack.c.b16 %v158, %v140
    %v213 = vpack.c.b16 %v159, %v141
    %v214 = vpack.c.b16 %v160, %v142
    %v215 = vpack.c.b16 %v161, %v143
    %v216 = vpack.c.b16 %v162, %v144
    %v217 = vpack.c.b16 %v163, %v145
    %v218 = vpack.c.b16 %v164, %v146
    %v219 = vpack.c.b16 %v165, %v147
    %v220 = vpack.c.b16 %v166, %v148
    %v221 = vpack.c.b16 %v167, %v149
    %v222 = vpack.c.b16 %v168, %v150
    %v223 = vpack.c.b16 %v169, %v151
    %v224 = vpack.c.b16 %v170, %v152
    %v225 = vpack.c.b16 %v171, %v153
    %v226 = vpack.c.b16 %v172, %v154
    %v227 = vpack.c.b16 %v173, %v155
    %v228 = vpack.c.b16 %v174, %v156
    %v229 = vpack.c.b16 %v175, %v157
    %v230 = vpack.c.b16 %v194, %v176
    %v231 = vpack.c.b16 %v195, %v177
    %v232 = vpack.c.b16 %v196, %v178
    %v233 = vpack.c.b16 %v197, %v179
    %v234 = vpack.c.b16 %v198, %v180
    %v235 = vpack.c.b16 %v199, %v181
    %v236 = vpack.c.b16 %v200, %v182
    %v237 = vpack.c.b16 %v201, %v183
    %v238 = vpack.c.b16 %v202, %v184
    %v239 = vpack.c.b16 %v203, %v185
    %v240 = vpack.c.b16 %v204, %v186
    %v241 = vpack.c.b16 %v205, %v187
    %v242 = vpack.c.b16 %v206, %v188
    %v243 = vpack.c.b16 %v207, %v189
    %v244 = vpack.c.b16 %v208, %v190
    %v245 = vpack.c.b16 %v209, %v191
    %v246 = vpack.c.b16 %v210, %v192
    %v247 = vpack.c.b16 %v211, %v193
    %vm266 = vcmask 203776
    %v268 = vsel %vm266, %v103, 0
    %vm270 = vcmask 1043456
    %vm271 = vcmask 1044480
    %v272 = vsel %vm270, 4294967295, 65535
    %v273 = vsel %vm271, %v272, 0
    %v275 = vand.u32 %v230, %v273
    %v278 = vand.u32 %v231, %v273
    %v281 = vand.u32 %v232, %v273
    %v284 = vand.u32 %v233, %v273
    %v287 = vand.u32 %v234, %v273
    %v290 = vand.u32 %v235, %v273
    %v293 = vand.u32 %v236, %v273
    %v296 = vand.u32 %v237, %v273
    %v299 = vand.u32 %v238, %v273
    %v302 = vand.u32 %v239, %v273
    %v305 = vand.u32 %v240, %v273
    %v308 = vand.u32 %v241, %v273
    %v311 = vand.u32 %v242, %v273
    %v314 = vand.u32 %v243, %v273
    %v317 = vand.u32 %v244, %v273
    %v320 = vand.u32 %v245, %v273
    %v323 = vand.u32 %v246, %v273
    %v326 = vand.u32 %v247, %v273
    %328 = vmatprep.subr.bf16.mxu0 %v213
    %329 = vmatpush1.bf16.msra.mxu0 %v212
    %330 = vmatprep.subr.bf16.mxu0 %v278
    %331 = vmatpush1.bf16.msra.mxu0 %v275
    %332 = vmatprep.subr.bf16.mxu0 0
    %333 = vmatpush1.bf16.msra.mxu0 0
    %334 = vmatprep.subr.bf16.mxu0 0
    %335 = vmatpush1.bf16.msra.mxu0 0
    %336 = vmatprep.subr.bf16.mxu0 0
    %337 = vmatpush1.bf16.msra.mxu0 0
    %338 = vmatprep.subr.bf16.mxu0 0
    %339 = vmatpush1.bf16.msra.mxu0 0
    %340 = vmatprep.subr.bf16.mxu0 0
    %341 = vmatpush1.bf16.msra.mxu0 0
    %342 = vmatprep.subr.bf16.mxu0 0
    %343 = vmatpush1.bf16.msra.mxu0 0
    %344 = vmatprep.subr.bf16.mxu0 0
    %345 = vmatpush1.bf16.msra.mxu0 0
    %346 = vmatprep.subr.bf16.mxu0 0
    %347 = vmatpush1.bf16.msra.mxu0 0
    %348 = vmatprep.subr.bf16.mxu0 0
    %349 = vmatpush1.bf16.msra.mxu0 0
    %350 = vmatprep.subr.bf16.mxu0 0
    %351 = vmatpush1.bf16.msra.mxu0 0
    %352 = vmatprep.subr.bf16.mxu0 0
    %353 = vmatpush1.bf16.msra.mxu0 0
    %354 = vmatprep.subr.bf16.mxu0 0
    %355 = vmatpush1.bf16.msra.mxu0 0
    %356 = vmatprep.subr.bf16.mxu0 0
    %357 = vmatpush1.bf16.msra.mxu0 0
    %358 = vmatprep.subr.bf16.mxu0 0
    %359 = vmatpush1.bf16.msra.mxu0 0
    %360 = vmatprep.mubr.bf16.mxu0 0
    %361 = vmatmul.mubr.bf16.gmra.mrb[0].mxu0 %v268
    %v362 = vpop.f32.mrb[0].mxu0
    %v363 = vadd.f32 %v92, %v362
    %v364 = vpop.f32.mrb[0].mxu0
    %v365 = vadd.f32 %v92, %v364
    %v366 = vpop.f32.mrb[0].mxu0
    %v367 = vadd.f32 %v97, %v366
    %v368 = vpop.f32.mrb[0].mxu0
    %v369 = vadd.f32 %v97, %v368
    %370 = vdwg.mxu0
    %371 = vmatprep.subr.bf16.mxu0 %v215
    %372 = vmatpush1.bf16.msra.mxu0 %v214
    %373 = vmatprep.subr.bf16.mxu0 %v284
    %374 = vmatpush1.bf16.msra.mxu0 %v281
    %375 = vmatprep.subr.bf16.mxu0 0
    %376 = vmatpush1.bf16.msra.mxu0 0
    %377 = vmatprep.subr.bf16.mxu0 0
    %378 = vmatpush1.bf16.msra.mxu0 0
    %379 = vmatprep.subr.bf16.mxu0 0
    %380 = vmatpush1.bf16.msra.mxu0 0
    %381 = vmatprep.subr.bf16.mxu0 0
    %382 = vmatpush1.bf16.msra.mxu0 0
    %383 = vmatprep.subr.bf16.mxu0 0
    %384 = vmatpush1.bf16.msra.mxu0 0
    %385 = vmatprep.subr.bf16.mxu0 0
    %386 = vmatpush1.bf16.msra.mxu0 0
    %387 = vmatprep.subr.bf16.mxu0 0
    %388 = vmatpush1.bf16.msra.mxu0 0
    %389 = vmatprep.subr.bf16.mxu0 0
    %390 = vmatpush1.bf16.msra.mxu0 0
    %391 = vmatprep.subr.bf16.mxu0 0
    %392 = vmatpush1.bf16.msra.mxu0 0
    %393 = vmatprep.subr.bf16.mxu0 0
    %394 = vmatpush1.bf16.msra.mxu0 0
    %395 = vmatprep.subr.bf16.mxu0 0
    %396 = vmatpush1.bf16.msra.mxu0 0
    %397 = vmatprep.subr.bf16.mxu0 0
    %398 = vmatpush1.bf16.msra.mxu0 0
    %399 = vmatprep.subr.bf16.mxu0 0
    %400 = vmatpush1.bf16.msra.mxu0 0
    %401 = vmatprep.subr.bf16.mxu0 0
    %402 = vmatpush1.bf16.msra.mxu0 0
    %403 = vmatprep.mubr.bf16.mxu0 0
    %404 = vmatmul.mubr.bf16.gmra.mrb[0].mxu0 %v268
    %v405 = vpop.f32.mrb[0].mxu0
    %v406 = vadd.f32 %v92, %v405
    %v407 = vpop.f32.mrb[0].mxu0
    %v408 = vadd.f32 %v92, %v407
    %v409 = vpop.f32.mrb[0].mxu0
    %v410 = vadd.f32 %v97, %v409
    %v411 = vpop.f32.mrb[0].mxu0
    %v412 = vadd.f32 %v97, %v411
    %413 = vdwg.mxu0
    %414 = vmatprep.subr.bf16.mxu0 %v217
    %415 = vmatpush1.bf16.msra.mxu0 %v216
    %416 = vmatprep.subr.bf16.mxu0 %v290
    %417 = vmatpush1.bf16.msra.mxu0 %v287
    %418 = vmatprep.subr.bf16.mxu0 0
    %419 = vmatpush1.bf16.msra.mxu0 0
    %420 = vmatprep.subr.bf16.mxu0 0
    %421 = vmatpush1.bf16.msra.mxu0 0
    %422 = vmatprep.subr.bf16.mxu0 0
    %423 = vmatpush1.bf16.msra.mxu0 0
    %424 = vmatprep.subr.bf16.mxu0 0
    %425 = vmatpush1.bf16.msra.mxu0 0
    %426 = vmatprep.subr.bf16.mxu0 0
    %427 = vmatpush1.bf16.msra.mxu0 0
    %428 = vmatprep.subr.bf16.mxu0 0
    %429 = vmatpush1.bf16.msra.mxu0 0
    %430 = vmatprep.subr.bf16.mxu0 0
    %431 = vmatpush1.bf16.msra.mxu0 0
    %432 = vmatprep.subr.bf16.mxu0 0
    %433 = vmatpush1.bf16.msra.mxu0 0
    %434 = vmatprep.subr.bf16.mxu0 0
    %435 = vmatpush1.bf16.msra.mxu0 0
    %436 = vmatprep.subr.bf16.mxu0 0
    %437 = vmatpush1.bf16.msra.mxu0 0
    %438 = vmatprep.subr.bf16.mxu0 0
    %439 = vmatpush1.bf16.msra.mxu0 0
    %440 = vmatprep.subr.bf16.mxu0 0
    %441 = vmatpush1.bf16.msra.mxu0 0
    %442 = vmatprep.subr.bf16.mxu0 0
    %443 = vmatpush1.bf16.msra.mxu0 0
    %444 = vmatprep.subr.bf16.mxu0 0
    %445 = vmatpush1.bf16.msra.mxu0 0
    %446 = vmatprep.mubr.bf16.mxu0 0
    %447 = vmatmul.mubr.bf16.gmra.mrb[0].mxu0 %v268
    %v448 = vpop.f32.mrb[0].mxu0
    %v449 = vadd.f32 %v92, %v448
    %v450 = vpop.f32.mrb[0].mxu0
    %v451 = vadd.f32 %v92, %v450
    %v452 = vpop.f32.mrb[0].mxu0
    %v453 = vadd.f32 %v97, %v452
    %v454 = vpop.f32.mrb[0].mxu0
    %v455 = vadd.f32 %v97, %v454
    %456 = vdwg.mxu0
    %457 = vmatprep.subr.bf16.mxu0 %v219
    %458 = vmatpush1.bf16.msra.mxu0 %v218
    %459 = vmatprep.subr.bf16.mxu0 %v296
    %460 = vmatpush1.bf16.msra.mxu0 %v293
    %461 = vmatprep.subr.bf16.mxu0 0
    %462 = vmatpush1.bf16.msra.mxu0 0
    %463 = vmatprep.subr.bf16.mxu0 0
    %464 = vmatpush1.bf16.msra.mxu0 0
    %465 = vmatprep.subr.bf16.mxu0 0
    %466 = vmatpush1.bf16.msra.mxu0 0
    %467 = vmatprep.subr.bf16.mxu0 0
    %468 = vmatpush1.bf16.msra.mxu0 0
    %469 = vmatprep.subr.bf16.mxu0 0
    %470 = vmatpush1.bf16.msra.mxu0 0
    %471 = vmatprep.subr.bf16.mxu0 0
    %472 = vmatpush1.bf16.msra.mxu0 0
    %473 = vmatprep.subr.bf16.mxu0 0
    %474 = vmatpush1.bf16.msra.mxu0 0
    %475 = vmatprep.subr.bf16.mxu0 0
    %476 = vmatpush1.bf16.msra.mxu0 0
    %477 = vmatprep.subr.bf16.mxu0 0
    %478 = vmatpush1.bf16.msra.mxu0 0
    %479 = vmatprep.subr.bf16.mxu0 0
    %480 = vmatpush1.bf16.msra.mxu0 0
    %481 = vmatprep.subr.bf16.mxu0 0
    %482 = vmatpush1.bf16.msra.mxu0 0
    %483 = vmatprep.subr.bf16.mxu0 0
    %484 = vmatpush1.bf16.msra.mxu0 0
    %485 = vmatprep.subr.bf16.mxu0 0
    %486 = vmatpush1.bf16.msra.mxu0 0
    %487 = vmatprep.subr.bf16.mxu0 0
    %488 = vmatpush1.bf16.msra.mxu0 0
    %489 = vmatprep.mubr.bf16.mxu0 0
    %490 = vmatmul.mubr.bf16.gmra.mrb[0].mxu0 %v268
    %v491 = vpop.f32.mrb[0].mxu0
    %v492 = vadd.f32 %v92, %v491
    %v493 = vpop.f32.mrb[0].mxu0
    %v494 = vadd.f32 %v92, %v493
    %v495 = vpop.f32.mrb[0].mxu0
    %v496 = vadd.f32 %v97, %v495
    %v497 = vpop.f32.mrb[0].mxu0
    %v498 = vadd.f32 %v97, %v497
    %499 = vdwg.mxu0
    %500 = vmatprep.subr.bf16.mxu0 %v221
    %501 = vmatpush1.bf16.msra.mxu0 %v220
    %502 = vmatprep.subr.bf16.mxu0 %v302
    %503 = vmatpush1.bf16.msra.mxu0 %v299
    %504 = vmatprep.subr.bf16.mxu0 0
    %505 = vmatpush1.bf16.msra.mxu0 0
    %506 = vmatprep.subr.bf16.mxu0 0
    %507 = vmatpush1.bf16.msra.mxu0 0
    %508 = vmatprep.subr.bf16.mxu0 0
    %509 = vmatpush1.bf16.msra.mxu0 0
    %510 = vmatprep.subr.bf16.mxu0 0
    %511 = vmatpush1.bf16.msra.mxu0 0
    %512 = vmatprep.subr.bf16.mxu0 0
    %513 = vmatpush1.bf16.msra.mxu0 0
    %514 = vmatprep.subr.bf16.mxu0 0
    %515 = vmatpush1.bf16.msra.mxu0 0
    %516 = vmatprep.subr.bf16.mxu0 0
    %517 = vmatpush1.bf16.msra.mxu0 0
    %518 = vmatprep.subr.bf16.mxu0 0
    %519 = vmatpush1.bf16.msra.mxu0 0
    %520 = vmatprep.subr.bf16.mxu0 0
    %521 = vmatpush1.bf16.msra.mxu0 0
    %522 = vmatprep.subr.bf16.mxu0 0
    %523 = vmatpush1.bf16.msra.mxu0 0
    %524 = vmatprep.subr.bf16.mxu0 0
    %525 = vmatpush1.bf16.msra.mxu0 0
    %526 = vmatprep.subr.bf16.mxu0 0
    %527 = vmatpush1.bf16.msra.mxu0 0
    %528 = vmatprep.subr.bf16.mxu0 0
    %529 = vmatpush1.bf16.msra.mxu0 0
    %530 = vmatprep.subr.bf16.mxu0 0
    %531 = vmatpush1.bf16.msra.mxu0 0
    %532 = vmatprep.mubr.bf16.mxu0 0
    %533 = vmatmul.mubr.bf16.gmra.mrb[0].mxu0 %v268
    %v534 = vpop.f32.mrb[0].mxu0
    %v535 = vadd.f32 %v92, %v534
    %v536 = vpop.f32.mrb[0].mxu0
    %v537 = vadd.f32 %v92, %v536
    %v538 = vpop.f32.mrb[0].mxu0
    %v539 = vadd.f32 %v97, %v538
    %v540 = vpop.f32.mrb[0].mxu0
    %v541 = vadd.f32 %v97, %v540
    %542 = vdwg.mxu0
    %543 = vmatprep.subr.bf16.mxu0 %v223
    %544 = vmatpush1.bf16.msra.mxu0 %v222
    %545 = vmatprep.subr.bf16.mxu0 %v308
    %546 = vmatpush1.bf16.msra.mxu0 %v305
    %547 = vmatprep.subr.bf16.mxu0 0
    %548 = vmatpush1.bf16.msra.mxu0 0
    %549 = vmatprep.subr.bf16.mxu0 0
    %550 = vmatpush1.bf16.msra.mxu0 0
    %551 = vmatprep.subr.bf16.mxu0 0
    %552 = vmatpush1.bf16.msra.mxu0 0
    %553 = vmatprep.subr.bf16.mxu0 0
    %554 = vmatpush1.bf16.msra.mxu0 0
    %555 = vmatprep.subr.bf16.mxu0 0
    %556 = vmatpush1.bf16.msra.mxu0 0
    %557 = vmatprep.subr.bf16.mxu0 0
    %558 = vmatpush1.bf16.msra.mxu0 0
    %559 = vmatprep.subr.bf16.mxu0 0
    %560 = vmatpush1.bf16.msra.mxu0 0
    %561 = vmatprep.subr.bf16.mxu0 0
    %562 = vmatpush1.bf16.msra.mxu0 0
    %563 = vmatprep.subr.bf16.mxu0 0
    %564 = vmatpush1.bf16.msra.mxu0 0
    %565 = vmatprep.subr.bf16.mxu0 0
    %566 = vmatpush1.bf16.msra.mxu0 0
    %567 = vmatprep.subr.bf16.mxu0 0
    %568 = vmatpush1.bf16.msra.mxu0 0
    %569 = vmatprep.subr.bf16.mxu0 0
    %570 = vmatpush1.bf16.msra.mxu0 0
    %571 = vmatprep.subr.bf16.mxu0 0
    %572 = vmatpush1.bf16.msra.mxu0 0
    %573 = vmatprep.subr.bf16.mxu0 0
    %574 = vmatpush1.bf16.msra.mxu0 0
    %575 = vmatprep.mubr.bf16.mxu0 0
    %576 = vmatmul.mubr.bf16.gmra.mrb[0].mxu0 %v268
    %v577 = vpop.f32.mrb[0].mxu0
    %v578 = vadd.f32 %v92, %v577
    %v579 = vpop.f32.mrb[0].mxu0
    %v580 = vadd.f32 %v92, %v579
    %v581 = vpop.f32.mrb[0].mxu0
    %v582 = vadd.f32 %v97, %v581
    %v583 = vpop.f32.mrb[0].mxu0
    %v584 = vadd.f32 %v97, %v583
    %585 = vdwg.mxu0
    %586 = vmatprep.subr.bf16.mxu0 %v225
    %587 = vmatpush1.bf16.msra.mxu0 %v224
    %588 = vmatprep.subr.bf16.mxu0 %v314
    %589 = vmatpush1.bf16.msra.mxu0 %v311
    %590 = vmatprep.subr.bf16.mxu0 0
    %591 = vmatpush1.bf16.msra.mxu0 0
    %592 = vmatprep.subr.bf16.mxu0 0
    %593 = vmatpush1.bf16.msra.mxu0 0
    %594 = vmatprep.subr.bf16.mxu0 0
    %595 = vmatpush1.bf16.msra.mxu0 0
    %596 = vmatprep.subr.bf16.mxu0 0
    %597 = vmatpush1.bf16.msra.mxu0 0
    %598 = vmatprep.subr.bf16.mxu0 0
    %599 = vmatpush1.bf16.msra.mxu0 0
    %600 = vmatprep.subr.bf16.mxu0 0
    %601 = vmatpush1.bf16.msra.mxu0 0
    %602 = vmatprep.subr.bf16.mxu0 0
    %603 = vmatpush1.bf16.msra.mxu0 0
    %604 = vmatprep.subr.bf16.mxu0 0
    %605 = vmatpush1.bf16.msra.mxu0 0
    %606 = vmatprep.subr.bf16.mxu0 0
    %607 = vmatpush1.bf16.msra.mxu0 0
    %608 = vmatprep.subr.bf16.mxu0 0
    %609 = vmatpush1.bf16.msra.mxu0 0
    %610 = vmatprep.subr.bf16.mxu0 0
    %611 = vmatpush1.bf16.msra.mxu0 0
    %612 = vmatprep.subr.bf16.mxu0 0
    %613 = vmatpush1.bf16.msra.mxu0 0
    %614 = vmatprep.subr.bf16.mxu0 0
    %615 = vmatpush1.bf16.msra.mxu0 0
    %616 = vmatprep.subr.bf16.mxu0 0
    %617 = vmatpush1.bf16.msra.mxu0 0
    %618 = vmatprep.mubr.bf16.mxu0 0
    %619 = vmatmul.mubr.bf16.gmra.mrb[0].mxu0 %v268
    %v620 = vpop.f32.mrb[0].mxu0
    %v621 = vadd.f32 %v92, %v620
    %v622 = vpop.f32.mrb[0].mxu0
    %v623 = vadd.f32 %v92, %v622
    %v624 = vpop.f32.mrb[0].mxu0
    %v625 = vadd.f32 %v97, %v624
    %v626 = vpop.f32.mrb[0].mxu0
    %v627 = vadd.f32 %v97, %v626
    %628 = vdwg.mxu0
    %629 = vmatprep.subr.bf16.mxu0 %v227
    %630 = vmatpush1.bf16.msra.mxu0 %v226
    %631 = vmatprep.subr.bf16.mxu0 %v320
    %632 = vmatpush1.bf16.msra.mxu0 %v317
    %633 = vmatprep.subr.bf16.mxu0 0
    %634 = vmatpush1.bf16.msra.mxu0 0
    %635 = vmatprep.subr.bf16.mxu0 0
    %636 = vmatpush1.bf16.msra.mxu0 0
    %637 = vmatprep.subr.bf16.mxu0 0
    %638 = vmatpush1.bf16.msra.mxu0 0
    %639 = vmatprep.subr.bf16.mxu0 0
    %640 = vmatpush1.bf16.msra.mxu0 0
    %641 = vmatprep.subr.bf16.mxu0 0
    %642 = vmatpush1.bf16.msra.mxu0 0
    %643 = vmatprep.subr.bf16.mxu0 0
    %644 = vmatpush1.bf16.msra.mxu0 0
    %645 = vmatprep.subr.bf16.mxu0 0
    %646 = vmatpush1.bf16.msra.mxu0 0
    %647 = vmatprep.subr.bf16.mxu0 0
    %648 = vmatpush1.bf16.msra.mxu0 0
    %649 = vmatprep.subr.bf16.mxu0 0
    %650 = vmatpush1.bf16.msra.mxu0 0
    %651 = vmatprep.subr.bf16.mxu0 0
    %652 = vmatpush1.bf16.msra.mxu0 0
    %653 = vmatprep.subr.bf16.mxu0 0
    %654 = vmatpush1.bf16.msra.mxu0 0
    %655 = vmatprep.subr.bf16.mxu0 0
    %656 = vmatpush1.bf16.msra.mxu0 0
    %657 = vmatprep.subr.bf16.mxu0 0
    %658 = vmatpush1.bf16.msra.mxu0 0
    %659 = vmatprep.subr.bf16.mxu0 0
    %660 = vmatpush1.bf16.msra.mxu0 0
    %661 = vmatprep.mubr.bf16.mxu0 0
    %662 = vmatmul.mubr.bf16.gmra.mrb[0].mxu0 %v268
    %v663 = vpop.f32.mrb[0].mxu0
    %v664 = vadd.f32 %v92, %v663
    %v665 = vpop.f32.mrb[0].mxu0
    %v666 = vadd.f32 %v92, %v665
    %v667 = vpop.f32.mrb[0].mxu0
    %v668 = vadd.f32 %v97, %v667
    %v669 = vpop.f32.mrb[0].mxu0
    %v670 = vadd.f32 %v97, %v669
    %671 = vdwg.mxu0
    %672 = vmatprep.subr.bf16.mxu0 %v229
    %673 = vmatpush1.bf16.msra.mxu0 %v228
    %674 = vmatprep.subr.bf16.mxu0 %v326
    %675 = vmatpush1.bf16.msra.mxu0 %v323
    %676 = vmatprep.subr.bf16.mxu0 0
    %677 = vmatpush1.bf16.msra.mxu0 0
    %678 = vmatprep.subr.bf16.mxu0 0
    %679 = vmatpush1.bf16.msra.mxu0 0
    %680 = vmatprep.subr.bf16.mxu0 0
    %681 = vmatpush1.bf16.msra.mxu0 0
    %682 = vmatprep.subr.bf16.mxu0 0
    %683 = vmatpush1.bf16.msra.mxu0 0
    %684 = vmatprep.subr.bf16.mxu0 0
    %685 = vmatpush1.bf16.msra.mxu0 0
    %686 = vmatprep.subr.bf16.mxu0 0
    %687 = vmatpush1.bf16.msra.mxu0 0
    %688 = vmatprep.subr.bf16.mxu0 0
    %689 = vmatpush1.bf16.msra.mxu0 0
    %690 = vmatprep.subr.bf16.mxu0 0
    %691 = vmatpush1.bf16.msra.mxu0 0
    %692 = vmatprep.subr.bf16.mxu0 0
    %693 = vmatpush1.bf16.msra.mxu0 0
    %694 = vmatprep.subr.bf16.mxu0 0
    %695 = vmatpush1.bf16.msra.mxu0 0
    %696 = vmatprep.subr.bf16.mxu0 0
    %697 = vmatpush1.bf16.msra.mxu0 0
    %698 = vmatprep.subr.bf16.mxu0 0
    %699 = vmatpush1.bf16.msra.mxu0 0
    %700 = vmatprep.subr.bf16.mxu0 0
    %701 = vmatpush1.bf16.msra.mxu0 0
    %702 = vmatprep.subr.bf16.mxu0 0
    %703 = vmatpush1.bf16.msra.mxu0 0
    %704 = vmatprep.mubr.bf16.mxu0 0
    %705 = vmatmul.mubr.bf16.gmra.mrb[0].mxu0 %v268
    %v706 = vpop.f32.mrb[0].mxu0
    %v707 = vadd.f32 %v92, %v706
    %v708 = vpop.f32.mrb[0].mxu0
    %v709 = vadd.f32 %v92, %v708
    %v710 = vpop.f32.mrb[0].mxu0
    %v711 = vadd.f32 %v97, %v710
    %v712 = vpop.f32.mrb[0].mxu0
    %v713 = vadd.f32 %v97, %v712
    %714 = vdwg.mxu0
    %v715 = vmul.f32 %v363, 0.5
    %v716 = vmul.f32 %v365, 0.5
    %v717 = vmul.f32 %v406, 0.5
    %v718 = vmul.f32 %v408, 0.5
    %v719 = vmul.f32 %v449, 0.5
    %v720 = vmul.f32 %v451, 0.5
    %v721 = vmul.f32 %v492, 0.5
    %v722 = vmul.f32 %v494, 0.5
    %v723 = vmul.f32 %v535, 0.5
    %v724 = vmul.f32 %v537, 0.5
    %v725 = vmul.f32 %v578, 0.5
    %v726 = vmul.f32 %v580, 0.5
    %v727 = vmul.f32 %v621, 0.5
    %v728 = vmul.f32 %v623, 0.5
    %v729 = vmul.f32 %v664, 0.5
    %v730 = vmul.f32 %v666, 0.5
    %v731 = vmul.f32 %v707, 0.5
    %v732 = vmul.f32 %v709, 0.5
    %v733 = vmul.f32 %v367, 0.5
    %v734 = vmul.f32 %v369, 0.5
    %v735 = vmul.f32 %v410, 0.5
    %v736 = vmul.f32 %v412, 0.5
    %v737 = vmul.f32 %v453, 0.5
    %v738 = vmul.f32 %v455, 0.5
    %v739 = vmul.f32 %v496, 0.5
    %v740 = vmul.f32 %v498, 0.5
    %v741 = vmul.f32 %v539, 0.5
    %v742 = vmul.f32 %v541, 0.5
    %v743 = vmul.f32 %v582, 0.5
    %v744 = vmul.f32 %v584, 0.5
    %v745 = vmul.f32 %v625, 0.5
    %v746 = vmul.f32 %v627, 0.5
    %v747 = vmul.f32 %v668, 0.5
    %v748 = vmul.f32 %v670, 0.5
    %v749 = vmul.f32 %v711, 0.5
    %v750 = vmul.f32 %v713, 0.5
    %v751 = vtanh.pop %v715
    %v752 = vtanh.pop %v716
    %v753 = vtanh.pop %v717
    %v754 = vtanh.pop %v718
    %v755 = vtanh.pop %v719
    %v756 = vtanh.pop %v720
    %v757 = vtanh.pop %v721
    %v758 = vtanh.pop %v722
    %v759 = vtanh.pop %v723
    %v760 = vtanh.pop %v724
    %v761 = vtanh.pop %v725
    %v762 = vtanh.pop %v726
    %v763 = vtanh.pop %v727
    %v764 = vtanh.pop %v728
    %v765 = vtanh.pop %v729
    %v766 = vtanh.pop %v730
    %v767 = vtanh.pop %v731
    %v768 = vtanh.pop %v732
    %v769 = vtanh.pop %v733
    %v770 = vtanh.pop %v734
    %v771 = vtanh.pop %v735
    %v772 = vtanh.pop %v736
    %v773 = vtanh.pop %v737
    %v774 = vtanh.pop %v738
    %v775 = vtanh.pop %v739
    %v776 = vtanh.pop %v740
    %v777 = vtanh.pop %v741
    %v778 = vtanh.pop %v742
    %v779 = vtanh.pop %v743
    %v780 = vtanh.pop %v744
    %v781 = vtanh.pop %v745
    %v782 = vtanh.pop %v746
    %v783 = vtanh.pop %v747
    %v784 = vtanh.pop %v748
    %v785 = vtanh.pop %v749
    %v786 = vtanh.pop %v750
    %v787 = vmul.f32 %v751, 0.5
    %v788 = vmul.f32 %v752, 0.5
    %v789 = vmul.f32 %v753, 0.5
    %v790 = vmul.f32 %v754, 0.5
    %v791 = vmul.f32 %v755, 0.5
    %v792 = vmul.f32 %v756, 0.5
    %v793 = vmul.f32 %v757, 0.5
    %v794 = vmul.f32 %v758, 0.5
    %v795 = vmul.f32 %v759, 0.5
    %v796 = vmul.f32 %v760, 0.5
    %v797 = vmul.f32 %v761, 0.5
    %v798 = vmul.f32 %v762, 0.5
    %v799 = vmul.f32 %v763, 0.5
    %v800 = vmul.f32 %v764, 0.5
    %v801 = vmul.f32 %v765, 0.5
    %v802 = vmul.f32 %v766, 0.5
    %v803 = vmul.f32 %v767, 0.5
    %v804 = vmul.f32 %v768, 0.5
    %v805 = vmul.f32 %v769, 0.5
    %v806 = vmul.f32 %v770, 0.5
    %v807 = vmul.f32 %v771, 0.5
    %v808 = vmul.f32 %v772, 0.5
    %v809 = vmul.f32 %v773, 0.5
    %v810 = vmul.f32 %v774, 0.5
    %v811 = vmul.f32 %v775, 0.5
    %v812 = vmul.f32 %v776, 0.5
    %v813 = vmul.f32 %v777, 0.5
    %v814 = vmul.f32 %v778, 0.5
    %v815 = vmul.f32 %v779, 0.5
    %v816 = vmul.f32 %v780, 0.5
    %v817 = vmul.f32 %v781, 0.5
    %v818 = vmul.f32 %v782, 0.5
    %v819 = vmul.f32 %v783, 0.5
    %v820 = vmul.f32 %v784, 0.5
    %v821 = vmul.f32 %v785, 0.5
    %v822 = vmul.f32 %v786, 0.5
    %v823 = vadd.f32 %v787, 0.5
    %v824 = vadd.f32 %v788, 0.5
    %v825 = vadd.f32 %v789, 0.5
    %v826 = vadd.f32 %v790, 0.5
    %v827 = vadd.f32 %v791, 0.5
    %v828 = vadd.f32 %v792, 0.5
    %v829 = vadd.f32 %v793, 0.5
    %v830 = vadd.f32 %v794, 0.5
    %v831 = vadd.f32 %v795, 0.5
    %v832 = vadd.f32 %v796, 0.5
    %v833 = vadd.f32 %v797, 0.5
    %v834 = vadd.f32 %v798, 0.5
    %v835 = vadd.f32 %v799, 0.5
    %v836 = vadd.f32 %v800, 0.5
    %v837 = vadd.f32 %v801, 0.5
    %v838 = vadd.f32 %v802, 0.5
    %v839 = vadd.f32 %v803, 0.5
    %v840 = vadd.f32 %v804, 0.5
    %v841 = vadd.f32 %v805, 0.5
    %v842 = vadd.f32 %v806, 0.5
    %v843 = vadd.f32 %v807, 0.5
    %v844 = vadd.f32 %v808, 0.5
    %v845 = vadd.f32 %v809, 0.5
    %v846 = vadd.f32 %v810, 0.5
    %v847 = vadd.f32 %v811, 0.5
    %v848 = vadd.f32 %v812, 0.5
    %v849 = vadd.f32 %v813, 0.5
    %v850 = vadd.f32 %v814, 0.5
    %v851 = vadd.f32 %v815, 0.5
    %v852 = vadd.f32 %v816, 0.5
    %v853 = vadd.f32 %v817, 0.5
    %v854 = vadd.f32 %v818, 0.5
    %v855 = vadd.f32 %v819, 0.5
    %v856 = vadd.f32 %v820, 0.5
    %v857 = vadd.f32 %v821, 0.5
    %v858 = vadd.f32 %v822, 0.5
    %v859 = vpack.c.bf16 %v841, %v823
    %v860 = vpack.c.bf16 %v842, %v824
    %v861 = vpack.c.bf16 %v843, %v825
    %v862 = vpack.c.bf16 %v844, %v826
    %v863 = vpack.c.bf16 %v845, %v827
    %v864 = vpack.c.bf16 %v846, %v828
    %v865 = vpack.c.bf16 %v847, %v829
    %v866 = vpack.c.bf16 %v848, %v830
    %v867 = vpack.c.bf16 %v849, %v831
    %v868 = vpack.c.bf16 %v850, %v832
    %v869 = vpack.c.bf16 %v851, %v833
    %v870 = vpack.c.bf16 %v852, %v834
    %v871 = vpack.c.bf16 %v853, %v835
    %v872 = vpack.c.bf16 %v854, %v836
    %v873 = vpack.c.bf16 %v855, %v837
    %v874 = vpack.c.bf16 %v856, %v838
    %v875 = vpack.c.bf16 %v857, %v839
    %v876 = vpack.c.bf16 %v858, %v840
    %878 = vrot.lane.b32.xlu0 %v859, 56
    %v879 = vpop.permute.xlu0 %878
    %881 = vrot.lane.b32.xlu0 %v860, 112
    %v882 = vpop.permute.xlu0 %881
    %883 = vrot.lane.b32.xlu0 %v860, 40
    %v884 = vpop.permute.xlu0 %883
    %886 = vrot.lane.b32.xlu0 %v861, 96
    %v887 = vpop.permute.xlu0 %886
    %889 = vrot.lane.b32.xlu0 %v861, 24
    %v890 = vpop.permute.xlu0 %889
    %891 = vrot.lane.b32.xlu0 %v862, 24
    %v892 = vpop.permute.xlu0 %891
    %vm893 = vcmask 195584
    %v894 = vsel %vm893, %v890, %v892
    %895 = vrot.lane.b32.xlu0 %v862, 80
    %v896 = vpop.permute.xlu0 %895
    %898 = vrot.lane.b32.xlu0 %v862, 8
    %v899 = vpop.permute.xlu0 %898
    %900 = vrot.lane.b32.xlu0 %v863, 8
    %v901 = vpop.permute.xlu0 %900
    %vm902 = vcmask 64512
    %v903 = vsel %vm902, %v899, %v901
    %904 = vrot.lane.b32.xlu0 %v863, 64
    %v905 = vpop.permute.xlu0 %904
    %907 = vrot.lane.b32.xlu0 %v864, 120
    %v908 = vpop.permute.xlu0 %907
    %909 = vrot.lane.b32.xlu0 %v864, 48
    %v910 = vpop.permute.xlu0 %909
    %912 = vrot.lane.b32.xlu0 %v865, 104
    %v913 = vpop.permute.xlu0 %912
    %914 = vrot.lane.b32.xlu0 %v865, 32
    %v915 = vpop.permute.xlu0 %914
    %917 = vrot.lane.b32.xlu0 %v866, 88
    %v918 = vpop.permute.xlu0 %917
    %920 = vrot.lane.b32.xlu0 %v866, 16
    %v921 = vpop.permute.xlu0 %920
    %922 = vrot.lane.b32.xlu0 %v867, 16
    %v923 = vpop.permute.xlu0 %922
    %vm924 = vcmask 130048
    %v925 = vsel %vm924, %v921, %v923
    %926 = vrot.lane.b32.xlu0 %v867, 72
    %v927 = vpop.permute.xlu0 %926
    %929 = vrot.lane.b32.xlu0 %v868, 56
    %v930 = vpop.permute.xlu0 %929
    %932 = vrot.lane.b32.xlu0 %v869, 112
    %v933 = vpop.permute.xlu0 %932
    %934 = vrot.lane.b32.xlu0 %v869, 40
    %v935 = vpop.permute.xlu0 %934
    %937 = vrot.lane.b32.xlu0 %v870, 96
    %v938 = vpop.permute.xlu0 %937
    %940 = vrot.lane.b32.xlu0 %v870, 24
    %v941 = vpop.permute.xlu0 %940
    %942 = vrot.lane.b32.xlu0 %v871, 24
    %v943 = vpop.permute.xlu0 %942
    %v944 = vsel %vm893, %v941, %v943
    %945 = vrot.lane.b32.xlu0 %v871, 80
    %v946 = vpop.permute.xlu0 %945
    %948 = vrot.lane.b32.xlu0 %v871, 8
    %v949 = vpop.permute.xlu0 %948
    %950 = vrot.lane.b32.xlu0 %v872, 8
    %v951 = vpop.permute.xlu0 %950
    %v952 = vsel %vm902, %v949, %v951
    %953 = vrot.lane.b32.xlu0 %v872, 64
    %v954 = vpop.permute.xlu0 %953
    %956 = vrot.lane.b32.xlu0 %v873, 120
    %v957 = vpop.permute.xlu0 %956
    %958 = vrot.lane.b32.xlu0 %v873, 48
    %v959 = vpop.permute.xlu0 %958
    %961 = vrot.lane.b32.xlu0 %v874, 104
    %v962 = vpop.permute.xlu0 %961
    %963 = vrot.lane.b32.xlu0 %v874, 32
    %v964 = vpop.permute.xlu0 %963
    %966 = vrot.lane.b32.xlu0 %v875, 88
    %v967 = vpop.permute.xlu0 %966
    %969 = vrot.lane.b32.xlu0 %v875, 16
    %v970 = vpop.permute.xlu0 %969
    %971 = vrot.lane.b32.xlu0 %v876, 16
    %v972 = vpop.permute.xlu0 %971
    %v973 = vsel %vm924, %v970, %v972
    %974 = vrot.lane.b32.xlu0 %v876, 72
    %v975 = vpop.permute.xlu0 %974
    %v976 = vld [vmem:[%s9] sm:$0xf]
    %v977 = vld [vmem:[%s9 + $0x4] sm:$0xf]
    %v978 = vld [vmem:[%s9 + $0x8] sm:$0xf]
    %v979 = vld [vmem:[%s9 + $0xc] sm:$0xf]
    %v984 = vunpack.c.l.b16 %v976
    %v985 = vunpack.c.l.b16 %v977
    %v986 = vunpack.c.l.b16 %v978
    %v987 = vunpack.c.l.b16 %v979
    %v988 = vpack.c.b16 %v985, %v984
    %v989 = vpack.c.b16 %v987, %v986
    %vm992 = vcmask 261120
    %v994 = vsel %vm992, %v859, 0
    %v997 = vsel %vm992, %v879, 0
    %v1000 = vsel %vm992, %v882, 0
    %v1003 = vsel %vm992, %v884, 0
    %v1006 = vsel %vm992, %v887, 0
    %v1009 = vsel %vm992, %v894, 0
    %v1012 = vsel %vm992, %v896, 0
    %v1015 = vsel %vm992, %v903, 0
    %v1018 = vsel %vm992, %v905, 0
    %v1021 = vsel %vm992, %v908, 0
    %v1024 = vsel %vm992, %v910, 0
    %v1027 = vsel %vm992, %v913, 0
    %v1030 = vsel %vm992, %v915, 0
    %v1033 = vsel %vm992, %v918, 0
    %v1036 = vsel %vm992, %v925, 0
    %v1039 = vsel %vm992, %v927, 0
    %v1042 = vsel %vm992, %v868, 0
    %v1045 = vsel %vm992, %v930, 0
    %v1048 = vsel %vm992, %v933, 0
    %v1051 = vsel %vm992, %v935, 0
    %v1054 = vsel %vm992, %v938, 0
    %v1057 = vsel %vm992, %v944, 0
    %v1060 = vsel %vm992, %v946, 0
    %v1063 = vsel %vm992, %v952, 0
    %v1066 = vsel %vm992, %v954, 0
    %v1069 = vsel %vm992, %v957, 0
    %v1072 = vsel %vm992, %v959, 0
    %v1075 = vsel %vm992, %v962, 0
    %v1078 = vsel %vm992, %v964, 0
    %v1081 = vsel %vm992, %v967, 0
    %v1084 = vsel %vm992, %v973, 0
    %v1087 = vsel %vm992, %v975, 0
    %1089 = vmatprep.subr.bf16.mxu0 0
    %1090 = vmatpush1.bf16.msra.mxu0 %v988
    %1091 = vmatprep.subr.bf16.mxu0 0
    %1092 = vmatpush1.bf16.msra.mxu0 %v989
    %1093 = vmatprep.subr.bf16.mxu0 0
    %1094 = vmatpush1.bf16.msra.mxu0 0
    %1095 = vmatprep.subr.bf16.mxu0 0
    %1096 = vmatpush1.bf16.msra.mxu0 0
    %1097 = vmatprep.subr.bf16.mxu0 0
    %1098 = vmatpush1.bf16.msra.mxu0 0
    %1099 = vmatprep.subr.bf16.mxu0 0
    %1100 = vmatpush1.bf16.msra.mxu0 0
    %1101 = vmatprep.subr.bf16.mxu0 0
    %1102 = vmatpush1.bf16.msra.mxu0 0
    %1103 = vmatprep.subr.bf16.mxu0 0
    %1104 = vmatpush1.bf16.msra.mxu0 0
    %1105 = vmatprep.subr.bf16.mxu0 0
    %1106 = vmatpush1.bf16.msra.mxu0 0
    %1107 = vmatprep.subr.bf16.mxu0 0
    %1108 = vmatpush1.bf16.msra.mxu0 0
    %1109 = vmatprep.subr.bf16.mxu0 0
    %1110 = vmatpush1.bf16.msra.mxu0 0
    %1111 = vmatprep.subr.bf16.mxu0 0
    %1112 = vmatpush1.bf16.msra.mxu0 0
    %1113 = vmatprep.subr.bf16.mxu0 0
    %1114 = vmatpush1.bf16.msra.mxu0 0
    %1115 = vmatprep.subr.bf16.mxu0 0
    %1116 = vmatpush1.bf16.msra.mxu0 0
    %1117 = vmatprep.subr.bf16.mxu0 0
    %1118 = vmatpush1.bf16.msra.mxu0 0
    %1119 = vmatprep.subr.bf16.mxu0 0
    %1120 = vmatpush1.bf16.msra.mxu0 0
    %1121 = vmatprep.mubr.bf16.mxu0 0
    %1122 = vmatmul.mubr.bf16.gmra.mrb[0].mxu0 %v994
    %v1123 = vpop.f32.mrb[0].mxu0
    %v1124 = vadd.f32 0.0, %v1123
    %v1125 = vpop.f32.mrb[0].mxu0
    %v1126 = vpop.f32.mrb[0].mxu0
    %v1127 = vadd.f32 0.0, %v1126
    %v1128 = vpop.f32.mrb[0].mxu0
    %1129 = vmatprep.mubr.bf16.mxu0 0
    %1130 = vmatmul.mubr.bf16.gmra.mrb[0].mxu0 %v997
    %v1131 = vpop.f32.mrb[0].mxu0
    %v1132 = vadd.f32 0.0, %v1131
    %v1133 = vpop.f32.mrb[0].mxu0
    %v1134 = vpop.f32.mrb[0].mxu0
    %v1135 = vadd.f32 0.0, %v1134
    %v1136 = vpop.f32.mrb[0].mxu0
    %1137 = vmatprep.mubr.bf16.mxu0 0
    %1138 = vmatmul.mubr.bf16.gmra.mrb[0].mxu0 %v1000
    %v1139 = vpop.f32.mrb[0].mxu0
    %v1140 = vadd.f32 0.0, %v1139
    %v1141 = vpop.f32.mrb[0].mxu0
    %v1142 = vpop.f32.mrb[0].mxu0
    %v1143 = vadd.f32 0.0, %v1142
    %v1144 = vpop.f32.mrb[0].mxu0
    %1145 = vmatprep.mubr.bf16.mxu0 0
    %1146 = vmatmul.mubr.bf16.gmra.mrb[0].mxu0 %v1003
    %v1147 = vpop.f32.mrb[0].mxu0
    %v1148 = vadd.f32 0.0, %v1147
    %v1149 = vpop.f32.mrb[0].mxu0
    %v1150 = vpop.f32.mrb[0].mxu0
    %v1151 = vadd.f32 0.0, %v1150
    %v1152 = vpop.f32.mrb[0].mxu0
    %1153 = vmatprep.mubr.bf16.mxu0 0
    %1154 = vmatmul.mubr.bf16.gmra.mrb[0].mxu0 %v1006
    %v1155 = vpop.f32.mrb[0].mxu0
    %v1156 = vadd.f32 0.0, %v1155
    %v1157 = vpop.f32.mrb[0].mxu0
    %v1158 = vpop.f32.mrb[0].mxu0
    %v1159 = vadd.f32 0.0, %v1158
    %v1160 = vpop.f32.mrb[0].mxu0
    %1161 = vmatprep.mubr.bf16.mxu0 0
    %1162 = vmatmul.mubr.bf16.gmra.mrb[0].mxu0 %v1009
    %v1163 = vpop.f32.mrb[0].mxu0
    %v1164 = vadd.f32 0.0, %v1163
    %v1165 = vpop.f32.mrb[0].mxu0
    %v1166 = vpop.f32.mrb[0].mxu0
    %v1167 = vadd.f32 0.0, %v1166
    %v1168 = vpop.f32.mrb[0].mxu0
    %1169 = vmatprep.mubr.bf16.mxu0 0
    %1170 = vmatmul.mubr.bf16.gmra.mrb[0].mxu0 %v1012
    %v1171 = vpop.f32.mrb[0].mxu0
    %v1172 = vadd.f32 0.0, %v1171
    %v1173 = vpop.f32.mrb[0].mxu0
    %v1174 = vpop.f32.mrb[0].mxu0
    %v1175 = vadd.f32 0.0, %v1174
    %v1176 = vpop.f32.mrb[0].mxu0
    %1177 = vmatprep.mubr.bf16.mxu0 0
    %1178 = vmatmul.mubr.bf16.gmra.mrb[0].mxu0 %v1015
    %v1179 = vpop.f32.mrb[0].mxu0
    %v1180 = vadd.f32 0.0, %v1179
    %v1181 = vpop.f32.mrb[0].mxu0
    %v1182 = vpop.f32.mrb[0].mxu0
    %v1183 = vadd.f32 0.0, %v1182
    %v1184 = vpop.f32.mrb[0].mxu0
    %1185 = vmatprep.mubr.bf16.mxu0 0
    %1186 = vmatmul.mubr.bf16.gmra.mrb[0].mxu0 %v1018
    %v1187 = vpop.f32.mrb[0].mxu0
    %v1188 = vadd.f32 0.0, %v1187
    %v1189 = vpop.f32.mrb[0].mxu0
    %v1190 = vpop.f32.mrb[0].mxu0
    %v1191 = vadd.f32 0.0, %v1190
    %v1192 = vpop.f32.mrb[0].mxu0
    %1193 = vmatprep.mubr.bf16.mxu0 0
    %1194 = vmatmul.mubr.bf16.gmra.mrb[0].mxu0 %v1021
    %v1195 = vpop.f32.mrb[0].mxu0
    %v1196 = vadd.f32 0.0, %v1195
    %v1197 = vpop.f32.mrb[0].mxu0
    %v1198 = vpop.f32.mrb[0].mxu0
    %v1199 = vadd.f32 0.0, %v1198
    %v1200 = vpop.f32.mrb[0].mxu0
    %1201 = vmatprep.mubr.bf16.mxu0 0
    %1202 = vmatmul.mubr.bf16.gmra.mrb[0].mxu0 %v1024
    %v1203 = vpop.f32.mrb[0].mxu0
    %v1204 = vadd.f32 0.0, %v1203
    %v1205 = vpop.f32.mrb[0].mxu0
    %v1206 = vpop.f32.mrb[0].mxu0
    %v1207 = vadd.f32 0.0, %v1206
    %v1208 = vpop.f32.mrb[0].mxu0
    %1209 = vmatprep.mubr.bf16.mxu0 0
    %1210 = vmatmul.mubr.bf16.gmra.mrb[0].mxu0 %v1027
    %v1211 = vpop.f32.mrb[0].mxu0
    %v1212 = vadd.f32 0.0, %v1211
    %v1213 = vpop.f32.mrb[0].mxu0
    %v1214 = vpop.f32.mrb[0].mxu0
    %v1215 = vadd.f32 0.0, %v1214
    %v1216 = vpop.f32.mrb[0].mxu0
    %1217 = vmatprep.mubr.bf16.mxu0 0
    %1218 = vmatmul.mubr.bf16.gmra.mrb[0].mxu0 %v1030
    %v1219 = vpop.f32.mrb[0].mxu0
    %v1220 = vadd.f32 0.0, %v1219
    %v1221 = vpop.f32.mrb[0].mxu0
    %v1222 = vpop.f32.mrb[0].mxu0
    %v1223 = vadd.f32 0.0, %v1222
    %v1224 = vpop.f32.mrb[0].mxu0
    %1225 = vmatprep.mubr.bf16.mxu0 0
    %1226 = vmatmul.mubr.bf16.gmra.mrb[0].mxu0 %v1033
    %v1227 = vpop.f32.mrb[0].mxu0
    %v1228 = vadd.f32 0.0, %v1227
    %v1229 = vpop.f32.mrb[0].mxu0
    %v1230 = vpop.f32.mrb[0].mxu0
    %v1231 = vadd.f32 0.0, %v1230
    %v1232 = vpop.f32.mrb[0].mxu0
    %1233 = vmatprep.mubr.bf16.mxu0 0
    %1234 = vmatmul.mubr.bf16.gmra.mrb[0].mxu0 %v1036
    %v1235 = vpop.f32.mrb[0].mxu0
    %v1236 = vadd.f32 0.0, %v1235
    %v1237 = vpop.f32.mrb[0].mxu0
    %v1238 = vpop.f32.mrb[0].mxu0
    %v1239 = vadd.f32 0.0, %v1238
    %v1240 = vpop.f32.mrb[0].mxu0
    %1241 = vmatprep.mubr.bf16.mxu0 0
    %1242 = vmatmul.mubr.bf16.gmra.mrb[0].mxu0 %v1039
    %v1243 = vpop.f32.mrb[0].mxu0
    %v1244 = vadd.f32 0.0, %v1243
    %v1245 = vpop.f32.mrb[0].mxu0
    %v1246 = vpop.f32.mrb[0].mxu0
    %v1247 = vadd.f32 0.0, %v1246
    %v1248 = vpop.f32.mrb[0].mxu0
    %1249 = vmatprep.mubr.bf16.mxu0 0
    %1250 = vmatmul.mubr.bf16.gmra.mrb[0].mxu0 %v1042
    %v1251 = vpop.f32.mrb[0].mxu0
    %v1252 = vadd.f32 0.0, %v1251
    %v1253 = vpop.f32.mrb[0].mxu0
    %v1254 = vpop.f32.mrb[0].mxu0
    %v1255 = vadd.f32 0.0, %v1254
    %v1256 = vpop.f32.mrb[0].mxu0
    %1257 = vmatprep.mubr.bf16.mxu0 0
    %1258 = vmatmul.mubr.bf16.gmra.mrb[0].mxu0 %v1045
    %v1259 = vpop.f32.mrb[0].mxu0
    %v1260 = vadd.f32 0.0, %v1259
    %v1261 = vpop.f32.mrb[0].mxu0
    %v1262 = vpop.f32.mrb[0].mxu0
    %v1263 = vadd.f32 0.0, %v1262
    %v1264 = vpop.f32.mrb[0].mxu0
    %1265 = vmatprep.mubr.bf16.mxu0 0
    %1266 = vmatmul.mubr.bf16.gmra.mrb[0].mxu0 %v1048
    %v1267 = vpop.f32.mrb[0].mxu0
    %v1268 = vadd.f32 0.0, %v1267
    %v1269 = vpop.f32.mrb[0].mxu0
    %v1270 = vpop.f32.mrb[0].mxu0
    %v1271 = vadd.f32 0.0, %v1270
    %v1272 = vpop.f32.mrb[0].mxu0
    %1273 = vmatprep.mubr.bf16.mxu0 0
    %1274 = vmatmul.mubr.bf16.gmra.mrb[0].mxu0 %v1051
    %v1275 = vpop.f32.mrb[0].mxu0
    %v1276 = vadd.f32 0.0, %v1275
    %v1277 = vpop.f32.mrb[0].mxu0
    %v1278 = vpop.f32.mrb[0].mxu0
    %v1279 = vadd.f32 0.0, %v1278
    %v1280 = vpop.f32.mrb[0].mxu0
    %1281 = vmatprep.mubr.bf16.mxu0 0
    %1282 = vmatmul.mubr.bf16.gmra.mrb[0].mxu0 %v1054
    %v1283 = vpop.f32.mrb[0].mxu0
    %v1284 = vadd.f32 0.0, %v1283
    %v1285 = vpop.f32.mrb[0].mxu0
    %v1286 = vpop.f32.mrb[0].mxu0
    %v1287 = vadd.f32 0.0, %v1286
    %v1288 = vpop.f32.mrb[0].mxu0
    %1289 = vmatprep.mubr.bf16.mxu0 0
    %1290 = vmatmul.mubr.bf16.gmra.mrb[0].mxu0 %v1057
    %v1291 = vpop.f32.mrb[0].mxu0
    %v1292 = vadd.f32 0.0, %v1291
    %v1293 = vpop.f32.mrb[0].mxu0
    %v1294 = vpop.f32.mrb[0].mxu0
    %v1295 = vadd.f32 0.0, %v1294
    %v1296 = vpop.f32.mrb[0].mxu0
    %1297 = vmatprep.mubr.bf16.mxu0 0
    %1298 = vmatmul.mubr.bf16.gmra.mrb[0].mxu0 %v1060
    %v1299 = vpop.f32.mrb[0].mxu0
    %v1300 = vadd.f32 0.0, %v1299
    %v1301 = vpop.f32.mrb[0].mxu0
    %v1302 = vpop.f32.mrb[0].mxu0
    %v1303 = vadd.f32 0.0, %v1302
    %v1304 = vpop.f32.mrb[0].mxu0
    %1305 = vmatprep.mubr.bf16.mxu0 0
    %1306 = vmatmul.mubr.bf16.gmra.mrb[0].mxu0 %v1063
    %v1307 = vpop.f32.mrb[0].mxu0
    %v1308 = vadd.f32 0.0, %v1307
    %v1309 = vpop.f32.mrb[0].mxu0
    %v1310 = vpop.f32.mrb[0].mxu0
    %v1311 = vadd.f32 0.0, %v1310
    %v1312 = vpop.f32.mrb[0].mxu0
    %1313 = vmatprep.mubr.bf16.mxu0 0
    %1314 = vmatmul.mubr.bf16.gmra.mrb[0].mxu0 %v1066
    %v1315 = vpop.f32.mrb[0].mxu0
    %v1316 = vadd.f32 0.0, %v1315
    %v1317 = vpop.f32.mrb[0].mxu0
    %v1318 = vpop.f32.mrb[0].mxu0
    %v1319 = vadd.f32 0.0, %v1318
    %v1320 = vpop.f32.mrb[0].mxu0
    %1321 = vmatprep.mubr.bf16.mxu0 0
    %1322 = vmatmul.mubr.bf16.gmra.mrb[0].mxu0 %v1069
    %v1323 = vpop.f32.mrb[0].mxu0
    %v1324 = vadd.f32 0.0, %v1323
    %v1325 = vpop.f32.mrb[0].mxu0
    %v1326 = vpop.f32.mrb[0].mxu0
    %v1327 = vadd.f32 0.0, %v1326
    %v1328 = vpop.f32.mrb[0].mxu0
    %1329 = vmatprep.mubr.bf16.mxu0 0
    %1330 = vmatmul.mubr.bf16.gmra.mrb[0].mxu0 %v1072
    %v1331 = vpop.f32.mrb[0].mxu0
    %v1332 = vadd.f32 0.0, %v1331
    %v1333 = vpop.f32.mrb[0].mxu0
    %v1334 = vpop.f32.mrb[0].mxu0
    %v1335 = vadd.f32 0.0, %v1334
    %v1336 = vpop.f32.mrb[0].mxu0
    %1337 = vmatprep.mubr.bf16.mxu0 0
    %1338 = vmatmul.mubr.bf16.gmra.mrb[0].mxu0 %v1075
    %v1339 = vpop.f32.mrb[0].mxu0
    %v1340 = vadd.f32 0.0, %v1339
    %v1341 = vpop.f32.mrb[0].mxu0
    %v1342 = vpop.f32.mrb[0].mxu0
    %v1343 = vadd.f32 0.0, %v1342
    %v1344 = vpop.f32.mrb[0].mxu0
    %1345 = vmatprep.mubr.bf16.mxu0 0
    %1346 = vmatmul.mubr.bf16.gmra.mrb[0].mxu0 %v1078
    %v1347 = vpop.f32.mrb[0].mxu0
    %v1348 = vadd.f32 0.0, %v1347
    %v1349 = vpop.f32.mrb[0].mxu0
    %v1350 = vpop.f32.mrb[0].mxu0
    %v1351 = vadd.f32 0.0, %v1350
    %v1352 = vpop.f32.mrb[0].mxu0
    %1353 = vmatprep.mubr.bf16.mxu0 0
    %1354 = vmatmul.mubr.bf16.gmra.mrb[0].mxu0 %v1081
    %v1355 = vpop.f32.mrb[0].mxu0
    %v1356 = vadd.f32 0.0, %v1355
    %v1357 = vpop.f32.mrb[0].mxu0
    %v1358 = vpop.f32.mrb[0].mxu0
    %v1359 = vadd.f32 0.0, %v1358
    %v1360 = vpop.f32.mrb[0].mxu0
    %1361 = vmatprep.mubr.bf16.mxu0 0
    %1362 = vmatmul.mubr.bf16.gmra.mrb[0].mxu0 %v1084
    %v1363 = vpop.f32.mrb[0].mxu0
    %v1364 = vadd.f32 0.0, %v1363
    %v1365 = vpop.f32.mrb[0].mxu0
    %v1366 = vpop.f32.mrb[0].mxu0
    %v1367 = vadd.f32 0.0, %v1366
    %v1368 = vpop.f32.mrb[0].mxu0
    %1369 = vmatprep.mubr.bf16.mxu0 0
    %1370 = vmatmul.mubr.bf16.gmra.mrb[0].mxu0 %v1087
    %v1371 = vpop.f32.mrb[0].mxu0
    %v1372 = vadd.f32 0.0, %v1371
    %v1373 = vpop.f32.mrb[0].mxu0
    %v1374 = vpop.f32.mrb[0].mxu0
    %v1375 = vadd.f32 0.0, %v1374
    %v1376 = vpop.f32.mrb[0].mxu0
    %1377 = vdwg.mxu0
    %v1378 = vpack.c.bf16 %v1127, %v1124
    %v1379 = vpack.c.bf16 %v1135, %v1132
    %v1380 = vpack.c.bf16 %v1143, %v1140
    %v1381 = vpack.c.bf16 %v1151, %v1148
    %v1382 = vpack.c.bf16 %v1159, %v1156
    %v1383 = vpack.c.bf16 %v1167, %v1164
    %v1384 = vpack.c.bf16 %v1175, %v1172
    %v1385 = vpack.c.bf16 %v1183, %v1180
    %v1386 = vpack.c.bf16 %v1191, %v1188
    %v1387 = vpack.c.bf16 %v1199, %v1196
    %v1388 = vpack.c.bf16 %v1207, %v1204
    %v1389 = vpack.c.bf16 %v1215, %v1212
    %v1390 = vpack.c.bf16 %v1223, %v1220
    %v1391 = vpack.c.bf16 %v1231, %v1228
    %v1392 = vpack.c.bf16 %v1239, %v1236
    %v1393 = vpack.c.bf16 %v1247, %v1244
    %v1394 = vpack.c.bf16 %v1255, %v1252
    %v1395 = vpack.c.bf16 %v1263, %v1260
    %v1396 = vpack.c.bf16 %v1271, %v1268
    %v1397 = vpack.c.bf16 %v1279, %v1276
    %v1398 = vpack.c.bf16 %v1287, %v1284
    %v1399 = vpack.c.bf16 %v1295, %v1292
    %v1400 = vpack.c.bf16 %v1303, %v1300
    %v1401 = vpack.c.bf16 %v1311, %v1308
    %v1402 = vpack.c.bf16 %v1319, %v1316
    %v1403 = vpack.c.bf16 %v1327, %v1324
    %v1404 = vpack.c.bf16 %v1335, %v1332
    %v1405 = vpack.c.bf16 %v1343, %v1340
    %v1406 = vpack.c.bf16 %v1351, %v1348
    %v1407 = vpack.c.bf16 %v1359, %v1356
    %v1408 = vpack.c.bf16 %v1367, %v1364
    %v1409 = vpack.c.bf16 %v1375, %v1372
    %1411 = vrot.lane.b32.xlu0 %v1378, 40
    %v1412 = vpop.permute.xlu0 %1411
    %1414 = vrot.lane.b32.xlu0 %v1379, 60
    %v1415 = vpop.permute.xlu0 %1414
    %1417 = vrot.lane.b32.xlu0 %v1380, 80
    %v1418 = vpop.permute.xlu0 %1417
    %1420 = vrot.lane.b32.xlu0 %v1381, 100
    %v1421 = vpop.permute.xlu0 %1420
    %1423 = vrot.lane.b32.xlu0 %v1382, 120
    %v1424 = vpop.permute.xlu0 %1423
    %1426 = vrot.lane.b32.xlu0 %v1383, 12
    %v1427 = vpop.permute.xlu0 %1426
    %1429 = vrot.lane.b32.xlu0 %v1384, 32
    %v1430 = vpop.permute.xlu0 %1429
    %1432 = vrot.lane.b32.xlu0 %v1385, 52
    %v1433 = vpop.permute.xlu0 %1432
    %1435 = vrot.lane.b32.xlu0 %v1386, 72
    %v1436 = vpop.permute.xlu0 %1435
    %1438 = vrot.lane.b32.xlu0 %v1387, 92
    %v1439 = vpop.permute.xlu0 %1438
    %1441 = vrot.lane.b32.xlu0 %v1388, 112
    %v1442 = vpop.permute.xlu0 %1441
    %1444 = vrot.lane.b32.xlu0 %v1389, 4
    %v1445 = vpop.permute.xlu0 %1444
    %1447 = vrot.lane.b32.xlu0 %v1390, 24
    %v1448 = vpop.permute.xlu0 %1447
    %1450 = vrot.lane.b32.xlu0 %v1391, 44
    %v1451 = vpop.permute.xlu0 %1450
    %1453 = vrot.lane.b32.xlu0 %v1392, 64
    %v1454 = vpop.permute.xlu0 %1453
    %vm1455 = vcmask 326656
    %v1458 = vsel %vm1455, 0, %v1412
    %vm1459 = vcmask 490496
    %v1461 = vsel %vm1459, %v1458, %v1415
    %vm1462 = vcmask 654336
    %v1464 = vsel %vm1462, %v1461, %v1418
    %vm1465 = vcmask 818176
    %v1467 = vsel %vm1465, %v1464, %v1421
    %vm1468 = vcmask 982016
    %v1470 = vsel %vm1468, %v1467, %v1424
    %vm1472 = vcmask 97280
    %v1474 = vsel %vm1472, %v1424, %v1427
    %v1476 = vsel %vm992, %v1474, %v1430
    %vm1477 = vcmask 424960
    %v1479 = vsel %vm1477, %v1476, %v1433
    %vm1480 = vcmask 588800
    %v1482 = vsel %vm1480, %v1479, %v1436
    %vm1483 = vcmask 752640
    %v1485 = vsel %vm1483, %v1482, %v1439
    %vm1486 = vcmask 916480
    %v1488 = vsel %vm1486, %v1485, %v1442
    %vm1490 = vcmask 31744
    %v1492 = vsel %vm1490, %v1442, %v1445
    %vm1493 = vcmask 195584
    %v1495 = vsel %vm1493, %v1492, %v1448
    %vm1496 = vcmask 359424
    %v1498 = vsel %vm1496, %v1495, %v1451
    %vm1499 = vcmask 523264
    %v1501 = vsel %vm1499, %v1498, %v1454
    %vm1502 = vcmask 162816
    %v1504 = vsel %vm1502, %v1393, 0
    %1506 = vrot.lane.b32.xlu0 %v1504, 84
    %v1507 = vpop.permute.xlu0 %1506
    %vm1508 = vcmask 687104
    %v1510 = vsel %vm1508, %v1501, %v1507
    %1513 = vrot.lane.b32.xlu0 %v1394, 40
    %v1514 = vpop.permute.xlu0 %1513
    %1516 = vrot.lane.b32.xlu0 %v1395, 60
    %v1517 = vpop.permute.xlu0 %1516
    %1519 = vrot.lane.b32.xlu0 %v1396, 80
    %v1520 = vpop.permute.xlu0 %1519
    %1522 = vrot.lane.b32.xlu0 %v1397, 100
    %v1523 = vpop.permute.xlu0 %1522
    %1525 = vrot.lane.b32.xlu0 %v1398, 120
    %v1526 = vpop.permute.xlu0 %1525
    %1528 = vrot.lane.b32.xlu0 %v1399, 12
    %v1529 = vpop.permute.xlu0 %1528
    %1531 = vrot.lane.b32.xlu0 %v1400, 32
    %v1532 = vpop.permute.xlu0 %1531
    %1534 = vrot.lane.b32.xlu0 %v1401, 52
    %v1535 = vpop.permute.xlu0 %1534
    %1537 = vrot.lane.b32.xlu0 %v1402, 72
    %v1538 = vpop.permute.xlu0 %1537
    %1540 = vrot.lane.b32.xlu0 %v1403, 92
    %v1541 = vpop.permute.xlu0 %1540
    %1543 = vrot.lane.b32.xlu0 %v1404, 112
    %v1544 = vpop.permute.xlu0 %1543
    %1546 = vrot.lane.b32.xlu0 %v1405, 4
    %v1547 = vpop.permute.xlu0 %1546
    %1549 = vrot.lane.b32.xlu0 %v1406, 24
    %v1550 = vpop.permute.xlu0 %1549
    %1552 = vrot.lane.b32.xlu0 %v1407, 44
    %v1553 = vpop.permute.xlu0 %1552
    %1555 = vrot.lane.b32.xlu0 %v1408, 64
    %v1556 = vpop.permute.xlu0 %1555
    %v1558 = vsel %vm1455, 0, %v1514
    %v1560 = vsel %vm1459, %v1558, %v1517
    %v1562 = vsel %vm1462, %v1560, %v1520
    %v1564 = vsel %vm1465, %v1562, %v1523
    %v1566 = vsel %vm1468, %v1564, %v1526
    %v1568 = vsel %vm1472, %v1526, %v1529
    %v1570 = vsel %vm992, %v1568, %v1532
    %v1572 = vsel %vm1477, %v1570, %v1535
    %v1574 = vsel %vm1480, %v1572, %v1538
    %v1576 = vsel %vm1483, %v1574, %v1541
    %v1578 = vsel %vm1486, %v1576, %v1544
    %v1580 = vsel %vm1490, %v1544, %v1547
    %v1582 = vsel %vm1493, %v1580, %v1550
    %v1584 = vsel %vm1496, %v1582, %v1553
    %v1586 = vsel %vm1499, %v1584, %v1556
    %v1588 = vsel %vm1502, %v1409, 0
    %1590 = vrot.lane.b32.xlu0 %v1588, 84
    %v1591 = vpop.permute.xlu0 %1590
    %v1593 = vsel %vm1508, %v1586, %v1591
    %1597 = vrot.lane.b32.xlu0 %v1566, 16
    %v1598 = vpop.permute.xlu0 %1597
    %1599 = vrot.lane.b32.xlu0 %v1578, 16
    %v1600 = vpop.permute.xlu0 %1599
    %1601 = vrot.lane.b32.xlu0 %v1593, 16
    %v1602 = vpop.permute.xlu0 %1601
    %1603 = vrot.lane.b32.xlu0 %v1591, 16
    %v1604 = vpop.permute.xlu0 %1603
    %v1605 = vsel %vm924, %v1598, %v1600
    %v1606 = vsel %vm924, %v1600, %v1602
    %v1607 = vsel %vm924, %v1602, %v1604
    %vm1610 = vcmask 130048
    %v1612 = vsel %vm1610, %v1507, %v1598
    %v1614 = vld [vmem:[%s3] sm:$0xff]
    %v1615 = vld [vmem:[%s3 + $0x8] sm:$0xff]
    %v1616 = vld [vmem:[%s3 + $0x10] sm:$0xff]
    %v1617 = vld [vmem:[%s3 + $0x18] sm:$0xff]
    %1622 = vrot.lane.b32.xlu0 %v1470, 127
    %v1623 = vpop.permute.xlu0 %1622
    %1624 = vrot.lane.b32.xlu0 %v1488, 127
    %v1625 = vpop.permute.xlu0 %1624
    %1626 = vrot.lane.b32.xlu0 %v1510, 127
    %v1627 = vpop.permute.xlu0 %1626
    %1628 = vrot.lane.b32.xlu0 %v1612, 127
    %v1629 = vpop.permute.xlu0 %1628
    %1630 = vrot.lane.b32.xlu0 %v1605, 127
    %v1631 = vpop.permute.xlu0 %1630
    %1632 = vrot.lane.b32.xlu0 %v1606, 127
    %v1633 = vpop.permute.xlu0 %1632
    %vm1634 = vcmask 1039360
    %v1635 = vsel %vm1634, %v1623, %v1625
    %v1636 = vsel %vm1634, %v1625, %v1627
    %v1637 = vsel %vm1634, %v1627, %v1629
    %v1638 = vsel %vm1634, %v1629, %v1631
    %v1639 = vsel %vm1634, %v1631, %v1633
    %1646 = vrot.lane.b32.xlu0 %v1470, 126
    %v1647 = vpop.permute.xlu0 %1646
    %1648 = vrot.lane.b32.xlu0 %v1488, 126
    %v1649 = vpop.permute.xlu0 %1648
    %1650 = vrot.lane.b32.xlu0 %v1510, 126
    %v1651 = vpop.permute.xlu0 %1650
    %1652 = vrot.lane.b32.xlu0 %v1612, 126
    %v1653 = vpop.permute.xlu0 %1652
    %1654 = vrot.lane.b32.xlu0 %v1605, 126
    %v1655 = vpop.permute.xlu0 %1654
    %1656 = vrot.lane.b32.xlu0 %v1606, 126
    %v1657 = vpop.permute.xlu0 %1656
    %vm1658 = vcmask 1031168
    %v1659 = vsel %vm1658, %v1647, %v1649
    %v1660 = vsel %vm1658, %v1649, %v1651
    %v1661 = vsel %vm1658, %v1651, %v1653
    %v1662 = vsel %vm1658, %v1653, %v1655
    %v1663 = vsel %vm1658, %v1655, %v1657
    %1670 = vrot.lane.b32.xlu0 %v1470, 125
    %v1671 = vpop.permute.xlu0 %1670
    %1672 = vrot.lane.b32.xlu0 %v1488, 125
    %v1673 = vpop.permute.xlu0 %1672
    %1674 = vrot.lane.b32.xlu0 %v1510, 125
    %v1675 = vpop.permute.xlu0 %1674
    %1676 = vrot.lane.b32.xlu0 %v1612, 125
    %v1677 = vpop.permute.xlu0 %1676
    %1678 = vrot.lane.b32.xlu0 %v1605, 125
    %v1679 = vpop.permute.xlu0 %1678
    %1680 = vrot.lane.b32.xlu0 %v1606, 125
    %v1681 = vpop.permute.xlu0 %1680
    %vm1682 = vcmask 1022976
    %v1683 = vsel %vm1682, %v1671, %v1673
    %v1684 = vsel %vm1682, %v1673, %v1675
    %v1685 = vsel %vm1682, %v1675, %v1677
    %v1686 = vsel %vm1682, %v1677, %v1679
    %v1687 = vsel %vm1682, %v1679, %v1681
    %1694 = vrot.lane.b32.xlu0 %v1470, 124
    %v1695 = vpop.permute.xlu0 %1694
    %1696 = vrot.lane.b32.xlu0 %v1488, 124
    %v1697 = vpop.permute.xlu0 %1696
    %1698 = vrot.lane.b32.xlu0 %v1510, 124
    %v1699 = vpop.permute.xlu0 %1698
    %1700 = vrot.lane.b32.xlu0 %v1612, 124
    %v1701 = vpop.permute.xlu0 %1700
    %1702 = vrot.lane.b32.xlu0 %v1605, 124
    %v1703 = vpop.permute.xlu0 %1702
    %1704 = vrot.lane.b32.xlu0 %v1606, 124
    %v1705 = vpop.permute.xlu0 %1704
    %vm1706 = vcmask 1014784
    %v1707 = vsel %vm1706, %v1695, %v1697
    %v1708 = vsel %vm1706, %v1697, %v1699
    %v1709 = vsel %vm1706, %v1699, %v1701
    %v1710 = vsel %vm1706, %v1701, %v1703
    %v1711 = vsel %vm1706, %v1703, %v1705
    %1718 = vrot.lane.b32.xlu0 %v1470, 108
    %v1719 = vpop.permute.xlu0 %1718
    %1720 = vrot.lane.b32.xlu0 %v1488, 108
    %v1721 = vpop.permute.xlu0 %1720
    %1722 = vrot.lane.b32.xlu0 %v1510, 108
    %v1723 = vpop.permute.xlu0 %1722
    %1724 = vrot.lane.b32.xlu0 %v1612, 108
    %v1725 = vpop.permute.xlu0 %1724
    %1726 = vrot.lane.b32.xlu0 %v1605, 108
    %v1727 = vpop.permute.xlu0 %1726
    %1728 = vrot.lane.b32.xlu0 %v1606, 108
    %v1729 = vpop.permute.xlu0 %1728
    %vm1730 = vcmask 883712
    %v1731 = vsel %vm1730, %v1719, %v1721
    %v1732 = vsel %vm1730, %v1721, %v1723
    %v1733 = vsel %vm1730, %v1723, %v1725
    %v1734 = vsel %vm1730, %v1725, %v1727
    %v1735 = vsel %vm1730, %v1727, %v1729
    %1742 = vrot.lane.b32.xlu0 %v1470, 107
    %v1743 = vpop.permute.xlu0 %1742
    %1744 = vrot.lane.b32.xlu0 %v1488, 107
    %v1745 = vpop.permute.xlu0 %1744
    %1746 = vrot.lane.b32.xlu0 %v1510, 107
    %v1747 = vpop.permute.xlu0 %1746
    %1748 = vrot.lane.b32.xlu0 %v1612, 107
    %v1749 = vpop.permute.xlu0 %1748
    %1750 = vrot.lane.b32.xlu0 %v1605, 107
    %v1751 = vpop.permute.xlu0 %1750
    %1752 = vrot.lane.b32.xlu0 %v1606, 107
    %v1753 = vpop.permute.xlu0 %1752
    %vm1754 = vcmask 875520
    %v1755 = vsel %vm1754, %v1743, %v1745
    %v1756 = vsel %vm1754, %v1745, %v1747
    %v1757 = vsel %vm1754, %v1747, %v1749
    %v1758 = vsel %vm1754, %v1749, %v1751
    %v1759 = vsel %vm1754, %v1751, %v1753
    %1766 = vrot.lane.b32.xlu0 %v1470, 106
    %v1767 = vpop.permute.xlu0 %1766
    %1768 = vrot.lane.b32.xlu0 %v1488, 106
    %v1769 = vpop.permute.xlu0 %1768
    %1770 = vrot.lane.b32.xlu0 %v1510, 106
    %v1771 = vpop.permute.xlu0 %1770
    %1772 = vrot.lane.b32.xlu0 %v1612, 106
    %v1773 = vpop.permute.xlu0 %1772
    %1774 = vrot.lane.b32.xlu0 %v1605, 106
    %v1775 = vpop.permute.xlu0 %1774
    %1776 = vrot.lane.b32.xlu0 %v1606, 106
    %v1777 = vpop.permute.xlu0 %1776
    %vm1778 = vcmask 867328
    %v1779 = vsel %vm1778, %v1767, %v1769
    %v1780 = vsel %vm1778, %v1769, %v1771
    %v1781 = vsel %vm1778, %v1771, %v1773
    %v1782 = vsel %vm1778, %v1773, %v1775
    %v1783 = vsel %vm1778, %v1775, %v1777
    %1790 = vrot.lane.b32.xlu0 %v1470, 105
    %v1791 = vpop.permute.xlu0 %1790
    %1792 = vrot.lane.b32.xlu0 %v1488, 105
    %v1793 = vpop.permute.xlu0 %1792
    %1794 = vrot.lane.b32.xlu0 %v1510, 105
    %v1795 = vpop.permute.xlu0 %1794
    %1796 = vrot.lane.b32.xlu0 %v1612, 105
    %v1797 = vpop.permute.xlu0 %1796
    %1798 = vrot.lane.b32.xlu0 %v1605, 105
    %v1799 = vpop.permute.xlu0 %1798
    %1800 = vrot.lane.b32.xlu0 %v1606, 105
    %v1801 = vpop.permute.xlu0 %1800
    %vm1802 = vcmask 859136
    %v1803 = vsel %vm1802, %v1791, %v1793
    %v1804 = vsel %vm1802, %v1793, %v1795
    %v1805 = vsel %vm1802, %v1795, %v1797
    %v1806 = vsel %vm1802, %v1797, %v1799
    %v1807 = vsel %vm1802, %v1799, %v1801
    %1814 = vrot.lane.b32.xlu0 %v1470, 104
    %v1815 = vpop.permute.xlu0 %1814
    %1816 = vrot.lane.b32.xlu0 %v1488, 104
    %v1817 = vpop.permute.xlu0 %1816
    %1818 = vrot.lane.b32.xlu0 %v1510, 104
    %v1819 = vpop.permute.xlu0 %1818
    %1820 = vrot.lane.b32.xlu0 %v1612, 104
    %v1821 = vpop.permute.xlu0 %1820
    %1822 = vrot.lane.b32.xlu0 %v1605, 104
    %v1823 = vpop.permute.xlu0 %1822
    %1824 = vrot.lane.b32.xlu0 %v1606, 104
    %v1825 = vpop.permute.xlu0 %1824
    %vm1826 = vcmask 850944
    %v1827 = vsel %vm1826, %v1815, %v1817
    %v1828 = vsel %vm1826, %v1817, %v1819
    %v1829 = vsel %vm1826, %v1819, %v1821
    %v1830 = vsel %vm1826, %v1821, %v1823
    %v1831 = vsel %vm1826, %v1823, %v1825
    %1838 = vrot.lane.b32.xlu0 %v1470, 88
    %v1839 = vpop.permute.xlu0 %1838
    %1840 = vrot.lane.b32.xlu0 %v1488, 88
    %v1841 = vpop.permute.xlu0 %1840
    %1842 = vrot.lane.b32.xlu0 %v1510, 88
    %v1843 = vpop.permute.xlu0 %1842
    %1844 = vrot.lane.b32.xlu0 %v1612, 88
    %v1845 = vpop.permute.xlu0 %1844
    %1846 = vrot.lane.b32.xlu0 %v1605, 88
    %v1847 = vpop.permute.xlu0 %1846
    %1848 = vrot.lane.b32.xlu0 %v1606, 88
    %v1849 = vpop.permute.xlu0 %1848
    %vm1850 = vcmask 719872
    %v1851 = vsel %vm1850, %v1839, %v1841
    %v1852 = vsel %vm1850, %v1841, %v1843
    %v1853 = vsel %vm1850, %v1843, %v1845
    %v1854 = vsel %vm1850, %v1845, %v1847
    %v1855 = vsel %vm1850, %v1847, %v1849
    %1862 = vrot.lane.b32.xlu0 %v1470, 87
    %v1863 = vpop.permute.xlu0 %1862
    %1864 = vrot.lane.b32.xlu0 %v1488, 87
    %v1865 = vpop.permute.xlu0 %1864
    %1866 = vrot.lane.b32.xlu0 %v1510, 87
    %v1867 = vpop.permute.xlu0 %1866
    %1868 = vrot.lane.b32.xlu0 %v1612, 87
    %v1869 = vpop.permute.xlu0 %1868
    %1870 = vrot.lane.b32.xlu0 %v1605, 87
    %v1871 = vpop.permute.xlu0 %1870
    %1872 = vrot.lane.b32.xlu0 %v1606, 87
    %v1873 = vpop.permute.xlu0 %1872
    %vm1874 = vcmask 711680
    %v1875 = vsel %vm1874, %v1863, %v1865
    %v1876 = vsel %vm1874, %v1865, %v1867
    %v1877 = vsel %vm1874, %v1867, %v1869
    %v1878 = vsel %vm1874, %v1869, %v1871
    %v1879 = vsel %vm1874, %v1871, %v1873
    %1886 = vrot.lane.b32.xlu0 %v1470, 86
    %v1887 = vpop.permute.xlu0 %1886
    %1888 = vrot.lane.b32.xlu0 %v1488, 86
    %v1889 = vpop.permute.xlu0 %1888
    %1890 = vrot.lane.b32.xlu0 %v1510, 86
    %v1891 = vpop.permute.xlu0 %1890
    %1892 = vrot.lane.b32.xlu0 %v1612, 86
    %v1893 = vpop.permute.xlu0 %1892
    %1894 = vrot.lane.b32.xlu0 %v1605, 86
    %v1895 = vpop.permute.xlu0 %1894
    %1896 = vrot.lane.b32.xlu0 %v1606, 86
    %v1897 = vpop.permute.xlu0 %1896
    %vm1898 = vcmask 703488
    %v1899 = vsel %vm1898, %v1887, %v1889
    %v1900 = vsel %vm1898, %v1889, %v1891
    %v1901 = vsel %vm1898, %v1891, %v1893
    %v1902 = vsel %vm1898, %v1893, %v1895
    %v1903 = vsel %vm1898, %v1895, %v1897
    %1910 = vrot.lane.b32.xlu0 %v1470, 85
    %v1911 = vpop.permute.xlu0 %1910
    %1912 = vrot.lane.b32.xlu0 %v1488, 85
    %v1913 = vpop.permute.xlu0 %1912
    %1914 = vrot.lane.b32.xlu0 %v1510, 85
    %v1915 = vpop.permute.xlu0 %1914
    %1916 = vrot.lane.b32.xlu0 %v1612, 85
    %v1917 = vpop.permute.xlu0 %1916
    %1918 = vrot.lane.b32.xlu0 %v1605, 85
    %v1919 = vpop.permute.xlu0 %1918
    %1920 = vrot.lane.b32.xlu0 %v1606, 85
    %v1921 = vpop.permute.xlu0 %1920
    %vm1922 = vcmask 695296
    %v1923 = vsel %vm1922, %v1911, %v1913
    %v1924 = vsel %vm1922, %v1913, %v1915
    %v1925 = vsel %vm1922, %v1915, %v1917
    %v1926 = vsel %vm1922, %v1917, %v1919
    %v1927 = vsel %vm1922, %v1919, %v1921
    %1934 = vrot.lane.b32.xlu0 %v1470, 84
    %v1935 = vpop.permute.xlu0 %1934
    %1936 = vrot.lane.b32.xlu0 %v1488, 84
    %v1937 = vpop.permute.xlu0 %1936
    %1938 = vrot.lane.b32.xlu0 %v1510, 84
    %v1939 = vpop.permute.xlu0 %1938
    %1940 = vrot.lane.b32.xlu0 %v1612, 84
    %v1941 = vpop.permute.xlu0 %1940
    %1942 = vrot.lane.b32.xlu0 %v1605, 84
    %v1943 = vpop.permute.xlu0 %1942
    %1944 = vrot.lane.b32.xlu0 %v1606, 84
    %v1945 = vpop.permute.xlu0 %1944
    %vm1946 = vcmask 687104
    %v1947 = vsel %vm1946, %v1935, %v1937
    %v1948 = vsel %vm1946, %v1937, %v1939
    %v1949 = vsel %vm1946, %v1939, %v1941
    %v1950 = vsel %vm1946, %v1941, %v1943
    %v1951 = vsel %vm1946, %v1943, %v1945
    %1958 = vrot.lane.b32.xlu0 %v1470, 68
    %v1959 = vpop.permute.xlu0 %1958
    %1960 = vrot.lane.b32.xlu0 %v1488, 68
    %v1961 = vpop.permute.xlu0 %1960
    %1962 = vrot.lane.b32.xlu0 %v1510, 68
    %v1963 = vpop.permute.xlu0 %1962
    %1964 = vrot.lane.b32.xlu0 %v1612, 68
    %v1965 = vpop.permute.xlu0 %1964
    %1966 = vrot.lane.b32.xlu0 %v1605, 68
    %v1967 = vpop.permute.xlu0 %1966
    %1968 = vrot.lane.b32.xlu0 %v1606, 68
    %v1969 = vpop.permute.xlu0 %1968
    %vm1970 = vcmask 556032
    %v1971 = vsel %vm1970, %v1959, %v1961
    %v1972 = vsel %vm1970, %v1961, %v1963
    %v1973 = vsel %vm1970, %v1963, %v1965
    %v1974 = vsel %vm1970, %v1965, %v1967
    %v1975 = vsel %vm1970, %v1967, %v1969
    %1982 = vrot.lane.b32.xlu0 %v1470, 109
    %v1983 = vpop.permute.xlu0 %1982
    %1984 = vrot.lane.b32.xlu0 %v1488, 109
    %v1985 = vpop.permute.xlu0 %1984
    %1986 = vrot.lane.b32.xlu0 %v1510, 109
    %v1987 = vpop.permute.xlu0 %1986
    %1988 = vrot.lane.b32.xlu0 %v1612, 109
    %v1989 = vpop.permute.xlu0 %1988
    %1990 = vrot.lane.b32.xlu0 %v1605, 109
    %v1991 = vpop.permute.xlu0 %1990
    %1992 = vrot.lane.b32.xlu0 %v1606, 109
    %v1993 = vpop.permute.xlu0 %1992
    %1994 = vrot.lane.b32.xlu0 %v1607, 109
    %v1995 = vpop.permute.xlu0 %1994
    %vm1996 = vcmask 891904
    %v1997 = vsel %vm1996, %v1983, %v1985
    %v1998 = vsel %vm1996, %v1985, %v1987
    %v1999 = vsel %vm1996, %v1987, %v1989
    %v2000 = vsel %vm1996, %v1989, %v1991
    %v2001 = vsel %vm1996, %v1991, %v1993
    %v2002 = vsel %vm1996, %v1993, %v1995
    %2003 = vrot.lane.b32.xlu0 %v1607, 108
    %v2004 = vpop.permute.xlu0 %2003
    %v2005 = vsel %vm1730, %v1729, %v2004
    %2006 = vrot.lane.b32.xlu0 %v1607, 107
    %v2007 = vpop.permute.xlu0 %2006
    %v2008 = vsel %vm1754, %v1753, %v2007
    %2009 = vrot.lane.b32.xlu0 %v1607, 106
    %v2010 = vpop.permute.xlu0 %2009
    %v2011 = vsel %vm1778, %v1777, %v2010
    %2012 = vrot.lane.b32.xlu0 %v1607, 105
    %v2013 = vpop.permute.xlu0 %2012
    %v2014 = vsel %vm1802, %v1801, %v2013
    %2015 = vrot.lane.b32.xlu0 %v1470, 67
    %v2016 = vpop.permute.xlu0 %2015
    %2017 = vrot.lane.b32.xlu0 %v1488, 67
    %v2018 = vpop.permute.xlu0 %2017
    %2019 = vrot.lane.b32.xlu0 %v1510, 67
    %v2020 = vpop.permute.xlu0 %2019
    %2021 = vrot.lane.b32.xlu0 %v1612, 67
    %v2022 = vpop.permute.xlu0 %2021
    %2023 = vrot.lane.b32.xlu0 %v1605, 67
    %v2024 = vpop.permute.xlu0 %2023
    %2025 = vrot.lane.b32.xlu0 %v1606, 67
    %v2026 = vpop.permute.xlu0 %2025
    %2027 = vrot.lane.b32.xlu0 %v1635, 67
    %v2028 = vpop.permute.xlu0 %2027
    %2029 = vrot.lane.b32.xlu0 %v1636, 67
    %v2030 = vpop.permute.xlu0 %2029
    %2031 = vrot.lane.b32.xlu0 %v1637, 67
    %v2032 = vpop.permute.xlu0 %2031
    %2033 = vrot.lane.b32.xlu0 %v1638, 67
    %v2034 = vpop.permute.xlu0 %2033
    %2035 = vrot.lane.b32.xlu0 %v1639, 67
    %v2036 = vpop.permute.xlu0 %2035
    %2037 = vrot.lane.b32.xlu0 %v1633, 67
    %v2038 = vpop.permute.xlu0 %2037
    %2039 = vrot.lane.b32.xlu0 %v1659, 67
    %v2040 = vpop.permute.xlu0 %2039
    %2041 = vrot.lane.b32.xlu0 %v1660, 67
    %v2042 = vpop.permute.xlu0 %2041
    %2043 = vrot.lane.b32.xlu0 %v1661, 67
    %v2044 = vpop.permute.xlu0 %2043
    %2045 = vrot.lane.b32.xlu0 %v1662, 67
    %v2046 = vpop.permute.xlu0 %2045
    %2047 = vrot.lane.b32.xlu0 %v1663, 67
    %v2048 = vpop.permute.xlu0 %2047
    %2049 = vrot.lane.b32.xlu0 %v1657, 67
    %v2050 = vpop.permute.xlu0 %2049
    %2051 = vrot.lane.b32.xlu0 %v1683, 67
    %v2052 = vpop.permute.xlu0 %2051
    %2053 = vrot.lane.b32.xlu0 %v1684, 67
    %v2054 = vpop.permute.xlu0 %2053
    %2055 = vrot.lane.b32.xlu0 %v1685, 67
    %v2056 = vpop.permute.xlu0 %2055
    %2057 = vrot.lane.b32.xlu0 %v1686, 67
    %v2058 = vpop.permute.xlu0 %2057
    %2059 = vrot.lane.b32.xlu0 %v1687, 67
    %v2060 = vpop.permute.xlu0 %2059
    %2061 = vrot.lane.b32.xlu0 %v1681, 67
    %v2062 = vpop.permute.xlu0 %2061
    %2063 = vrot.lane.b32.xlu0 %v1997, 67
    %v2064 = vpop.permute.xlu0 %2063
    %2065 = vrot.lane.b32.xlu0 %v1998, 67
    %v2066 = vpop.permute.xlu0 %2065
    %2067 = vrot.lane.b32.xlu0 %v1999, 67
    %v2068 = vpop.permute.xlu0 %2067
    %2069 = vrot.lane.b32.xlu0 %v2000, 67
    %v2070 = vpop.permute.xlu0 %2069
    %2071 = vrot.lane.b32.xlu0 %v2001, 67
    %v2072 = vpop.permute.xlu0 %2071
    %2073 = vrot.lane.b32.xlu0 %v2002, 67
    %v2074 = vpop.permute.xlu0 %2073
    %2075 = vrot.lane.b32.xlu0 %v1731, 67
    %v2076 = vpop.permute.xlu0 %2075
    %2077 = vrot.lane.b32.xlu0 %v1732, 67
    %v2078 = vpop.permute.xlu0 %2077
    %2079 = vrot.lane.b32.xlu0 %v1733, 67
    %v2080 = vpop.permute.xlu0 %2079
    %2081 = vrot.lane.b32.xlu0 %v1734, 67
    %v2082 = vpop.permute.xlu0 %2081
    %2083 = vrot.lane.b32.xlu0 %v1735, 67
    %v2084 = vpop.permute.xlu0 %2083
    %2085 = vrot.lane.b32.xlu0 %v2005, 67
    %v2086 = vpop.permute.xlu0 %2085
    %2087 = vrot.lane.b32.xlu0 %v1755, 67
    %v2088 = vpop.permute.xlu0 %2087
    %2089 = vrot.lane.b32.xlu0 %v1756, 67
    %v2090 = vpop.permute.xlu0 %2089
    %2091 = vrot.lane.b32.xlu0 %v1757, 67
    %v2092 = vpop.permute.xlu0 %2091
    %2093 = vrot.lane.b32.xlu0 %v1758, 67
    %v2094 = vpop.permute.xlu0 %2093
    %2095 = vrot.lane.b32.xlu0 %v1759, 67
    %v2096 = vpop.permute.xlu0 %2095
    %2097 = vrot.lane.b32.xlu0 %v2008, 67
    %v2098 = vpop.permute.xlu0 %2097
    %2099 = vrot.lane.b32.xlu0 %v1779, 67
    %v2100 = vpop.permute.xlu0 %2099
    %2101 = vrot.lane.b32.xlu0 %v1780, 67
    %v2102 = vpop.permute.xlu0 %2101
    %2103 = vrot.lane.b32.xlu0 %v1781, 67
    %v2104 = vpop.permute.xlu0 %2103
    %2105 = vrot.lane.b32.xlu0 %v1782, 67
    %v2106 = vpop.permute.xlu0 %2105
    %2107 = vrot.lane.b32.xlu0 %v1783, 67
    %v2108 = vpop.permute.xlu0 %2107
    %2109 = vrot.lane.b32.xlu0 %v2011, 67
    %v2110 = vpop.permute.xlu0 %2109
    %2111 = vrot.lane.b32.xlu0 %v1803, 67
    %v2112 = vpop.permute.xlu0 %2111
    %2113 = vrot.lane.b32.xlu0 %v1804, 67
    %v2114 = vpop.permute.xlu0 %2113
    %2115 = vrot.lane.b32.xlu0 %v1805, 67
    %v2116 = vpop.permute.xlu0 %2115
    %2117 = vrot.lane.b32.xlu0 %v1806, 67
    %v2118 = vpop.permute.xlu0 %2117
    %2119 = vrot.lane.b32.xlu0 %v1807, 67
    %v2120 = vpop.permute.xlu0 %2119
    %2121 = vrot.lane.b32.xlu0 %v2014, 67
    %v2122 = vpop.permute.xlu0 %2121
    %vm2123 = vcmask 547840
    %v2124 = vsel %vm2123, %v2016, %v2018
    %v2125 = vsel %vm2123, %v2018, %v2020
    %v2126 = vsel %vm2123, %v2020, %v2022
    %v2127 = vsel %vm2123, %v2022, %v2024
    %v2128 = vsel %vm2123, %v2024, %v2026
    %v2129 = vsel %vm2123, %v2028, %v2030
    %v2130 = vsel %vm2123, %v2030, %v2032
    %v2131 = vsel %vm2123, %v2032, %v2034
    %v2132 = vsel %vm2123, %v2034, %v2036
    %v2133 = vsel %vm2123, %v2036, %v2038
    %v2134 = vsel %vm2123, %v2040, %v2042
    %v2135 = vsel %vm2123, %v2042, %v2044
    %v2136 = vsel %vm2123, %v2044, %v2046
    %v2137 = vsel %vm2123, %v2046, %v2048
    %v2138 = vsel %vm2123, %v2048, %v2050
    %v2139 = vsel %vm2123, %v2052, %v2054
    %v2140 = vsel %vm2123, %v2054, %v2056
    %v2141 = vsel %vm2123, %v2056, %v2058
    %v2142 = vsel %vm2123, %v2058, %v2060
    %v2143 = vsel %vm2123, %v2060, %v2062
    %v2144 = vsel %vm2123, %v2064, %v2066
    %v2145 = vsel %vm2123, %v2066, %v2068
    %v2146 = vsel %vm2123, %v2068, %v2070
    %v2147 = vsel %vm2123, %v2070, %v2072
    %v2148 = vsel %vm2123, %v2072, %v2074
    %v2149 = vsel %vm2123, %v2076, %v2078
    %v2150 = vsel %vm2123, %v2078, %v2080
    %v2151 = vsel %vm2123, %v2080, %v2082
    %v2152 = vsel %vm2123, %v2082, %v2084
    %v2153 = vsel %vm2123, %v2084, %v2086
    %v2154 = vsel %vm2123, %v2088, %v2090
    %v2155 = vsel %vm2123, %v2090, %v2092
    %v2156 = vsel %vm2123, %v2092, %v2094
    %v2157 = vsel %vm2123, %v2094, %v2096
    %v2158 = vsel %vm2123, %v2096, %v2098
    %v2159 = vsel %vm2123, %v2100, %v2102
    %v2160 = vsel %vm2123, %v2102, %v2104
    %v2161 = vsel %vm2123, %v2104, %v2106
    %v2162 = vsel %vm2123, %v2106, %v2108
    %v2163 = vsel %vm2123, %v2108, %v2110
    %v2164 = vsel %vm2123, %v2112, %v2114
    %v2165 = vsel %vm2123, %v2114, %v2116
    %v2166 = vsel %vm2123, %v2116, %v2118
    %v2167 = vsel %vm2123, %v2118, %v2120
    %v2168 = vsel %vm2123, %v2120, %v2122
    %v2223 = vld [vmem:[%s4] sm:$0xff]
    %v2224 = vld [vmem:[%s4 + $0x8] sm:$0xff]
    %2226 = vset.pattern.permute.xlu0 0
    %2227 = vperm.xlu0 %2226, %v2223
    %v2228 = vpop.permute.xlu0 %2227
    %2231 = vset.pattern.permute.xlu0 0
    %2232 = vperm.xlu0 %2231, %v2224
    %v2233 = vpop.permute.xlu0 %2232
    %v2239 = vunpack.c.l.b16 %v1614
    %v2240 = vunpack.c.h.b16 %v1614
    %v2241 = vunpack.c.l.b16 %v1615
    %v2242 = vunpack.c.h.b16 %v1615
    %v2243 = vunpack.c.l.b16 %v1616
    %v2244 = vunpack.c.h.b16 %v1616
    %v2245 = vunpack.c.l.b16 %v1617
    %v2246 = vunpack.c.h.b16 %v1617
    %v2247 = vpack.c.b16 %v2243, %v2239
    %v2248 = vpack.c.b16 %v2244, %v2240
    %v2249 = vpack.c.b16 %v2245, %v2241
    %v2250 = vpack.c.b16 %v2246, %v2242
    %v2255 = vsel %vm1610, %v2250, 0
    %2257 = vmatprep.subr.bf16.mxu0 %v1488
    %2258 = vmatpush1.bf16.msra.mxu0 %v1470
    %2259 = vmatprep.subr.bf16.mxu0 %v1636
    %2260 = vmatpush1.bf16.msra.mxu0 %v1635
    %2261 = vmatprep.subr.bf16.mxu0 %v1660
    %2262 = vmatpush1.bf16.msra.mxu0 %v1659
    %2263 = vmatprep.subr.bf16.mxu0 %v1684
    %2264 = vmatpush1.bf16.msra.mxu0 %v1683
    %2265 = vmatprep.subr.bf16.mxu0 %v1708
    %2266 = vmatpush1.bf16.msra.mxu0 %v1707
    %2267 = vmatprep.subr.bf16.mxu0 %v1732
    %2268 = vmatpush1.bf16.msra.mxu0 %v1731
    %2269 = vmatprep.subr.bf16.mxu0 %v1756
    %2270 = vmatpush1.bf16.msra.mxu0 %v1755
    %2271 = vmatprep.subr.bf16.mxu0 %v1780
    %2272 = vmatpush1.bf16.msra.mxu0 %v1779
    %2273 = vmatprep.subr.bf16.mxu0 %v1804
    %2274 = vmatpush1.bf16.msra.mxu0 %v1803
    %2275 = vmatprep.subr.bf16.mxu0 %v1828
    %2276 = vmatpush1.bf16.msra.mxu0 %v1827
    %2277 = vmatprep.subr.bf16.mxu0 %v1852
    %2278 = vmatpush1.bf16.msra.mxu0 %v1851
    %2279 = vmatprep.subr.bf16.mxu0 %v1876
    %2280 = vmatpush1.bf16.msra.mxu0 %v1875
    %2281 = vmatprep.subr.bf16.mxu0 %v1900
    %2282 = vmatpush1.bf16.msra.mxu0 %v1899
    %2283 = vmatprep.subr.bf16.mxu0 %v1924
    %2284 = vmatpush1.bf16.msra.mxu0 %v1923
    %2285 = vmatprep.subr.bf16.mxu0 %v1948
    %2286 = vmatpush1.bf16.msra.mxu0 %v1947
    %2287 = vmatprep.subr.bf16.mxu0 %v1972
    %2288 = vmatpush1.bf16.msra.mxu0 %v1971
    %2289 = vmatprep.mubr.bf16.mxu0 %v2248
    %2290 = vmatmul.mubr.bf16.gmra.mrb[0].mxu0 %v2247
    %v2291 = vpop.f32.mrb[0].mxu0
    %v2292 = vadd.f32 %v2228, %v2291
    %v2293 = vpop.f32.mrb[0].mxu0
    %v2294 = vadd.f32 %v2228, %v2293
    %v2295 = vpop.f32.mrb[0].mxu0
    %v2296 = vadd.f32 %v2233, %v2295
    %v2297 = vpop.f32.mrb[0].mxu0
    %v2298 = vadd.f32 %v2233, %v2297
    %2299 = vdwg.mxu0
    %2300 = vmatprep.subr.bf16.mxu0 %v2125
    %2301 = vmatpush1.bf16.msra.mxu0 %v2124
    %2302 = vmatprep.subr.bf16.mxu0 %v2130
    %2303 = vmatpush1.bf16.msra.mxu0 %v2129
    %2304 = vmatprep.subr.bf16.mxu0 %v2135
    %2305 = vmatpush1.bf16.msra.mxu0 %v2134
    %2306 = vmatprep.subr.bf16.mxu0 %v2140
    %2307 = vmatpush1.bf16.msra.mxu0 %v2139
    %2308 = vmatprep.subr.bf16.mxu0 %v2145
    %2309 = vmatpush1.bf16.msra.mxu0 %v2144
    %2310 = vmatprep.subr.bf16.mxu0 %v2150
    %2311 = vmatpush1.bf16.msra.mxu0 %v2149
    %2312 = vmatprep.subr.bf16.mxu0 %v2155
    %2313 = vmatpush1.bf16.msra.mxu0 %v2154
    %2314 = vmatprep.subr.bf16.mxu0 %v2160
    %2315 = vmatpush1.bf16.msra.mxu0 %v2159
    %2316 = vmatprep.subr.bf16.mxu0 %v2165
    %2317 = vmatpush1.bf16.msra.mxu0 %v2164
    %2318 = vmatprep.subr.bf16.mxu0 0
    %2319 = vmatpush1.bf16.msra.mxu0 0
    %2320 = vmatprep.subr.bf16.mxu0 0
    %2321 = vmatpush1.bf16.msra.mxu0 0
    %2322 = vmatprep.subr.bf16.mxu0 0
    %2323 = vmatpush1.bf16.msra.mxu0 0
    %2324 = vmatprep.subr.bf16.mxu0 0
    %2325 = vmatpush1.bf16.msra.mxu0 0
    %2326 = vmatprep.subr.bf16.mxu0 0
    %2327 = vmatpush1.bf16.msra.mxu0 0
    %2328 = vmatprep.subr.bf16.mxu0 0
    %2329 = vmatpush1.bf16.msra.mxu0 0
    %2330 = vmatprep.subr.bf16.mxu0 0
    %2331 = vmatpush1.bf16.msra.mxu0 0
    %2332 = vmatprep.mubr.bf16.mxu0 %v2255
    %2333 = vmatmul.mubr.bf16.gmra.mrb[0].mxu0 %v2249
    %v2334 = vpop.f32.mrb[0].mxu0
    %v2335 = vadd.f32 %v2292, %v2334
    %v2336 = vpop.f32.mrb[0].mxu0
    %v2337 = vadd.f32 %v2294, %v2336
    %v2338 = vpop.f32.mrb[0].mxu0
    %v2339 = vadd.f32 %v2296, %v2338
    %v2340 = vpop.f32.mrb[0].mxu0
    %v2341 = vadd.f32 %v2298, %v2340
    %2342 = vdwg.mxu0
    %2343 = vmatprep.subr.bf16.mxu0 %v1612
    %2344 = vmatpush1.bf16.msra.mxu0 %v1510
    %2345 = vmatprep.subr.bf16.mxu0 %v1638
    %2346 = vmatpush1.bf16.msra.mxu0 %v1637
    %2347 = vmatprep.subr.bf16.mxu0 %v1662
    %2348 = vmatpush1.bf16.msra.mxu0 %v1661
    %2349 = vmatprep.subr.bf16.mxu0 %v1686
    %2350 = vmatpush1.bf16.msra.mxu0 %v1685
    %2351 = vmatprep.subr.bf16.mxu0 %v1710
    %2352 = vmatpush1.bf16.msra.mxu0 %v1709
    %2353 = vmatprep.subr.bf16.mxu0 %v1734
    %2354 = vmatpush1.bf16.msra.mxu0 %v1733
    %2355 = vmatprep.subr.bf16.mxu0 %v1758
    %2356 = vmatpush1.bf16.msra.mxu0 %v1757
    %2357 = vmatprep.subr.bf16.mxu0 %v1782
    %2358 = vmatpush1.bf16.msra.mxu0 %v1781
    %2359 = vmatprep.subr.bf16.mxu0 %v1806
    %2360 = vmatpush1.bf16.msra.mxu0 %v1805
    %2361 = vmatprep.subr.bf16.mxu0 %v1830
    %2362 = vmatpush1.bf16.msra.mxu0 %v1829
    %2363 = vmatprep.subr.bf16.mxu0 %v1854
    %2364 = vmatpush1.bf16.msra.mxu0 %v1853
    %2365 = vmatprep.subr.bf16.mxu0 %v1878
    %2366 = vmatpush1.bf16.msra.mxu0 %v1877
    %2367 = vmatprep.subr.bf16.mxu0 %v1902
    %2368 = vmatpush1.bf16.msra.mxu0 %v1901
    %2369 = vmatprep.subr.bf16.mxu0 %v1926
    %2370 = vmatpush1.bf16.msra.mxu0 %v1925
    %2371 = vmatprep.subr.bf16.mxu0 %v1950
    %2372 = vmatpush1.bf16.msra.mxu0 %v1949
    %2373 = vmatprep.subr.bf16.mxu0 %v1974
    %2374 = vmatpush1.bf16.msra.mxu0 %v1973
    %2375 = vmatprep.mubr.bf16.mxu0 %v2248
    %2376 = vmatmul.mubr.bf16.gmra.mrb[0].mxu0 %v2247
    %v2377 = vpop.f32.mrb[0].mxu0
    %v2378 = vadd.f32 %v2228, %v2377
    %v2379 = vpop.f32.mrb[0].mxu0
    %v2380 = vadd.f32 %v2228, %v2379
    %v2381 = vpop.f32.mrb[0].mxu0
    %v2382 = vadd.f32 %v2233, %v2381
    %v2383 = vpop.f32.mrb[0].mxu0
    %v2384 = vadd.f32 %v2233, %v2383
    %2385 = vdwg.mxu0
    %2386 = vmatprep.subr.bf16.mxu0 %v2127
    %2387 = vmatpush1.bf16.msra.mxu0 %v2126
    %2388 = vmatprep.subr.bf16.mxu0 %v2132
    %2389 = vmatpush1.bf16.msra.mxu0 %v2131
    %2390 = vmatprep.subr.bf16.mxu0 %v2137
    %2391 = vmatpush1.bf16.msra.mxu0 %v2136
    %2392 = vmatprep.subr.bf16.mxu0 %v2142
    %2393 = vmatpush1.bf16.msra.mxu0 %v2141
    %2394 = vmatprep.subr.bf16.mxu0 %v2147
    %2395 = vmatpush1.bf16.msra.mxu0 %v2146
    %2396 = vmatprep.subr.bf16.mxu0 %v2152
    %2397 = vmatpush1.bf16.msra.mxu0 %v2151
    %2398 = vmatprep.subr.bf16.mxu0 %v2157
    %2399 = vmatpush1.bf16.msra.mxu0 %v2156
    %2400 = vmatprep.subr.bf16.mxu0 %v2162
    %2401 = vmatpush1.bf16.msra.mxu0 %v2161
    %2402 = vmatprep.subr.bf16.mxu0 %v2167
    %2403 = vmatpush1.bf16.msra.mxu0 %v2166
    %2404 = vmatprep.subr.bf16.mxu0 0
    %2405 = vmatpush1.bf16.msra.mxu0 0
    %2406 = vmatprep.subr.bf16.mxu0 0
    %2407 = vmatpush1.bf16.msra.mxu0 0
    %2408 = vmatprep.subr.bf16.mxu0 0
    %2409 = vmatpush1.bf16.msra.mxu0 0
    %2410 = vmatprep.subr.bf16.mxu0 0
    %2411 = vmatpush1.bf16.msra.mxu0 0
    %2412 = vmatprep.subr.bf16.mxu0 0
    %2413 = vmatpush1.bf16.msra.mxu0 0
    %2414 = vmatprep.subr.bf16.mxu0 0
    %2415 = vmatpush1.bf16.msra.mxu0 0
    %2416 = vmatprep.subr.bf16.mxu0 0
    %2417 = vmatpush1.bf16.msra.mxu0 0
    %2418 = vmatprep.mubr.bf16.mxu0 %v2255
    %2419 = vmatmul.mubr.bf16.gmra.mrb[0].mxu0 %v2249
    %v2420 = vpop.f32.mrb[0].mxu0
    %v2421 = vadd.f32 %v2378, %v2420
    %v2422 = vpop.f32.mrb[0].mxu0
    %v2423 = vadd.f32 %v2380, %v2422
    %v2424 = vpop.f32.mrb[0].mxu0
    %v2425 = vadd.f32 %v2382, %v2424
    %v2426 = vpop.f32.mrb[0].mxu0
    %v2427 = vadd.f32 %v2384, %v2426
    %2428 = vdwg.mxu0
    %2429 = vmatprep.subr.bf16.mxu0 %v1606
    %2430 = vmatpush1.bf16.msra.mxu0 %v1605
    %2431 = vmatprep.subr.bf16.mxu0 %v1633
    %2432 = vmatpush1.bf16.msra.mxu0 %v1639
    %2433 = vmatprep.subr.bf16.mxu0 %v1657
    %2434 = vmatpush1.bf16.msra.mxu0 %v1663
    %2435 = vmatprep.subr.bf16.mxu0 %v1681
    %2436 = vmatpush1.bf16.msra.mxu0 %v1687
    %2437 = vmatprep.subr.bf16.mxu0 %v1705
    %2438 = vmatpush1.bf16.msra.mxu0 %v1711
    %2439 = vmatprep.subr.bf16.mxu0 %v1729
    %2440 = vmatpush1.bf16.msra.mxu0 %v1735
    %2441 = vmatprep.subr.bf16.mxu0 %v1753
    %2442 = vmatpush1.bf16.msra.mxu0 %v1759
    %2443 = vmatprep.subr.bf16.mxu0 %v1777
    %2444 = vmatpush1.bf16.msra.mxu0 %v1783
    %2445 = vmatprep.subr.bf16.mxu0 %v1801
    %2446 = vmatpush1.bf16.msra.mxu0 %v1807
    %2447 = vmatprep.subr.bf16.mxu0 %v1825
    %2448 = vmatpush1.bf16.msra.mxu0 %v1831
    %2449 = vmatprep.subr.bf16.mxu0 %v1849
    %2450 = vmatpush1.bf16.msra.mxu0 %v1855
    %2451 = vmatprep.subr.bf16.mxu0 %v1873
    %2452 = vmatpush1.bf16.msra.mxu0 %v1879
    %2453 = vmatprep.subr.bf16.mxu0 %v1897
    %2454 = vmatpush1.bf16.msra.mxu0 %v1903
    %2455 = vmatprep.subr.bf16.mxu0 %v1921
    %2456 = vmatpush1.bf16.msra.mxu0 %v1927
    %2457 = vmatprep.subr.bf16.mxu0 %v1945
    %2458 = vmatpush1.bf16.msra.mxu0 %v1951
    %2459 = vmatprep.subr.bf16.mxu0 %v1969
    %2460 = vmatpush1.bf16.msra.mxu0 %v1975
    %2461 = vmatprep.mubr.bf16.mxu0 %v2248
    %2462 = vmatmul.mubr.bf16.gmra.mrb[0].mxu0 %v2247
    %v2463 = vpop.f32.mrb[0].mxu0
    %v2464 = vadd.f32 %v2228, %v2463
    %v2465 = vpop.f32.mrb[0].mxu0
    %v2466 = vadd.f32 %v2228, %v2465
    %v2467 = vpop.f32.mrb[0].mxu0
    %v2468 = vadd.f32 %v2233, %v2467
    %v2469 = vpop.f32.mrb[0].mxu0
    %v2470 = vadd.f32 %v2233, %v2469
    %2471 = vdwg.mxu0
    %2472 = vmatprep.subr.bf16.mxu0 %v2026
    %2473 = vmatpush1.bf16.msra.mxu0 %v2128
    %2474 = vmatprep.subr.bf16.mxu0 %v2038
    %2475 = vmatpush1.bf16.msra.mxu0 %v2133
    %2476 = vmatprep.subr.bf16.mxu0 %v2050
    %2477 = vmatpush1.bf16.msra.mxu0 %v2138
    %2478 = vmatprep.subr.bf16.mxu0 %v2062
    %2479 = vmatpush1.bf16.msra.mxu0 %v2143
    %2480 = vmatprep.subr.bf16.mxu0 %v2074
    %2481 = vmatpush1.bf16.msra.mxu0 %v2148
    %2482 = vmatprep.subr.bf16.mxu0 %v2086
    %2483 = vmatpush1.bf16.msra.mxu0 %v2153
    %2484 = vmatprep.subr.bf16.mxu0 %v2098
    %2485 = vmatpush1.bf16.msra.mxu0 %v2158
    %2486 = vmatprep.subr.bf16.mxu0 %v2110
    %2487 = vmatpush1.bf16.msra.mxu0 %v2163
    %2488 = vmatprep.subr.bf16.mxu0 %v2122
    %2489 = vmatpush1.bf16.msra.mxu0 %v2168
    %2490 = vmatprep.subr.bf16.mxu0 0
    %2491 = vmatpush1.bf16.msra.mxu0 0
    %2492 = vmatprep.subr.bf16.mxu0 0
    %2493 = vmatpush1.bf16.msra.mxu0 0
    %2494 = vmatprep.subr.bf16.mxu0 0
    %2495 = vmatpush1.bf16.msra.mxu0 0
    %2496 = vmatprep.subr.bf16.mxu0 0
    %2497 = vmatpush1.bf16.msra.mxu0 0
    %2498 = vmatprep.subr.bf16.mxu0 0
    %2499 = vmatpush1.bf16.msra.mxu0 0
    %2500 = vmatprep.subr.bf16.mxu0 0
    %2501 = vmatpush1.bf16.msra.mxu0 0
    %2502 = vmatprep.subr.bf16.mxu0 0
    %2503 = vmatpush1.bf16.msra.mxu0 0
    %2504 = vmatprep.mubr.bf16.mxu0 %v2255
    %2505 = vmatmul.mubr.bf16.gmra.mrb[0].mxu0 %v2249
    %v2506 = vpop.f32.mrb[0].mxu0
    %v2507 = vadd.f32 %v2464, %v2506
    %v2508 = vpop.f32.mrb[0].mxu0
    %v2509 = vadd.f32 %v2466, %v2508
    %v2510 = vpop.f32.mrb[0].mxu0
    %v2511 = vadd.f32 %v2468, %v2510
    %v2512 = vpop.f32.mrb[0].mxu0
    %v2513 = vadd.f32 %v2470, %v2512
    %2514 = vdwg.mxu0
    %v2515 = vmul.f32 %v2335, 0.5
    %v2516 = vmul.f32 %v2337, 0.5
    %v2517 = vmul.f32 %v2421, 0.5
    %v2518 = vmul.f32 %v2423, 0.5
    %v2519 = vmul.f32 %v2507, 0.5
    %v2520 = vmul.f32 %v2509, 0.5
    %v2521 = vmul.f32 %v2339, 0.5
    %v2522 = vmul.f32 %v2341, 0.5
    %v2523 = vmul.f32 %v2425, 0.5
    %v2524 = vmul.f32 %v2427, 0.5
    %v2525 = vmul.f32 %v2511, 0.5
    %v2526 = vmul.f32 %v2513, 0.5
    %v2527 = vtanh.pop %v2515
    %v2528 = vtanh.pop %v2516
    %v2529 = vtanh.pop %v2517
    %v2530 = vtanh.pop %v2518
    %v2531 = vtanh.pop %v2519
    %v2532 = vtanh.pop %v2520
    %v2533 = vtanh.pop %v2521
    %v2534 = vtanh.pop %v2522
    %v2535 = vtanh.pop %v2523
    %v2536 = vtanh.pop %v2524
    %v2537 = vtanh.pop %v2525
    %v2538 = vtanh.pop %v2526
    %v2539 = vmul.f32 %v2527, 0.5
    %v2540 = vmul.f32 %v2528, 0.5
    %v2541 = vmul.f32 %v2529, 0.5
    %v2542 = vmul.f32 %v2530, 0.5
    %v2543 = vmul.f32 %v2531, 0.5
    %v2544 = vmul.f32 %v2532, 0.5
    %v2545 = vmul.f32 %v2533, 0.5
    %v2546 = vmul.f32 %v2534, 0.5
    %v2547 = vmul.f32 %v2535, 0.5
    %v2548 = vmul.f32 %v2536, 0.5
    %v2549 = vmul.f32 %v2537, 0.5
    %v2550 = vmul.f32 %v2538, 0.5
    %v2551 = vadd.f32 %v2539, 0.5
    %v2552 = vadd.f32 %v2540, 0.5
    %v2553 = vadd.f32 %v2541, 0.5
    %v2554 = vadd.f32 %v2542, 0.5
    %v2555 = vadd.f32 %v2543, 0.5
    %v2556 = vadd.f32 %v2544, 0.5
    %v2557 = vadd.f32 %v2545, 0.5
    %v2558 = vadd.f32 %v2546, 0.5
    %v2559 = vadd.f32 %v2547, 0.5
    %v2560 = vadd.f32 %v2548, 0.5
    %v2561 = vadd.f32 %v2549, 0.5
    %v2562 = vadd.f32 %v2550, 0.5
    %v2563 = vpack.c.bf16 %v2557, %v2551
    %v2564 = vpack.c.bf16 %v2558, %v2552
    %v2565 = vpack.c.bf16 %v2559, %v2553
    %v2566 = vpack.c.bf16 %v2560, %v2554
    %v2567 = vpack.c.bf16 %v2561, %v2555
    %v2568 = vpack.c.bf16 %v2562, %v2556
    %2570 = vrot.lane.b32.xlu0 %v2563, 88
    %v2571 = vpop.permute.xlu0 %2570
    %2572 = vrot.lane.b32.xlu0 %v2563, 48
    %v2573 = vpop.permute.xlu0 %2572
    %2575 = vrot.lane.b32.xlu0 %v2563, 8
    %v2576 = vpop.permute.xlu0 %2575
    %2577 = vrot.lane.b32.xlu0 %v2564, 8
    %v2578 = vpop.permute.xlu0 %2577
    %v2579 = vsel %vm902, %v2576, %v2578
    %2580 = vrot.lane.b32.xlu0 %v2564, 96
    %v2581 = vpop.permute.xlu0 %2580
    %2582 = vrot.lane.b32.xlu0 %v2564, 56
    %v2583 = vpop.permute.xlu0 %2582
    %2584 = vrot.lane.b32.xlu0 %v2564, 16
    %v2585 = vpop.permute.xlu0 %2584
    %2587 = vrot.lane.b32.xlu0 %v2565, 104
    %v2588 = vpop.permute.xlu0 %2587
    %2590 = vrot.lane.b32.xlu0 %v2566, 112
    %v2591 = vpop.permute.xlu0 %2590
    %2592 = vrot.lane.b32.xlu0 %v2566, 72
    %v2593 = vpop.permute.xlu0 %2592
    %2594 = vrot.lane.b32.xlu0 %v2566, 32
    %v2595 = vpop.permute.xlu0 %2594
    %2597 = vrot.lane.b32.xlu0 %v2567, 120
    %v2598 = vpop.permute.xlu0 %2597
    %2599 = vrot.lane.b32.xlu0 %v2567, 80
    %v2600 = vpop.permute.xlu0 %2599
    %2601 = vrot.lane.b32.xlu0 %v2567, 40
    %v2602 = vpop.permute.xlu0 %2601
    %2604 = vrot.lane.b32.xlu0 %v2568, 88
    %v2605 = vpop.permute.xlu0 %2604
    %v2606 = vld [vmem:[%s10] sm:$0xf]
    %v2607 = vld [vmem:[%s10 + $0x4] sm:$0xf]
    %v2610 = vunpack.c.l.b16 %v2606
    %v2611 = vunpack.c.l.b16 %v2607
    %v2612 = vpack.c.b16 %v2611, %v2610
    %v2615 = vsel %vm1610, %v2563, 0
    %v2618 = vsel %vm1610, %v2571, 0
    %v2621 = vsel %vm1610, %v2573, 0
    %v2624 = vsel %vm1610, %v2579, 0
    %v2627 = vsel %vm1610, %v2581, 0
    %v2630 = vsel %vm1610, %v2583, 0
    %v2633 = vsel %vm1610, %v2585, 0
    %v2636 = vsel %vm1610, %v2588, 0
    %v2639 = vsel %vm1610, %v2591, 0
    %v2642 = vsel %vm1610, %v2593, 0
    %v2645 = vsel %vm1610, %v2595, 0
    %v2648 = vsel %vm1610, %v2598, 0
    %v2651 = vsel %vm1610, %v2600, 0
    %v2654 = vsel %vm1610, %v2602, 0
    %v2657 = vsel %vm1610, %v2568, 0
    %v2660 = vsel %vm1610, %v2605, 0
    %2662 = vmatprep.subr.bf16.mxu0 0
    %2663 = vmatpush1.bf16.msra.mxu0 %v2612
    %2664 = vmatprep.subr.bf16.mxu0 0
    %2665 = vmatpush1.bf16.msra.mxu0 0
    %2666 = vmatprep.subr.bf16.mxu0 0
    %2667 = vmatpush1.bf16.msra.mxu0 0
    %2668 = vmatprep.subr.bf16.mxu0 0
    %2669 = vmatpush1.bf16.msra.mxu0 0
    %2670 = vmatprep.subr.bf16.mxu0 0
    %2671 = vmatpush1.bf16.msra.mxu0 0
    %2672 = vmatprep.subr.bf16.mxu0 0
    %2673 = vmatpush1.bf16.msra.mxu0 0
    %2674 = vmatprep.subr.bf16.mxu0 0
    %2675 = vmatpush1.bf16.msra.mxu0 0
    %2676 = vmatprep.subr.bf16.mxu0 0
    %2677 = vmatpush1.bf16.msra.mxu0 0
    %2678 = vmatprep.subr.bf16.mxu0 0
    %2679 = vmatpush1.bf16.msra.mxu0 0
    %2680 = vmatprep.subr.bf16.mxu0 0
    %2681 = vmatpush1.bf16.msra.mxu0 0
    %2682 = vmatprep.subr.bf16.mxu0 0
    %2683 = vmatpush1.bf16.msra.mxu0 0
    %2684 = vmatprep.subr.bf16.mxu0 0
    %2685 = vmatpush1.bf16.msra.mxu0 0
    %2686 = vmatprep.subr.bf16.mxu0 0
    %2687 = vmatpush1.bf16.msra.mxu0 0
    %2688 = vmatprep.subr.bf16.mxu0 0
    %2689 = vmatpush1.bf16.msra.mxu0 0
    %2690 = vmatprep.subr.bf16.mxu0 0
    %2691 = vmatpush1.bf16.msra.mxu0 0
    %2692 = vmatprep.subr.bf16.mxu0 0
    %2693 = vmatpush1.bf16.msra.mxu0 0
    %2694 = vmatprep.mubr.bf16.mxu0 0
    %2695 = vmatmul.mubr.bf16.gmra.mrb[0].mxu0 %v2615
    %v2696 = vpop.f32.mrb[0].mxu0
    %v2697 = vadd.f32 0.0, %v2696
    %v2698 = vpop.f32.mrb[0].mxu0
    %v2699 = vpop.f32.mrb[0].mxu0
    %v2700 = vadd.f32 0.0, %v2699
    %v2701 = vpop.f32.mrb[0].mxu0
    %2702 = vmatprep.mubr.bf16.mxu0 0
    %2703 = vmatmul.mubr.bf16.gmra.mrb[0].mxu0 %v2618
    %v2704 = vpop.f32.mrb[0].mxu0
    %v2705 = vadd.f32 0.0, %v2704
    %v2706 = vpop.f32.mrb[0].mxu0
    %v2707 = vpop.f32.mrb[0].mxu0
    %v2708 = vadd.f32 0.0, %v2707
    %v2709 = vpop.f32.mrb[0].mxu0
    %2710 = vmatprep.mubr.bf16.mxu0 0
    %2711 = vmatmul.mubr.bf16.gmra.mrb[0].mxu0 %v2621
    %v2712 = vpop.f32.mrb[0].mxu0
    %v2713 = vadd.f32 0.0, %v2712
    %v2714 = vpop.f32.mrb[0].mxu0
    %v2715 = vpop.f32.mrb[0].mxu0
    %v2716 = vadd.f32 0.0, %v2715
    %v2717 = vpop.f32.mrb[0].mxu0
    %2718 = vmatprep.mubr.bf16.mxu0 0
    %2719 = vmatmul.mubr.bf16.gmra.mrb[0].mxu0 %v2624
    %v2720 = vpop.f32.mrb[0].mxu0
    %v2721 = vadd.f32 0.0, %v2720
    %v2722 = vpop.f32.mrb[0].mxu0
    %v2723 = vpop.f32.mrb[0].mxu0
    %v2724 = vadd.f32 0.0, %v2723
    %v2725 = vpop.f32.mrb[0].mxu0
    %2726 = vmatprep.mubr.bf16.mxu0 0
    %2727 = vmatmul.mubr.bf16.gmra.mrb[0].mxu0 %v2627
    %v2728 = vpop.f32.mrb[0].mxu0
    %v2729 = vadd.f32 0.0, %v2728
    %v2730 = vpop.f32.mrb[0].mxu0
    %v2731 = vpop.f32.mrb[0].mxu0
    %v2732 = vadd.f32 0.0, %v2731
    %v2733 = vpop.f32.mrb[0].mxu0
    %2734 = vmatprep.mubr.bf16.mxu0 0
    %2735 = vmatmul.mubr.bf16.gmra.mrb[0].mxu0 %v2630
    %v2736 = vpop.f32.mrb[0].mxu0
    %v2737 = vadd.f32 0.0, %v2736
    %v2738 = vpop.f32.mrb[0].mxu0
    %v2739 = vpop.f32.mrb[0].mxu0
    %v2740 = vadd.f32 0.0, %v2739
    %v2741 = vpop.f32.mrb[0].mxu0
    %2742 = vmatprep.mubr.bf16.mxu0 0
    %2743 = vmatmul.mubr.bf16.gmra.mrb[0].mxu0 %v2633
    %v2744 = vpop.f32.mrb[0].mxu0
    %v2745 = vadd.f32 0.0, %v2744
    %v2746 = vpop.f32.mrb[0].mxu0
    %v2747 = vpop.f32.mrb[0].mxu0
    %v2748 = vadd.f32 0.0, %v2747
    %v2749 = vpop.f32.mrb[0].mxu0
    %2750 = vmatprep.mubr.bf16.mxu0 0
    %2751 = vmatmul.mubr.bf16.gmra.mrb[0].mxu0 %v2636
    %v2752 = vpop.f32.mrb[0].mxu0
    %v2753 = vadd.f32 0.0, %v2752
    %v2754 = vpop.f32.mrb[0].mxu0
    %v2755 = vpop.f32.mrb[0].mxu0
    %v2756 = vadd.f32 0.0, %v2755
    %v2757 = vpop.f32.mrb[0].mxu0
    %2758 = vmatprep.mubr.bf16.mxu0 0
    %2759 = vmatmul.mubr.bf16.gmra.mrb[0].mxu0 %v2639
    %v2760 = vpop.f32.mrb[0].mxu0
    %v2761 = vadd.f32 0.0, %v2760
    %v2762 = vpop.f32.mrb[0].mxu0
    %v2763 = vpop.f32.mrb[0].mxu0
    %v2764 = vadd.f32 0.0, %v2763
    %v2765 = vpop.f32.mrb[0].mxu0
    %2766 = vmatprep.mubr.bf16.mxu0 0
    %2767 = vmatmul.mubr.bf16.gmra.mrb[0].mxu0 %v2642
    %v2768 = vpop.f32.mrb[0].mxu0
    %v2769 = vadd.f32 0.0, %v2768
    %v2770 = vpop.f32.mrb[0].mxu0
    %v2771 = vpop.f32.mrb[0].mxu0
    %v2772 = vadd.f32 0.0, %v2771
    %v2773 = vpop.f32.mrb[0].mxu0
    %2774 = vmatprep.mubr.bf16.mxu0 0
    %2775 = vmatmul.mubr.bf16.gmra.mrb[0].mxu0 %v2645
    %v2776 = vpop.f32.mrb[0].mxu0
    %v2777 = vadd.f32 0.0, %v2776
    %v2778 = vpop.f32.mrb[0].mxu0
    %v2779 = vpop.f32.mrb[0].mxu0
    %v2780 = vadd.f32 0.0, %v2779
    %v2781 = vpop.f32.mrb[0].mxu0
    %2782 = vmatprep.mubr.bf16.mxu0 0
    %2783 = vmatmul.mubr.bf16.gmra.mrb[0].mxu0 %v2648
    %v2784 = vpop.f32.mrb[0].mxu0
    %v2785 = vadd.f32 0.0, %v2784
    %v2786 = vpop.f32.mrb[0].mxu0
    %v2787 = vpop.f32.mrb[0].mxu0
    %v2788 = vadd.f32 0.0, %v2787
    %v2789 = vpop.f32.mrb[0].mxu0
    %2790 = vmatprep.mubr.bf16.mxu0 0
    %2791 = vmatmul.mubr.bf16.gmra.mrb[0].mxu0 %v2651
    %v2792 = vpop.f32.mrb[0].mxu0
    %v2793 = vadd.f32 0.0, %v2792
    %v2794 = vpop.f32.mrb[0].mxu0
    %v2795 = vpop.f32.mrb[0].mxu0
    %v2796 = vadd.f32 0.0, %v2795
    %v2797 = vpop.f32.mrb[0].mxu0
    %2798 = vmatprep.mubr.bf16.mxu0 0
    %2799 = vmatmul.mubr.bf16.gmra.mrb[0].mxu0 %v2654
    %v2800 = vpop.f32.mrb[0].mxu0
    %v2801 = vadd.f32 0.0, %v2800
    %v2802 = vpop.f32.mrb[0].mxu0
    %v2803 = vpop.f32.mrb[0].mxu0
    %v2804 = vadd.f32 0.0, %v2803
    %v2805 = vpop.f32.mrb[0].mxu0
    %2806 = vmatprep.mubr.bf16.mxu0 0
    %2807 = vmatmul.mubr.bf16.gmra.mrb[0].mxu0 %v2657
    %v2808 = vpop.f32.mrb[0].mxu0
    %v2809 = vadd.f32 0.0, %v2808
    %v2810 = vpop.f32.mrb[0].mxu0
    %v2811 = vpop.f32.mrb[0].mxu0
    %v2812 = vadd.f32 0.0, %v2811
    %v2813 = vpop.f32.mrb[0].mxu0
    %2814 = vmatprep.mubr.bf16.mxu0 0
    %2815 = vmatmul.mubr.bf16.gmra.mrb[0].mxu0 %v2660
    %v2816 = vpop.f32.mrb[0].mxu0
    %v2817 = vadd.f32 0.0, %v2816
    %v2818 = vpop.f32.mrb[0].mxu0
    %v2819 = vpop.f32.mrb[0].mxu0
    %v2820 = vadd.f32 0.0, %v2819
    %v2821 = vpop.f32.mrb[0].mxu0
    %2822 = vdwg.mxu0
    %v2823 = vpack.c.bf16 %v2700, %v2697
    %v2824 = vpack.c.bf16 %v2708, %v2705
    %v2825 = vpack.c.bf16 %v2716, %v2713
    %v2826 = vpack.c.bf16 %v2724, %v2721
    %v2827 = vpack.c.bf16 %v2732, %v2729
    %v2828 = vpack.c.bf16 %v2740, %v2737
    %v2829 = vpack.c.bf16 %v2748, %v2745
    %v2830 = vpack.c.bf16 %v2756, %v2753
    %v2831 = vpack.c.bf16 %v2764, %v2761
    %v2832 = vpack.c.bf16 %v2772, %v2769
    %v2833 = vpack.c.bf16 %v2780, %v2777
    %v2834 = vpack.c.bf16 %v2788, %v2785
    %v2835 = vpack.c.bf16 %v2796, %v2793
    %v2836 = vpack.c.bf16 %v2804, %v2801
    %v2837 = vpack.c.bf16 %v2812, %v2809
    %v2838 = vpack.c.bf16 %v2820, %v2817
    %2840 = vrot.lane.b32.xlu0 %v2823, 24
    %v2841 = vpop.permute.xlu0 %2840
    %2843 = vrot.lane.b32.xlu0 %v2824, 36
    %v2844 = vpop.permute.xlu0 %2843
    %2846 = vrot.lane.b32.xlu0 %v2825, 48
    %v2847 = vpop.permute.xlu0 %2846
    %2849 = vrot.lane.b32.xlu0 %v2826, 60
    %v2850 = vpop.permute.xlu0 %2849
    %2852 = vrot.lane.b32.xlu0 %v2827, 72
    %v2853 = vpop.permute.xlu0 %2852
    %2855 = vrot.lane.b32.xlu0 %v2828, 84
    %v2856 = vpop.permute.xlu0 %2855
    %2858 = vrot.lane.b32.xlu0 %v2829, 96
    %v2859 = vpop.permute.xlu0 %2858
    %2861 = vrot.lane.b32.xlu0 %v2830, 108
    %v2862 = vpop.permute.xlu0 %2861
    %v2864 = vsel %vm1493, 0, %v2841
    %vm2865 = vcmask 293888
    %v2867 = vsel %vm2865, %v2864, %v2844
    %vm2868 = vcmask 392192
    %v2870 = vsel %vm2868, %v2867, %v2847
    %v2872 = vsel %vm1459, %v2870, %v2850
    %v2874 = vsel %vm1480, %v2872, %v2853
    %v2876 = vsel %vm1508, %v2874, %v2856
    %vm2877 = vcmask 785408
    %v2879 = vsel %vm2877, %v2876, %v2859
    %vm2880 = vcmask 883712
    %v2882 = vsel %vm2880, %v2879, %v2862
    %v2883 = vsel %vm1468, %v2882, 0
    %2886 = vrot.lane.b32.xlu0 %v2831, 24
    %v2887 = vpop.permute.xlu0 %2886
    %2889 = vrot.lane.b32.xlu0 %v2832, 36
    %v2890 = vpop.permute.xlu0 %2889
    %2892 = vrot.lane.b32.xlu0 %v2833, 48
    %v2893 = vpop.permute.xlu0 %2892
    %2895 = vrot.lane.b32.xlu0 %v2834, 60
    %v2896 = vpop.permute.xlu0 %2895
    %2898 = vrot.lane.b32.xlu0 %v2835, 72
    %v2899 = vpop.permute.xlu0 %2898
    %2901 = vrot.lane.b32.xlu0 %v2836, 84
    %v2902 = vpop.permute.xlu0 %2901
    %2904 = vrot.lane.b32.xlu0 %v2837, 96
    %v2905 = vpop.permute.xlu0 %2904
    %2907 = vrot.lane.b32.xlu0 %v2838, 108
    %v2908 = vpop.permute.xlu0 %2907
    %v2910 = vsel %vm1493, 0, %v2887
    %v2912 = vsel %vm2865, %v2910, %v2890
    %v2914 = vsel %vm2868, %v2912, %v2893
    %v2916 = vsel %vm1459, %v2914, %v2896
    %v2918 = vsel %vm1480, %v2916, %v2899
    %v2920 = vsel %vm1508, %v2918, %v2902
    %v2922 = vsel %vm2877, %v2920, %v2905
    %v2924 = vsel %vm2880, %v2922, %v2908
    %v2925 = vsel %vm1468, %v2924, 0
    %2928 = vrot.lane.b32.xlu0 %v2925, 16
    %v2929 = vpop.permute.xlu0 %2928
    %2930 = vrot.lane.b32.xlu0 0, 16
    %v2931 = vpop.permute.xlu0 %2930
    %v2932 = vsel %vm924, %v2929, %v2931
    %v2934 = vsel %vm1610, 0, %v2929
    %v2936 = vld [vmem:[%s5] sm:$0xff]
    %v2937 = vld [vmem:[%s5 + $0x8] sm:$0xff]
    %v2938 = vld [vmem:[%s5 + $0x10] sm:$0xff]
    %v2939 = vld [vmem:[%s5 + $0x18] sm:$0xff]
    %2942 = vrot.lane.b32.xlu0 %v2883, 127
    %v2943 = vpop.permute.xlu0 %2942
    %2944 = vrot.lane.b32.xlu0 %v2934, 127
    %v2945 = vpop.permute.xlu0 %2944
    %v2946 = vsel %vm1634, %v2943, %v2945
    %2949 = vrot.lane.b32.xlu0 %v2883, 126
    %v2950 = vpop.permute.xlu0 %2949
    %2951 = vrot.lane.b32.xlu0 %v2934, 126
    %v2952 = vpop.permute.xlu0 %2951
    %v2953 = vsel %vm1658, %v2950, %v2952
    %2956 = vrot.lane.b32.xlu0 %v2883, 125
    %v2957 = vpop.permute.xlu0 %2956
    %2958 = vrot.lane.b32.xlu0 %v2934, 125
    %v2959 = vpop.permute.xlu0 %2958
    %v2960 = vsel %vm1682, %v2957, %v2959
    %2963 = vrot.lane.b32.xlu0 %v2883, 124
    %v2964 = vpop.permute.xlu0 %2963
    %2965 = vrot.lane.b32.xlu0 %v2934, 124
    %v2966 = vpop.permute.xlu0 %2965
    %v2967 = vsel %vm1706, %v2964, %v2966
    %2970 = vrot.lane.b32.xlu0 %v2883, 116
    %v2971 = vpop.permute.xlu0 %2970
    %2972 = vrot.lane.b32.xlu0 %v2934, 116
    %v2973 = vpop.permute.xlu0 %2972
    %vm2974 = vcmask 949248
    %v2975 = vsel %vm2974, %v2971, %v2973
    %2978 = vrot.lane.b32.xlu0 %v2883, 115
    %v2979 = vpop.permute.xlu0 %2978
    %2980 = vrot.lane.b32.xlu0 %v2934, 115
    %v2981 = vpop.permute.xlu0 %2980
    %vm2982 = vcmask 941056
    %v2983 = vsel %vm2982, %v2979, %v2981
    %2986 = vrot.lane.b32.xlu0 %v2883, 114
    %v2987 = vpop.permute.xlu0 %2986
    %2988 = vrot.lane.b32.xlu0 %v2934, 114
    %v2989 = vpop.permute.xlu0 %2988
    %vm2990 = vcmask 932864
    %v2991 = vsel %vm2990, %v2987, %v2989
    %2994 = vrot.lane.b32.xlu0 %v2883, 113
    %v2995 = vpop.permute.xlu0 %2994
    %2996 = vrot.lane.b32.xlu0 %v2934, 113
    %v2997 = vpop.permute.xlu0 %2996
    %vm2998 = vcmask 924672
    %v2999 = vsel %vm2998, %v2995, %v2997
    %3002 = vrot.lane.b32.xlu0 %v2883, 112
    %v3003 = vpop.permute.xlu0 %3002
    %3004 = vrot.lane.b32.xlu0 %v2934, 112
    %v3005 = vpop.permute.xlu0 %3004
    %vm3006 = vcmask 916480
    %v3007 = vsel %vm3006, %v3003, %v3005
    %3010 = vrot.lane.b32.xlu0 %v2883, 104
    %v3011 = vpop.permute.xlu0 %3010
    %3012 = vrot.lane.b32.xlu0 %v2934, 104
    %v3013 = vpop.permute.xlu0 %3012
    %3014 = vrot.lane.b32.xlu0 %v2932, 104
    %v3015 = vpop.permute.xlu0 %3014
    %v3016 = vsel %vm1826, %v3011, %v3013
    %v3017 = vsel %vm1826, %v3013, %v3015
    %3020 = vrot.lane.b32.xlu0 %v2883, 103
    %v3021 = vpop.permute.xlu0 %3020
    %3022 = vrot.lane.b32.xlu0 %v2934, 103
    %v3023 = vpop.permute.xlu0 %3022
    %3024 = vrot.lane.b32.xlu0 %v2932, 103
    %v3025 = vpop.permute.xlu0 %3024
    %vm3026 = vcmask 842752
    %v3027 = vsel %vm3026, %v3021, %v3023
    %v3028 = vsel %vm3026, %v3023, %v3025
    %3031 = vrot.lane.b32.xlu0 %v2883, 102
    %v3032 = vpop.permute.xlu0 %3031
    %3033 = vrot.lane.b32.xlu0 %v2934, 102
    %v3034 = vpop.permute.xlu0 %3033
    %3035 = vrot.lane.b32.xlu0 %v2932, 102
    %v3036 = vpop.permute.xlu0 %3035
    %vm3037 = vcmask 834560
    %v3038 = vsel %vm3037, %v3032, %v3034
    %v3039 = vsel %vm3037, %v3034, %v3036
    %3042 = vrot.lane.b32.xlu0 %v2883, 101
    %v3043 = vpop.permute.xlu0 %3042
    %3044 = vrot.lane.b32.xlu0 %v2934, 101
    %v3045 = vpop.permute.xlu0 %3044
    %3046 = vrot.lane.b32.xlu0 %v2932, 101
    %v3047 = vpop.permute.xlu0 %3046
    %vm3048 = vcmask 826368
    %v3049 = vsel %vm3048, %v3043, %v3045
    %v3050 = vsel %vm3048, %v3045, %v3047
    %3053 = vrot.lane.b32.xlu0 %v2883, 100
    %v3054 = vpop.permute.xlu0 %3053
    %3055 = vrot.lane.b32.xlu0 %v2934, 100
    %v3056 = vpop.permute.xlu0 %3055
    %3057 = vrot.lane.b32.xlu0 %v2932, 100
    %v3058 = vpop.permute.xlu0 %3057
    %vm3059 = vcmask 818176
    %v3060 = vsel %vm3059, %v3054, %v3056
    %v3061 = vsel %vm3059, %v3056, %v3058
    %3064 = vrot.lane.b32.xlu0 %v2883, 92
    %v3065 = vpop.permute.xlu0 %3064
    %3066 = vrot.lane.b32.xlu0 %v2934, 92
    %v3067 = vpop.permute.xlu0 %3066
    %3068 = vrot.lane.b32.xlu0 %v2932, 92
    %v3069 = vpop.permute.xlu0 %3068
    %vm3070 = vcmask 752640
    %v3071 = vsel %vm3070, %v3065, %v3067
    %v3072 = vsel %vm3070, %v3067, %v3069
    %3075 = vrot.lane.b32.xlu0 %v2932, 127
    %v3076 = vpop.permute.xlu0 %3075
    %v3077 = vsel %vm1634, %v2945, %v3076
    %3078 = vrot.lane.b32.xlu0 %v2932, 126
    %v3079 = vpop.permute.xlu0 %3078
    %v3080 = vsel %vm1658, %v2952, %v3079
    %3081 = vrot.lane.b32.xlu0 %v2932, 125
    %v3082 = vpop.permute.xlu0 %3081
    %v3083 = vsel %vm1682, %v2959, %v3082
    %3084 = vrot.lane.b32.xlu0 %v2883, 117
    %v3085 = vpop.permute.xlu0 %3084
    %3086 = vrot.lane.b32.xlu0 %v2934, 117
    %v3087 = vpop.permute.xlu0 %3086
    %3088 = vrot.lane.b32.xlu0 %v2932, 117
    %v3089 = vpop.permute.xlu0 %3088
    %vm3090 = vcmask 957440
    %v3091 = vsel %vm3090, %v3085, %v3087
    %v3092 = vsel %vm3090, %v3087, %v3089
    %3093 = vrot.lane.b32.xlu0 %v2932, 116
    %v3094 = vpop.permute.xlu0 %3093
    %v3095 = vsel %vm2974, %v2973, %v3094
    %3096 = vrot.lane.b32.xlu0 %v2932, 115
    %v3097 = vpop.permute.xlu0 %3096
    %v3098 = vsel %vm2982, %v2981, %v3097
    %3099 = vrot.lane.b32.xlu0 %v2932, 114
    %v3100 = vpop.permute.xlu0 %3099
    %v3101 = vsel %vm2990, %v2989, %v3100
    %3102 = vrot.lane.b32.xlu0 %v2932, 113
    %v3103 = vpop.permute.xlu0 %3102
    %v3104 = vsel %vm2998, %v2997, %v3103
    %3105 = vrot.lane.b32.xlu0 %v2883, 91
    %v3106 = vpop.permute.xlu0 %3105
    %3107 = vrot.lane.b32.xlu0 %v2934, 91
    %v3108 = vpop.permute.xlu0 %3107
    %3109 = vrot.lane.b32.xlu0 %v2932, 91
    %v3110 = vpop.permute.xlu0 %3109
    %3111 = vrot.lane.b32.xlu0 %v2946, 91
    %v3112 = vpop.permute.xlu0 %3111
    %3113 = vrot.lane.b32.xlu0 %v3077, 91
    %v3114 = vpop.permute.xlu0 %3113
    %3115 = vrot.lane.b32.xlu0 %v3076, 91
    %v3116 = vpop.permute.xlu0 %3115
    %3117 = vrot.lane.b32.xlu0 %v2953, 91
    %v3118 = vpop.permute.xlu0 %3117
    %3119 = vrot.lane.b32.xlu0 %v3080, 91
    %v3120 = vpop.permute.xlu0 %3119
    %3121 = vrot.lane.b32.xlu0 %v3079, 91
    %v3122 = vpop.permute.xlu0 %3121
    %3123 = vrot.lane.b32.xlu0 %v2960, 91
    %v3124 = vpop.permute.xlu0 %3123
    %3125 = vrot.lane.b32.xlu0 %v3083, 91
    %v3126 = vpop.permute.xlu0 %3125
    %3127 = vrot.lane.b32.xlu0 %v3082, 91
    %v3128 = vpop.permute.xlu0 %3127
    %3129 = vrot.lane.b32.xlu0 %v3091, 91
    %v3130 = vpop.permute.xlu0 %3129
    %3131 = vrot.lane.b32.xlu0 %v3092, 91
    %v3132 = vpop.permute.xlu0 %3131
    %3133 = vrot.lane.b32.xlu0 %v3089, 91
    %v3134 = vpop.permute.xlu0 %3133
    %3135 = vrot.lane.b32.xlu0 %v2975, 91
    %v3136 = vpop.permute.xlu0 %3135
    %3137 = vrot.lane.b32.xlu0 %v3095, 91
    %v3138 = vpop.permute.xlu0 %3137
    %3139 = vrot.lane.b32.xlu0 %v3094, 91
    %v3140 = vpop.permute.xlu0 %3139
    %3141 = vrot.lane.b32.xlu0 %v2983, 91
    %v3142 = vpop.permute.xlu0 %3141
    %3143 = vrot.lane.b32.xlu0 %v3098, 91
    %v3144 = vpop.permute.xlu0 %3143
    %3145 = vrot.lane.b32.xlu0 %v3097, 91
    %v3146 = vpop.permute.xlu0 %3145
    %3147 = vrot.lane.b32.xlu0 %v2991, 91
    %v3148 = vpop.permute.xlu0 %3147
    %3149 = vrot.lane.b32.xlu0 %v3101, 91
    %v3150 = vpop.permute.xlu0 %3149
    %3151 = vrot.lane.b32.xlu0 %v3100, 91
    %v3152 = vpop.permute.xlu0 %3151
    %3153 = vrot.lane.b32.xlu0 %v2999, 91
    %v3154 = vpop.permute.xlu0 %3153
    %3155 = vrot.lane.b32.xlu0 %v3104, 91
    %v3156 = vpop.permute.xlu0 %3155
    %3157 = vrot.lane.b32.xlu0 %v3103, 91
    %v3158 = vpop.permute.xlu0 %3157
    %vm3159 = vcmask 744448
    %v3160 = vsel %vm3159, %v3106, %v3108
    %v3161 = vsel %vm3159, %v3108, %v3110
    %v3162 = vsel %vm3159, %v3112, %v3114
    %v3163 = vsel %vm3159, %v3114, %v3116
    %v3164 = vsel %vm3159, %v3118, %v3120
    %v3165 = vsel %vm3159, %v3120, %v3122
    %v3166 = vsel %vm3159, %v3124, %v3126
    %v3167 = vsel %vm3159, %v3126, %v3128
    %v3168 = vsel %vm3159, %v3130, %v3132
    %v3169 = vsel %vm3159, %v3132, %v3134
    %v3170 = vsel %vm3159, %v3136, %v3138
    %v3171 = vsel %vm3159, %v3138, %v3140
    %v3172 = vsel %vm3159, %v3142, %v3144
    %v3173 = vsel %vm3159, %v3144, %v3146
    %v3174 = vsel %vm3159, %v3148, %v3150
    %v3175 = vsel %vm3159, %v3150, %v3152
    %v3176 = vsel %vm3159, %v3154, %v3156
    %v3177 = vsel %vm3159, %v3156, %v3158
    %v3196 = vld [vmem:[%s6] sm:$0xff]
    %v3197 = vld [vmem:[%s6 + $0x8] sm:$0xff]
    %3199 = vset.pattern.permute.xlu0 0
    %3200 = vperm.xlu0 %3199, %v3196
    %v3201 = vpop.permute.xlu0 %3200
    %3204 = vset.pattern.permute.xlu0 0
    %3205 = vperm.xlu0 %3204, %v3197
    %v3206 = vpop.permute.xlu0 %3205
    %v3212 = vunpack.c.l.b16 %v2936
    %v3213 = vunpack.c.h.b16 %v2936
    %v3214 = vunpack.c.l.b16 %v2937
    %v3215 = vunpack.c.h.b16 %v2937
    %v3216 = vunpack.c.l.b16 %v2938
    %v3217 = vunpack.c.h.b16 %v2938
    %v3218 = vunpack.c.l.b16 %v2939
    %v3219 = vunpack.c.h.b16 %v2939
    %v3220 = vpack.c.b16 %v3216, %v3212
    %v3221 = vpack.c.b16 %v3217, %v3213
    %v3222 = vpack.c.b16 %v3218, %v3214
    %v3223 = vpack.c.b16 %v3219, %v3215
    %v3228 = vsel %vm1610, %v3223, 0
    %3230 = vmatprep.subr.bf16.mxu0 %v2934
    %3231 = vmatpush1.bf16.msra.mxu0 %v2883
    %3232 = vmatprep.subr.bf16.mxu0 %v2945
    %3233 = vmatpush1.bf16.msra.mxu0 %v2946
    %3234 = vmatprep.subr.bf16.mxu0 %v2952
    %3235 = vmatpush1.bf16.msra.mxu0 %v2953
    %3236 = vmatprep.subr.bf16.mxu0 %v2959
    %3237 = vmatpush1.bf16.msra.mxu0 %v2960
    %3238 = vmatprep.subr.bf16.mxu0 %v2966
    %3239 = vmatpush1.bf16.msra.mxu0 %v2967
    %3240 = vmatprep.subr.bf16.mxu0 %v2973
    %3241 = vmatpush1.bf16.msra.mxu0 %v2975
    %3242 = vmatprep.subr.bf16.mxu0 %v2981
    %3243 = vmatpush1.bf16.msra.mxu0 %v2983
    %3244 = vmatprep.subr.bf16.mxu0 %v2989
    %3245 = vmatpush1.bf16.msra.mxu0 %v2991
    %3246 = vmatprep.subr.bf16.mxu0 %v2997
    %3247 = vmatpush1.bf16.msra.mxu0 %v2999
    %3248 = vmatprep.subr.bf16.mxu0 %v3005
    %3249 = vmatpush1.bf16.msra.mxu0 %v3007
    %3250 = vmatprep.subr.bf16.mxu0 %v3017
    %3251 = vmatpush1.bf16.msra.mxu0 %v3016
    %3252 = vmatprep.subr.bf16.mxu0 %v3028
    %3253 = vmatpush1.bf16.msra.mxu0 %v3027
    %3254 = vmatprep.subr.bf16.mxu0 %v3039
    %3255 = vmatpush1.bf16.msra.mxu0 %v3038
    %3256 = vmatprep.subr.bf16.mxu0 %v3050
    %3257 = vmatpush1.bf16.msra.mxu0 %v3049
    %3258 = vmatprep.subr.bf16.mxu0 %v3061
    %3259 = vmatpush1.bf16.msra.mxu0 %v3060
    %3260 = vmatprep.subr.bf16.mxu0 %v3072
    %3261 = vmatpush1.bf16.msra.mxu0 %v3071
    %3262 = vmatprep.mubr.bf16.mxu0 %v3221
    %3263 = vmatmul.mubr.bf16.gmra.mrb[0].mxu0 %v3220
    %v3264 = vpop.f32.mrb[0].mxu0
    %v3265 = vadd.f32 %v3201, %v3264
    %v3266 = vpop.f32.mrb[0].mxu0
    %v3267 = vadd.f32 %v3201, %v3266
    %v3268 = vpop.f32.mrb[0].mxu0
    %v3269 = vadd.f32 %v3206, %v3268
    %v3270 = vpop.f32.mrb[0].mxu0
    %v3271 = vadd.f32 %v3206, %v3270
    %3272 = vdwg.mxu0
    %3273 = vmatprep.subr.bf16.mxu0 %v3161
    %3274 = vmatpush1.bf16.msra.mxu0 %v3160
    %3275 = vmatprep.subr.bf16.mxu0 %v3163
    %3276 = vmatpush1.bf16.msra.mxu0 %v3162
    %3277 = vmatprep.subr.bf16.mxu0 %v3165
    %3278 = vmatpush1.bf16.msra.mxu0 %v3164
    %3279 = vmatprep.subr.bf16.mxu0 %v3167
    %3280 = vmatpush1.bf16.msra.mxu0 %v3166
    %3281 = vmatprep.subr.bf16.mxu0 %v3169
    %3282 = vmatpush1.bf16.msra.mxu0 %v3168
    %3283 = vmatprep.subr.bf16.mxu0 %v3171
    %3284 = vmatpush1.bf16.msra.mxu0 %v3170
    %3285 = vmatprep.subr.bf16.mxu0 %v3173
    %3286 = vmatpush1.bf16.msra.mxu0 %v3172
    %3287 = vmatprep.subr.bf16.mxu0 %v3175
    %3288 = vmatpush1.bf16.msra.mxu0 %v3174
    %3289 = vmatprep.subr.bf16.mxu0 %v3177
    %3290 = vmatpush1.bf16.msra.mxu0 %v3176
    %3291 = vmatprep.subr.bf16.mxu0 0
    %3292 = vmatpush1.bf16.msra.mxu0 0
    %3293 = vmatprep.subr.bf16.mxu0 0
    %3294 = vmatpush1.bf16.msra.mxu0 0
    %3295 = vmatprep.subr.bf16.mxu0 0
    %3296 = vmatpush1.bf16.msra.mxu0 0
    %3297 = vmatprep.subr.bf16.mxu0 0
    %3298 = vmatpush1.bf16.msra.mxu0 0
    %3299 = vmatprep.subr.bf16.mxu0 0
    %3300 = vmatpush1.bf16.msra.mxu0 0
    %3301 = vmatprep.subr.bf16.mxu0 0
    %3302 = vmatpush1.bf16.msra.mxu0 0
    %3303 = vmatprep.subr.bf16.mxu0 0
    %3304 = vmatpush1.bf16.msra.mxu0 0
    %3305 = vmatprep.mubr.bf16.mxu0 %v3228
    %3306 = vmatmul.mubr.bf16.gmra.mrb[0].mxu0 %v3222
    %v3307 = vpop.f32.mrb[0].mxu0
    %v3308 = vadd.f32 %v3265, %v3307
    %v3309 = vpop.f32.mrb[0].mxu0
    %v3310 = vadd.f32 %v3267, %v3309
    %v3311 = vpop.f32.mrb[0].mxu0
    %v3312 = vadd.f32 %v3269, %v3311
    %v3313 = vpop.f32.mrb[0].mxu0
    %v3314 = vadd.f32 %v3271, %v3313
    %3315 = vdwg.mxu0
    %v3316 = vmul.f32 %v3308, 0.5
    %v3317 = vmul.f32 %v3310, 0.5
    %v3318 = vmul.f32 %v3312, 0.5
    %v3319 = vmul.f32 %v3314, 0.5
    %v3320 = vtanh.pop %v3316
    %v3321 = vtanh.pop %v3317
    %v3322 = vtanh.pop %v3318
    %v3323 = vtanh.pop %v3319
    %v3324 = vmul.f32 %v3320, 0.5
    %v3325 = vmul.f32 %v3321, 0.5
    %v3326 = vmul.f32 %v3322, 0.5
    %v3327 = vmul.f32 %v3323, 0.5
    %v3328 = vadd.f32 %v3324, 0.5
    %v3329 = vadd.f32 %v3325, 0.5
    %v3330 = vadd.f32 %v3326, 0.5
    %v3331 = vadd.f32 %v3327, 0.5
    %v3332 = vpack.c.bf16 %v3330, %v3328
    %v3333 = vpack.c.bf16 %v3331, %v3329
    %3335 = vrot.lane.b32.xlu0 %v3332, 26
    %v3336 = vpop.permute.xlu0 %3335
    %vm3337 = vcmask 211968
    %v3339 = vsel %vm3337, 0, %v3336
    %vm3340 = vcmask 965632
    %v3341 = vsel %vm3340, %v3339, 0
    %3344 = vrot.lane.b32.xlu0 %v3333, 10
    %v3345 = vpop.permute.xlu0 %3344
    %v3347 = vsel %vm3337, 0, %v3345
    %v3348 = vsel %vm3340, %v3347, 0
    %3350 = vrot.lane.b32.xlu0 %v3348, 16
    %v3351 = vpop.permute.xlu0 %3350
    %v3352 = vsel %vm924, %v3351, %v2931
    %v3355 = vsel %vm1610, 0, %v3351
    %v3357 = vld [vmem:[%s11] sm:$0x7]
    %v3360 = vunpack.c.l.s4 1966171168
    %v3361 = vunpack.c.0.s8 %v3360
    %v3362 = vlaneseq
    %v3363 = vshrl.u32 %v3362, 7
    %v3364 = vsub.s32 %v3361, %v3363
    %v3365 = vrot.slane %v3357, %v3364
    %v3366 = vcombine.high %v3365, %v3365
    %v3368 = vunpack.c.l.s4 1966171168
    %v3369 = vunpack.c.0.s8 %v3368
    %v3370 = vlaneseq
    %v3371 = vshrl.u32 %v3370, 7
    %v3372 = vsub.s32 %v3369, %v3371
    %v3373 = vrot.slane %v3365, %v3372
    %v3375 = vunpack.c.l.s4 1966171168
    %v3376 = vunpack.c.0.s8 %v3375
    %v3377 = vlaneseq
    %v3378 = vshrl.u32 %v3377, 7
    %v3379 = vsub.s32 %v3376, %v3378
    %v3380 = vrot.slane %v3366, %v3379
    %v3381 = vcombine.high %v3373, %v3373
    %v3383 = vpack.i.b16 %v3373, %v3373
    %v3385 = vlaneseq
    %v3386 = vshrl.u32 %v3385, 7
    %v3387 = vsub.s32 0, %v3386
    %v3388 = vrot.slane %v3383, %v3387
    %v3390 = vpack.i.b16 %v3380, %v3380
    %v3392 = vlaneseq
    %v3393 = vshrl.u32 %v3392, 7
    %v3394 = vsub.s32 0, %v3393
    %v3395 = vrot.slane %v3390, %v3394
    %v3397 = vpack.i.b16 %v3381, %v3381
    %v3399 = vlaneseq
    %v3400 = vshrl.u32 %v3399, 7
    %v3401 = vsub.s32 0, %v3400
    %v3402 = vrot.slane %v3397, %v3401
    %v3403 = vmul.bf16 %v3341, %v3388
    %v3404 = vmul.bf16 %v3355, %v3395
    %v3405 = vmul.bf16 %v3352, %v3402
    %v3406 = vld [vmem:[%s7] sm:$0xff]
    %v3407 = vld [vmem:[%s7 + $0x8] sm:$0xff]
    %v3408 = vld [vmem:[%s7 + $0x10] sm:$0xff]
    %v3409 = vld [vmem:[%s7 + $0x18] sm:$0xff]
    %3412 = vrot.lane.b32.xlu0 %v3403, 127
    %v3413 = vpop.permute.xlu0 %3412
    %3414 = vrot.lane.b32.xlu0 %v3404, 127
    %v3415 = vpop.permute.xlu0 %3414
    %v3416 = vsel %vm1634, %v3413, %v3415
    %3419 = vrot.lane.b32.xlu0 %v3403, 126
    %v3420 = vpop.permute.xlu0 %3419
    %3421 = vrot.lane.b32.xlu0 %v3404, 126
    %v3422 = vpop.permute.xlu0 %3421
    %v3423 = vsel %vm1658, %v3420, %v3422
    %3426 = vrot.lane.b32.xlu0 %v3403, 125
    %v3427 = vpop.permute.xlu0 %3426
    %3428 = vrot.lane.b32.xlu0 %v3404, 125
    %v3429 = vpop.permute.xlu0 %3428
    %v3430 = vsel %vm1682, %v3427, %v3429
    %3433 = vrot.lane.b32.xlu0 %v3403, 124
    %v3434 = vpop.permute.xlu0 %3433
    %3435 = vrot.lane.b32.xlu0 %v3404, 124
    %v3436 = vpop.permute.xlu0 %3435
    %v3437 = vsel %vm1706, %v3434, %v3436
    %3440 = vrot.lane.b32.xlu0 %v3403, 116
    %v3441 = vpop.permute.xlu0 %3440
    %3442 = vrot.lane.b32.xlu0 %v3404, 116
    %v3443 = vpop.permute.xlu0 %3442
    %v3444 = vsel %vm2974, %v3441, %v3443
    %3447 = vrot.lane.b32.xlu0 %v3403, 115
    %v3448 = vpop.permute.xlu0 %3447
    %3449 = vrot.lane.b32.xlu0 %v3404, 115
    %v3450 = vpop.permute.xlu0 %3449
    %v3451 = vsel %vm2982, %v3448, %v3450
    %3454 = vrot.lane.b32.xlu0 %v3403, 114
    %v3455 = vpop.permute.xlu0 %3454
    %3456 = vrot.lane.b32.xlu0 %v3404, 114
    %v3457 = vpop.permute.xlu0 %3456
    %v3458 = vsel %vm2990, %v3455, %v3457
    %3461 = vrot.lane.b32.xlu0 %v3403, 113
    %v3462 = vpop.permute.xlu0 %3461
    %3463 = vrot.lane.b32.xlu0 %v3404, 113
    %v3464 = vpop.permute.xlu0 %3463
    %v3465 = vsel %vm2998, %v3462, %v3464
    %3468 = vrot.lane.b32.xlu0 %v3403, 112
    %v3469 = vpop.permute.xlu0 %3468
    %3470 = vrot.lane.b32.xlu0 %v3404, 112
    %v3471 = vpop.permute.xlu0 %3470
    %v3472 = vsel %vm3006, %v3469, %v3471
    %3476 = vrot.lane.b32.xlu0 %v3403, 104
    %v3477 = vpop.permute.xlu0 %3476
    %3478 = vrot.lane.b32.xlu0 %v3404, 104
    %v3479 = vpop.permute.xlu0 %3478
    %3480 = vrot.lane.b32.xlu0 %v3405, 104
    %v3481 = vpop.permute.xlu0 %3480
    %v3482 = vsel %vm1826, %v3477, %v3479
    %v3483 = vsel %vm1826, %v3479, %v3481
    %3486 = vrot.lane.b32.xlu0 %v3403, 103
    %v3487 = vpop.permute.xlu0 %3486
    %3488 = vrot.lane.b32.xlu0 %v3404, 103
    %v3489 = vpop.permute.xlu0 %3488
    %3490 = vrot.lane.b32.xlu0 %v3405, 103
    %v3491 = vpop.permute.xlu0 %3490
    %v3492 = vsel %vm3026, %v3487, %v3489
    %v3493 = vsel %vm3026, %v3489, %v3491
    %3496 = vrot.lane.b32.xlu0 %v3403, 102
    %v3497 = vpop.permute.xlu0 %3496
    %3498 = vrot.lane.b32.xlu0 %v3404, 102
    %v3499 = vpop.permute.xlu0 %3498
    %3500 = vrot.lane.b32.xlu0 %v3405, 102
    %v3501 = vpop.permute.xlu0 %3500
    %v3502 = vsel %vm3037, %v3497, %v3499
    %v3503 = vsel %vm3037, %v3499, %v3501
    %3506 = vrot.lane.b32.xlu0 %v3403, 101
    %v3507 = vpop.permute.xlu0 %3506
    %3508 = vrot.lane.b32.xlu0 %v3404, 101
    %v3509 = vpop.permute.xlu0 %3508
    %3510 = vrot.lane.b32.xlu0 %v3405, 101
    %v3511 = vpop.permute.xlu0 %3510
    %v3512 = vsel %vm3048, %v3507, %v3509
    %v3513 = vsel %vm3048, %v3509, %v3511
    %3516 = vrot.lane.b32.xlu0 %v3403, 100
    %v3517 = vpop.permute.xlu0 %3516
    %3518 = vrot.lane.b32.xlu0 %v3404, 100
    %v3519 = vpop.permute.xlu0 %3518
    %3520 = vrot.lane.b32.xlu0 %v3405, 100
    %v3521 = vpop.permute.xlu0 %3520
    %v3522 = vsel %vm3059, %v3517, %v3519
    %v3523 = vsel %vm3059, %v3519, %v3521
    %3526 = vrot.lane.b32.xlu0 %v3403, 92
    %v3527 = vpop.permute.xlu0 %3526
    %3528 = vrot.lane.b32.xlu0 %v3404, 92
    %v3529 = vpop.permute.xlu0 %3528
    %3530 = vrot.lane.b32.xlu0 %v3405, 92
    %v3531 = vpop.permute.xlu0 %3530
    %v3532 = vsel %vm3070, %v3527, %v3529
    %v3533 = vsel %vm3070, %v3529, %v3531
    %3536 = vrot.lane.b32.xlu0 %v3405, 127
    %v3537 = vpop.permute.xlu0 %3536
    %v3538 = vsel %vm1634, %v3415, %v3537
    %3539 = vrot.lane.b32.xlu0 %v3405, 126
    %v3540 = vpop.permute.xlu0 %3539
    %v3541 = vsel %vm1658, %v3422, %v3540
    %3542 = vrot.lane.b32.xlu0 %v3405, 125
    %v3543 = vpop.permute.xlu0 %3542
    %v3544 = vsel %vm1682, %v3429, %v3543
    %3545 = vrot.lane.b32.xlu0 %v3403, 117
    %v3546 = vpop.permute.xlu0 %3545
    %3547 = vrot.lane.b32.xlu0 %v3404, 117
    %v3548 = vpop.permute.xlu0 %3547
    %3549 = vrot.lane.b32.xlu0 %v3405, 117
    %v3550 = vpop.permute.xlu0 %3549
    %v3551 = vsel %vm3090, %v3546, %v3548
    %v3552 = vsel %vm3090, %v3548, %v3550
    %3553 = vrot.lane.b32.xlu0 %v3405, 116
    %v3554 = vpop.permute.xlu0 %3553
    %v3555 = vsel %vm2974, %v3443, %v3554
    %3556 = vrot.lane.b32.xlu0 %v3405, 115
    %v3557 = vpop.permute.xlu0 %3556
    %v3558 = vsel %vm2982, %v3450, %v3557
    %3559 = vrot.lane.b32.xlu0 %v3405, 114
    %v3560 = vpop.permute.xlu0 %3559
    %v3561 = vsel %vm2990, %v3457, %v3560
    %3562 = vrot.lane.b32.xlu0 %v3405, 113
    %v3563 = vpop.permute.xlu0 %3562
    %v3564 = vsel %vm2998, %v3464, %v3563
    %3565 = vrot.lane.b32.xlu0 %v3403, 91
    %v3566 = vpop.permute.xlu0 %3565
    %3567 = vrot.lane.b32.xlu0 %v3404, 91
    %v3568 = vpop.permute.xlu0 %3567
    %3569 = vrot.lane.b32.xlu0 %v3405, 91
    %v3570 = vpop.permute.xlu0 %3569
    %3571 = vrot.lane.b32.xlu0 %v3416, 91
    %v3572 = vpop.permute.xlu0 %3571
    %3573 = vrot.lane.b32.xlu0 %v3538, 91
    %v3574 = vpop.permute.xlu0 %3573
    %3575 = vrot.lane.b32.xlu0 %v3537, 91
    %v3576 = vpop.permute.xlu0 %3575
    %3577 = vrot.lane.b32.xlu0 %v3423, 91
    %v3578 = vpop.permute.xlu0 %3577
    %3579 = vrot.lane.b32.xlu0 %v3541, 91
    %v3580 = vpop.permute.xlu0 %3579
    %3581 = vrot.lane.b32.xlu0 %v3540, 91
    %v3582 = vpop.permute.xlu0 %3581
    %3583 = vrot.lane.b32.xlu0 %v3430, 91
    %v3584 = vpop.permute.xlu0 %3583
    %3585 = vrot.lane.b32.xlu0 %v3544, 91
    %v3586 = vpop.permute.xlu0 %3585
    %3587 = vrot.lane.b32.xlu0 %v3543, 91
    %v3588 = vpop.permute.xlu0 %3587
    %3589 = vrot.lane.b32.xlu0 %v3551, 91
    %v3590 = vpop.permute.xlu0 %3589
    %3591 = vrot.lane.b32.xlu0 %v3552, 91
    %v3592 = vpop.permute.xlu0 %3591
    %3593 = vrot.lane.b32.xlu0 %v3550, 91
    %v3594 = vpop.permute.xlu0 %3593
    %3595 = vrot.lane.b32.xlu0 %v3444, 91
    %v3596 = vpop.permute.xlu0 %3595
    %3597 = vrot.lane.b32.xlu0 %v3555, 91
    %v3598 = vpop.permute.xlu0 %3597
    %3599 = vrot.lane.b32.xlu0 %v3554, 91
    %v3600 = vpop.permute.xlu0 %3599
    %3601 = vrot.lane.b32.xlu0 %v3451, 91
    %v3602 = vpop.permute.xlu0 %3601
    %3603 = vrot.lane.b32.xlu0 %v3558, 91
    %v3604 = vpop.permute.xlu0 %3603
    %3605 = vrot.lane.b32.xlu0 %v3557, 91
    %v3606 = vpop.permute.xlu0 %3605
    %3607 = vrot.lane.b32.xlu0 %v3458, 91
    %v3608 = vpop.permute.xlu0 %3607
    %3609 = vrot.lane.b32.xlu0 %v3561, 91
    %v3610 = vpop.permute.xlu0 %3609
    %3611 = vrot.lane.b32.xlu0 %v3560, 91
    %v3612 = vpop.permute.xlu0 %3611
    %3613 = vrot.lane.b32.xlu0 %v3465, 91
    %v3614 = vpop.permute.xlu0 %3613
    %3615 = vrot.lane.b32.xlu0 %v3564, 91
    %v3616 = vpop.permute.xlu0 %3615
    %3617 = vrot.lane.b32.xlu0 %v3563, 91
    %v3618 = vpop.permute.xlu0 %3617
    %v3619 = vsel %vm3159, %v3566, %v3568
    %v3620 = vsel %vm3159, %v3568, %v3570
    %v3621 = vsel %vm3159, %v3572, %v3574
    %v3622 = vsel %vm3159, %v3574, %v3576
    %v3623 = vsel %vm3159, %v3578, %v3580
    %v3624 = vsel %vm3159, %v3580, %v3582
    %v3625 = vsel %vm3159, %v3584, %v3586
    %v3626 = vsel %vm3159, %v3586, %v3588
    %v3627 = vsel %vm3159, %v3590, %v3592
    %v3628 = vsel %vm3159, %v3592, %v3594
    %v3629 = vsel %vm3159, %v3596, %v3598
    %v3630 = vsel %vm3159, %v3598, %v3600
    %v3631 = vsel %vm3159, %v3602, %v3604
    %v3632 = vsel %vm3159, %v3604, %v3606
    %v3633 = vsel %vm3159, %v3608, %v3610
    %v3634 = vsel %vm3159, %v3610, %v3612
    %v3635 = vsel %vm3159, %v3614, %v3616
    %v3636 = vsel %vm3159, %v3616, %v3618
    %v3655 = vld [vmem:[%s8] sm:$0xff]
    %v3656 = vld [vmem:[%s8 + $0x8] sm:$0xff]
    %3658 = vset.pattern.permute.xlu0 0
    %3659 = vperm.xlu0 %3658, %v3655
    %v3660 = vpop.permute.xlu0 %3659
    %3663 = vset.pattern.permute.xlu0 0
    %3664 = vperm.xlu0 %3663, %v3656
    %v3665 = vpop.permute.xlu0 %3664
    %v3671 = vunpack.c.l.b16 %v3406
    %v3672 = vunpack.c.h.b16 %v3406
    %v3673 = vunpack.c.l.b16 %v3407
    %v3674 = vunpack.c.h.b16 %v3407
    %v3675 = vunpack.c.l.b16 %v3408
    %v3676 = vunpack.c.h.b16 %v3408
    %v3677 = vunpack.c.l.b16 %v3409
    %v3678 = vunpack.c.h.b16 %v3409
    %v3679 = vpack.c.b16 %v3675, %v3671
    %v3680 = vpack.c.b16 %v3676, %v3672
    %v3681 = vpack.c.b16 %v3677, %v3673
    %v3682 = vpack.c.b16 %v3678, %v3674
    %v3687 = vsel %vm1610, %v3682, 0
    %3689 = vmatprep.subr.bf16.mxu0 %v3404
    %3690 = vmatpush1.bf16.msra.mxu0 %v3403
    %3691 = vmatprep.subr.bf16.mxu0 %v3415
    %3692 = vmatpush1.bf16.msra.mxu0 %v3416
    %3693 = vmatprep.subr.bf16.mxu0 %v3422
    %3694 = vmatpush1.bf16.msra.mxu0 %v3423
    %3695 = vmatprep.subr.bf16.mxu0 %v3429
    %3696 = vmatpush1.bf16.msra.mxu0 %v3430
    %3697 = vmatprep.subr.bf16.mxu0 %v3436
    %3698 = vmatpush1.bf16.msra.mxu0 %v3437
    %3699 = vmatprep.subr.bf16.mxu0 %v3443
    %3700 = vmatpush1.bf16.msra.mxu0 %v3444
    %3701 = vmatprep.subr.bf16.mxu0 %v3450
    %3702 = vmatpush1.bf16.msra.mxu0 %v3451
    %3703 = vmatprep.subr.bf16.mxu0 %v3457
    %3704 = vmatpush1.bf16.msra.mxu0 %v3458
    %3705 = vmatprep.subr.bf16.mxu0 %v3464
    %3706 = vmatpush1.bf16.msra.mxu0 %v3465
    %3707 = vmatprep.subr.bf16.mxu0 %v3471
    %3708 = vmatpush1.bf16.msra.mxu0 %v3472
    %3709 = vmatprep.subr.bf16.mxu0 %v3483
    %3710 = vmatpush1.bf16.msra.mxu0 %v3482
    %3711 = vmatprep.subr.bf16.mxu0 %v3493
    %3712 = vmatpush1.bf16.msra.mxu0 %v3492
    %3713 = vmatprep.subr.bf16.mxu0 %v3503
    %3714 = vmatpush1.bf16.msra.mxu0 %v3502
    %3715 = vmatprep.subr.bf16.mxu0 %v3513
    %3716 = vmatpush1.bf16.msra.mxu0 %v3512
    %3717 = vmatprep.subr.bf16.mxu0 %v3523
    %3718 = vmatpush1.bf16.msra.mxu0 %v3522
    %3719 = vmatprep.subr.bf16.mxu0 %v3533
    %3720 = vmatpush1.bf16.msra.mxu0 %v3532
    %3721 = vmatprep.mubr.bf16.mxu0 %v3680
    %3722 = vmatmul.mubr.bf16.gmra.mrb[0].mxu0 %v3679
    %v3723 = vpop.f32.mrb[0].mxu0
    %v3724 = vadd.f32 %v3660, %v3723
    %v3725 = vpop.f32.mrb[0].mxu0
    %v3726 = vadd.f32 %v3660, %v3725
    %v3727 = vpop.f32.mrb[0].mxu0
    %v3728 = vadd.f32 %v3665, %v3727
    %v3729 = vpop.f32.mrb[0].mxu0
    %v3730 = vadd.f32 %v3665, %v3729
    %3731 = vdwg.mxu0
    %3732 = vmatprep.subr.bf16.mxu0 %v3620
    %3733 = vmatpush1.bf16.msra.mxu0 %v3619
    %3734 = vmatprep.subr.bf16.mxu0 %v3622
    %3735 = vmatpush1.bf16.msra.mxu0 %v3621
    %3736 = vmatprep.subr.bf16.mxu0 %v3624
    %3737 = vmatpush1.bf16.msra.mxu0 %v3623
    %3738 = vmatprep.subr.bf16.mxu0 %v3626
    %3739 = vmatpush1.bf16.msra.mxu0 %v3625
    %3740 = vmatprep.subr.bf16.mxu0 %v3628
    %3741 = vmatpush1.bf16.msra.mxu0 %v3627
    %3742 = vmatprep.subr.bf16.mxu0 %v3630
    %3743 = vmatpush1.bf16.msra.mxu0 %v3629
    %3744 = vmatprep.subr.bf16.mxu0 %v3632
    %3745 = vmatpush1.bf16.msra.mxu0 %v3631
    %3746 = vmatprep.subr.bf16.mxu0 %v3634
    %3747 = vmatpush1.bf16.msra.mxu0 %v3633
    %3748 = vmatprep.subr.bf16.mxu0 %v3636
    %3749 = vmatpush1.bf16.msra.mxu0 %v3635
    %3750 = vmatprep.subr.bf16.mxu0 0
    %3751 = vmatpush1.bf16.msra.mxu0 0
    %3752 = vmatprep.subr.bf16.mxu0 0
    %3753 = vmatpush1.bf16.msra.mxu0 0
    %3754 = vmatprep.subr.bf16.mxu0 0
    %3755 = vmatpush1.bf16.msra.mxu0 0
    %3756 = vmatprep.subr.bf16.mxu0 0
    %3757 = vmatpush1.bf16.msra.mxu0 0
    %3758 = vmatprep.subr.bf16.mxu0 0
    %3759 = vmatpush1.bf16.msra.mxu0 0
    %3760 = vmatprep.subr.bf16.mxu0 0
    %3761 = vmatpush1.bf16.msra.mxu0 0
    %3762 = vmatprep.subr.bf16.mxu0 0
    %3763 = vmatpush1.bf16.msra.mxu0 0
    %3764 = vmatprep.mubr.bf16.mxu0 %v3687
    %3765 = vmatmul.mubr.bf16.gmra.mrb[0].mxu0 %v3681
    %v3766 = vpop.f32.mrb[0].mxu0
    %v3767 = vadd.f32 %v3724, %v3766
    %v3768 = vpop.f32.mrb[0].mxu0
    %v3769 = vadd.f32 %v3726, %v3768
    %v3770 = vpop.f32.mrb[0].mxu0
    %v3771 = vadd.f32 %v3728, %v3770
    %v3772 = vpop.f32.mrb[0].mxu0
    %v3773 = vadd.f32 %v3730, %v3772
    %3774 = vdwg.mxu0
    %v3775 = vmul.f32 %v3767, 0.5
    %v3776 = vmul.f32 %v3769, 0.5
    %v3777 = vmul.f32 %v3771, 0.5
    %v3778 = vmul.f32 %v3773, 0.5
    %v3779 = vtanh.pop %v3775
    %v3780 = vtanh.pop %v3776
    %v3781 = vtanh.pop %v3777
    %v3782 = vtanh.pop %v3778
    %v3783 = vmul.f32 %v3779, 0.5
    %v3784 = vmul.f32 %v3780, 0.5
    %v3785 = vmul.f32 %v3781, 0.5
    %v3786 = vmul.f32 %v3782, 0.5
    %v3787 = vadd.f32 %v3783, 0.5
    %v3788 = vadd.f32 %v3784, 0.5
    %v3789 = vadd.f32 %v3785, 0.5
    %v3790 = vadd.f32 %v3786, 0.5
    %v3791 = vpack.c.bf16 %v3789, %v3787
    %v3792 = vpack.c.bf16 %v3790, %v3788
    %v3794 = vshrl.u32 %v3791, 16
    %3796 = vrot.lane.b32.xlu0 %v3794, 92
    %v3797 = vpop.permute.xlu0 %3796
    %v3799 = vrot.slane %v3791, 1
    %3800 = vrot.lane.b32.xlu0 %v3799, 56
    %v3801 = vpop.permute.xlu0 %3800
    %v3802 = vrot.slane %v3794, 1
    %3803 = vrot.lane.b32.xlu0 %v3802, 20
    %v3804 = vpop.permute.xlu0 %3803
    %v3805 = vrot.slane %v3791, 2
    %3806 = vrot.lane.b32.xlu0 %v3805, 112
    %v3807 = vpop.permute.xlu0 %3806
    %v3808 = vrot.slane %v3794, 2
    %3809 = vrot.lane.b32.xlu0 %v3808, 76
    %v3810 = vpop.permute.xlu0 %3809
    %v3811 = vrot.slane %v3791, 3
    %3812 = vrot.lane.b32.xlu0 %v3811, 40
    %v3813 = vpop.permute.xlu0 %3812
    %v3814 = vrot.slane %v3794, 3
    %3815 = vrot.lane.b32.xlu0 %v3814, 4
    %v3816 = vpop.permute.xlu0 %3815
    %v3817 = vrot.slane %v3791, 4
    %3818 = vrot.lane.b32.xlu0 %v3817, 96
    %v3819 = vpop.permute.xlu0 %3818
    %v3820 = vrot.slane %v3794, 4
    %3821 = vrot.lane.b32.xlu0 %v3820, 60
    %v3822 = vpop.permute.xlu0 %3821
    %v3823 = vrot.slane %v3791, 5
    %3824 = vrot.lane.b32.xlu0 %v3823, 24
    %v3825 = vpop.permute.xlu0 %3824
    %v3826 = vrot.slane %v3794, 5
    %3827 = vrot.lane.b32.xlu0 %v3826, 116
    %v3828 = vpop.permute.xlu0 %3827
    %v3831 = vsel %vm1483, %v3791, %v3797
    %vm3833 = vcmask 457728
    %v3835 = vsel %vm3833, %v3797, %v3801
    %v3838 = vsel %vm1502, %v3801, %v3804
    %v3840 = vsel %vm1486, %v3838, %v3807
    %vm3842 = vcmask 621568
    %v3844 = vsel %vm3842, %v3807, %v3810
    %v3847 = vsel %vm1455, %v3810, %v3813
    %v3850 = vsel %vm1490, %v3813, %v3816
    %v3852 = vsel %vm2877, %v3850, %v3819
    %v3855 = vsel %vm1459, %v3819, %v3822
    %v3858 = vsel %vm1493, %v3822, %v3825
    %vm3859 = vcmask 949248
    %v3861 = vsel %vm3859, %v3858, %v3828
    %3864 = vrot.lane.b32.xlu0 %v3792, 112
    %v3865 = vpop.permute.xlu0 %3864
    %v3867 = vshrl.u32 %v3792, 16
    %3869 = vrot.lane.b32.xlu0 %v3867, 76
    %v3870 = vpop.permute.xlu0 %3869
    %v3871 = vrot.slane %v3792, 1
    %3872 = vrot.lane.b32.xlu0 %v3871, 40
    %v3873 = vpop.permute.xlu0 %3872
    %v3874 = vrot.slane %v3867, 1
    %3875 = vrot.lane.b32.xlu0 %v3874, 4
    %v3876 = vpop.permute.xlu0 %3875
    %v3877 = vrot.slane %v3792, 2
    %3878 = vrot.lane.b32.xlu0 %v3877, 96
    %v3879 = vpop.permute.xlu0 %3878
    %v3880 = vrot.slane %v3867, 2
    %3881 = vrot.lane.b32.xlu0 %v3880, 60
    %v3882 = vpop.permute.xlu0 %3881
    %v3883 = vrot.slane %v3792, 3
    %3884 = vrot.lane.b32.xlu0 %v3883, 24
    %v3885 = vpop.permute.xlu0 %3884
    %v3886 = vrot.slane %v3867, 3
    %3887 = vrot.lane.b32.xlu0 %v3886, 116
    %v3888 = vpop.permute.xlu0 %3887
    %v3889 = vrot.slane %v3792, 4
    %3890 = vrot.lane.b32.xlu0 %v3889, 80
    %v3891 = vpop.permute.xlu0 %3890
    %v3892 = vrot.slane %v3867, 4
    %3893 = vrot.lane.b32.xlu0 %v3892, 44
    %v3894 = vpop.permute.xlu0 %3893
    %v3895 = vrot.slane %v3792, 5
    %3896 = vrot.lane.b32.xlu0 %v3895, 8
    %v3897 = vpop.permute.xlu0 %3896
    %v3898 = vrot.slane %v3867, 5
    %3899 = vrot.lane.b32.xlu0 %v3898, 100
    %v3900 = vpop.permute.xlu0 %3899
    %v3903 = vsel %vm1483, %v3865, %v3870
    %v3905 = vsel %vm3833, %v3870, %v3873
    %v3907 = vsel %vm1502, %v3873, %v3876
    %v3909 = vsel %vm1486, %v3907, %v3879
    %v3911 = vsel %vm3842, %v3879, %v3882
    %v3913 = vsel %vm1455, %v3882, %v3885
    %v3915 = vsel %vm1490, %v3885, %v3888
    %v3917 = vsel %vm2877, %v3915, %v3891
    %v3919 = vsel %vm1459, %v3891, %v3894
    %v3921 = vsel %vm1493, %v3894, %v3897
    %v3923 = vsel %vm3859, %v3921, %v3900
    %v3924 = vshll.u32 %v3903, 16
    %v3926 = vshll.u32 %v3905, 16
    %v3928 = vshll.u32 %v3909, 16
    %v3930 = vshll.u32 %v3911, 16
    %v3932 = vshll.u32 %v3913, 16
    %v3934 = vshll.u32 %v3917, 16
    %v3936 = vshll.u32 %v3919, 16
    %v3938 = vshll.u32 %v3923, 16
    %v3940 = vshll.u32 %v3900, 16
    %vm3951 = vcmask 1040384
    %vm3952 = vsmask.f32 256
    %vm3953 = vmand %vm3951, %vm3952
    %v3954 = vsel %vm3953, %v3831, %v3924
    %v3955 = vsel %vm3953, %v3835, %v3926
    %v3956 = vsel %vm3953, %v3840, %v3928
    %v3957 = vsel %vm3953, %v3844, %v3930
    %v3958 = vsel %vm3953, %v3847, %v3932
    %v3959 = vsel %vm3953, %v3852, %v3934
    %v3960 = vsel %vm3953, %v3855, %v3936
    %v3961 = vsel %vm3953, %v3861, %v3938
    %v3962 = vsel %vm3953, %v3828, %v3940
    %v3963 = vld [vmem:[%s12] sm:$0xf]
    %v3964 = vld [vmem:[%s12 + $0x4] sm:$0xf]
    %v3965 = vld [vmem:[%s12 + $0x8] sm:$0xf]
    %v3966 = vld [vmem:[%s12 + $0xc] sm:$0xf]
    %v3967 = vld [vmem:[%s12 + $0x10] sm:$0xf]
    %v3968 = vld [vmem:[%s12 + $0x14] sm:$0xf]
    %v3969 = vld [vmem:[%s12 + $0x18] sm:$0xf]
    %v3970 = vld [vmem:[%s12 + $0x1c] sm:$0xf]
    %v3971 = vld [vmem:[%s12 + $0x20] sm:$0xf]
    %v3972 = vld [vmem:[%s12 + $0x24] sm:$0xf]
    %v3973 = vld [vmem:[%s12 + $0x28] sm:$0xf]
    %v3974 = vld [vmem:[%s12 + $0x2c] sm:$0xf]
    %v3975 = vld [vmem:[%s12 + $0x30] sm:$0xf]
    %v3976 = vld [vmem:[%s12 + $0x34] sm:$0xf]
    %v3977 = vld [vmem:[%s12 + $0x38] sm:$0xf]
    %v3978 = vld [vmem:[%s12 + $0x3c] sm:$0xf]
    %v3979 = vld [vmem:[%s12 + $0x40] sm:$0xf]
    %v3980 = vld [vmem:[%s12 + $0x44] sm:$0xf]
    %v3981 = vld [vmem:[%s12 + $0x48] sm:$0xf]
    %v3982 = vld [vmem:[%s12 + $0x4c] sm:$0xf]
    %v3983 = vld [vmem:[%s12 + $0x50] sm:$0xf]
    %v3984 = vld [vmem:[%s12 + $0x54] sm:$0xf]
    %v3985 = vld [vmem:[%s12 + $0x58] sm:$0xf]
    %v3986 = vld [vmem:[%s12 + $0x5c] sm:$0xf]
    %v3987 = vld [vmem:[%s12 + $0x60] sm:$0xf]
    %v3988 = vld [vmem:[%s12 + $0x64] sm:$0xf]
    %v3989 = vld [vmem:[%s12 + $0x68] sm:$0xf]
    %v3990 = vld [vmem:[%s12 + $0x6c] sm:$0xf]
    %v3991 = vld [vmem:[%s12 + $0x70] sm:$0xf]
    %v3992 = vld [vmem:[%s12 + $0x74] sm:$0xf]
    %v3993 = vld [vmem:[%s12 + $0x78] sm:$0xf]
    %v3994 = vld [vmem:[%s12 + $0x7c] sm:$0xf]
    %v3995 = vld [vmem:[%s12 + $0x80] sm:$0xf]
    %v3996 = vld [vmem:[%s12 + $0x84] sm:$0xf]
    %v3997 = vld [vmem:[%s12 + $0x88] sm:$0xf]
    %v3998 = vld [vmem:[%s12 + $0x8c] sm:$0xf]
    %v3999 = vld [vmem:[%s12 + $0x90] sm:$0xf]
    %v4000 = vld [vmem:[%s12 + $0x94] sm:$0xf]
    %v4001 = vld [vmem:[%s12 + $0x98] sm:$0xf]
    %v4002 = vld [vmem:[%s12 + $0x9c] sm:$0xf]
    %v4003 = vld [vmem:[%s12 + $0xa0] sm:$0xf]
    %v4004 = vld [vmem:[%s12 + $0xa4] sm:$0xf]
    %v4005 = vld [vmem:[%s12 + $0xa8] sm:$0xf]
    %v4006 = vld [vmem:[%s12 + $0xac] sm:$0xf]
    %v4007 = vld [vmem:[%s12 + $0xb0] sm:$0xf]
    %v4008 = vld [vmem:[%s12 + $0xb4] sm:$0xf]
    %v4009 = vld [vmem:[%s12 + $0xb8] sm:$0xf]
    %v4010 = vld [vmem:[%s12 + $0xbc] sm:$0xf]
    %v4011 = vld [vmem:[%s12 + $0xc0] sm:$0xf]
    %v4012 = vld [vmem:[%s12 + $0xc4] sm:$0xf]
    %v4013 = vld [vmem:[%s12 + $0xc8] sm:$0xf]
    %v4014 = vld [vmem:[%s12 + $0xcc] sm:$0xf]
    %v4015 = vld [vmem:[%s12 + $0xd0] sm:$0xf]
    %v4016 = vld [vmem:[%s12 + $0xd4] sm:$0xf]
    %v4017 = vld [vmem:[%s12 + $0xd8] sm:$0xf]
    %v4018 = vld [vmem:[%s12 + $0xdc] sm:$0xf]
    %v4019 = vld [vmem:[%s12 + $0xe0] sm:$0xf]
    %v4020 = vld [vmem:[%s12 + $0xe4] sm:$0xf]
    %v4021 = vld [vmem:[%s12 + $0xe8] sm:$0xf]
    %v4022 = vld [vmem:[%s12 + $0xec] sm:$0xf]
    %v4023 = vld [vmem:[%s12 + $0xf0] sm:$0xf]
    %v4024 = vld [vmem:[%s12 + $0xf4] sm:$0xf]
    %v4025 = vld [vmem:[%s12 + $0xf8] sm:$0xf]
    %v4026 = vld [vmem:[%s12 + $0xfc] sm:$0xf]
    %v4027 = vld [vmem:[%s12 + $0x100] sm:$0xf]
    %v4028 = vld [vmem:[%s12 + $0x104] sm:$0xf]
    %v4029 = vld [vmem:[%s12 + $0x108] sm:$0xf]
    %v4030 = vld [vmem:[%s12 + $0x10c] sm:$0xf]
    %v4031 = vld [vmem:[%s12 + $0x110] sm:$0xf]
    %v4032 = vld [vmem:[%s12 + $0x114] sm:$0xf]
    %v4033 = vld [vmem:[%s12 + $0x118] sm:$0xf]
    %v4034 = vld [vmem:[%s12 + $0x11c] sm:$0xf]
    %v4035 = vld [vmem:[%s12 + $0x120] sm:$0xf]
    %v4036 = vld [vmem:[%s12 + $0x124] sm:$0xf]
    %v4037 = vld [vmem:[%s12 + $0x128] sm:$0xf]
    %v4038 = vld [vmem:[%s12 + $0x12c] sm:$0xf]
    %v4039 = vld [vmem:[%s12 + $0x130] sm:$0xf]
    %v4040 = vld [vmem:[%s12 + $0x134] sm:$0xf]
    %v4041 = vld [vmem:[%s12 + $0x138] sm:$0xf]
    %v4042 = vld [vmem:[%s12 + $0x13c] sm:$0xf]
    %v4043 = vld [vmem:[%s12 + $0x140] sm:$0xf]
    %v4044 = vld [vmem:[%s12 + $0x144] sm:$0xf]
    %v4045 = vld [vmem:[%s12 + $0x148] sm:$0xf]
    %v4046 = vld [vmem:[%s12 + $0x14c] sm:$0xf]
    %v4047 = vld [vmem:[%s12 + $0x150] sm:$0xf]
    %v4048 = vld [vmem:[%s12 + $0x154] sm:$0xf]
    %v4049 = vld [vmem:[%s12 + $0x158] sm:$0xf]
    %v4050 = vld [vmem:[%s12 + $0x15c] sm:$0xf]
    %v4051 = vld [vmem:[%s12 + $0x160] sm:$0xf]
    %v4052 = vld [vmem:[%s12 + $0x164] sm:$0xf]
    %v4053 = vld [vmem:[%s12 + $0x168] sm:$0xf]
    %v4054 = vld [vmem:[%s12 + $0x16c] sm:$0xf]
    %v4055 = vld [vmem:[%s12 + $0x170] sm:$0xf]
    %v4056 = vld [vmem:[%s12 + $0x174] sm:$0xf]
    %v4057 = vld [vmem:[%s12 + $0x178] sm:$0xf]
    %v4058 = vld [vmem:[%s12 + $0x17c] sm:$0xf]
    %v4059 = vld [vmem:[%s12 + $0x180] sm:$0xf]
    %v4060 = vld [vmem:[%s12 + $0x184] sm:$0xf]
    %v4061 = vld [vmem:[%s12 + $0x188] sm:$0xf]
    %v4062 = vld [vmem:[%s12 + $0x18c] sm:$0xf]
    %v4063 = vld [vmem:[%s12 + $0x190] sm:$0xf]
    %v4064 = vld [vmem:[%s12 + $0x194] sm:$0xf]
    %v4065 = vld [vmem:[%s12 + $0x198] sm:$0xf]
    %v4066 = vld [vmem:[%s12 + $0x19c] sm:$0xf]
    %v4067 = vld [vmem:[%s12 + $0x1a0] sm:$0xf]
    %v4068 = vld [vmem:[%s12 + $0x1a4] sm:$0xf]
    %v4069 = vld [vmem:[%s12 + $0x1a8] sm:$0xf]
    %v4070 = vld [vmem:[%s12 + $0x1ac] sm:$0xf]
    %v4071 = vld [vmem:[%s12 + $0x1b0] sm:$0xf]
    %v4072 = vld [vmem:[%s12 + $0x1b4] sm:$0xf]
    %v4073 = vld [vmem:[%s12 + $0x1b8] sm:$0xf]
    %v4074 = vld [vmem:[%s12 + $0x1bc] sm:$0xf]
    %v4075 = vld [vmem:[%s12 + $0x1c0] sm:$0xf]
    %v4076 = vld [vmem:[%s12 + $0x1c4] sm:$0xf]
    %v4077 = vld [vmem:[%s12 + $0x1c8] sm:$0xf]
    %v4078 = vld [vmem:[%s12 + $0x1cc] sm:$0xf]
    %v4079 = vld [vmem:[%s12 + $0x1d0] sm:$0xf]
    %v4080 = vld [vmem:[%s12 + $0x1d4] sm:$0xf]
    %v4081 = vld [vmem:[%s12 + $0x1d8] sm:$0xf]
    %v4082 = vld [vmem:[%s12 + $0x1dc] sm:$0xf]
    %v4083 = vld [vmem:[%s12 + $0x1e0] sm:$0xf]
    %v4084 = vld [vmem:[%s12 + $0x1e4] sm:$0xf]
    %v4085 = vld [vmem:[%s12 + $0x1e8] sm:$0xf]
    %v4086 = vld [vmem:[%s12 + $0x1ec] sm:$0xf]
    %v4087 = vld [vmem:[%s12 + $0x1f0] sm:$0xf]
    %v4088 = vld [vmem:[%s12 + $0x1f4] sm:$0xf]
    %v4089 = vld [vmem:[%s12 + $0x1f8] sm:$0xf]
    %v4090 = vld [vmem:[%s12 + $0x1fc] sm:$0xf]
    %v4091 = vld [vmem:[%s12 + $0x200] sm:$0xf]
    %v4092 = vld [vmem:[%s12 + $0x204] sm:$0xf]
    %v4093 = vld [vmem:[%s12 + $0x208] sm:$0xf]
    %v4094 = vld [vmem:[%s12 + $0x20c] sm:$0xf]
    %v4095 = vld [vmem:[%s12 + $0x210] sm:$0xf]
    %v4096 = vld [vmem:[%s12 + $0x214] sm:$0xf]
    %v4097 = vld [vmem:[%s12 + $0x218] sm:$0xf]
    %v4098 = vld [vmem:[%s12 + $0x21c] sm:$0xf]
    %v4099 = vld [vmem:[%s12 + $0x220] sm:$0xf]
    %v4100 = vld [vmem:[%s12 + $0x224] sm:$0xf]
    %v4101 = vld [vmem:[%s13] sm:$0x1]
    %v4103 = vlaneseq
    %v4104 = vshrl.u32 %v4103, 7
    %v4105 = vsub.s32 0, %v4104
    %v4106 = vrot.slane %v4101, %v4105
    %v4246 = vunpack.c.l.b16 %v3963
    %v4247 = vunpack.c.l.b16 %v3964
    %v4248 = vunpack.c.l.b16 %v3965
    %v4249 = vunpack.c.l.b16 %v3966
    %v4250 = vunpack.c.l.b16 %v3967
    %v4251 = vunpack.c.l.b16 %v3968
    %v4252 = vunpack.c.l.b16 %v3969
    %v4253 = vunpack.c.l.b16 %v3970
    %v4254 = vunpack.c.l.b16 %v3971
    %v4255 = vunpack.c.l.b16 %v3972
    %v4256 = vunpack.c.l.b16 %v3973
    %v4257 = vunpack.c.l.b16 %v3974
    %v4258 = vunpack.c.l.b16 %v3975
    %v4259 = vunpack.c.l.b16 %v3976
    %v4260 = vunpack.c.l.b16 %v3977
    %v4261 = vunpack.c.l.b16 %v3978
    %v4262 = vunpack.c.l.b16 %v3979
    %v4263 = vunpack.c.l.b16 %v3980
    %v4264 = vunpack.c.l.b16 %v3981
    %v4265 = vunpack.c.l.b16 %v3982
    %v4266 = vunpack.c.l.b16 %v3983
    %v4267 = vunpack.c.l.b16 %v3984
    %v4268 = vunpack.c.l.b16 %v3985
    %v4269 = vunpack.c.l.b16 %v3986
    %v4270 = vunpack.c.l.b16 %v3987
    %v4271 = vunpack.c.l.b16 %v3988
    %v4272 = vunpack.c.l.b16 %v3989
    %v4273 = vunpack.c.l.b16 %v3990
    %v4274 = vunpack.c.l.b16 %v3991
    %v4275 = vunpack.c.l.b16 %v3992
    %v4276 = vunpack.c.l.b16 %v3993
    %v4277 = vunpack.c.l.b16 %v3994
    %v4278 = vunpack.c.l.b16 %v3995
    %v4279 = vunpack.c.l.b16 %v3996
    %v4280 = vunpack.c.l.b16 %v3997
    %v4281 = vunpack.c.l.b16 %v3998
    %v4282 = vunpack.c.l.b16 %v3999
    %v4283 = vunpack.c.l.b16 %v4000
    %v4284 = vunpack.c.l.b16 %v4001
    %v4285 = vunpack.c.l.b16 %v4002
    %v4286 = vunpack.c.l.b16 %v4003
    %v4287 = vunpack.c.l.b16 %v4004
    %v4288 = vunpack.c.l.b16 %v4005
    %v4289 = vunpack.c.l.b16 %v4006
    %v4290 = vunpack.c.l.b16 %v4007
    %v4291 = vunpack.c.l.b16 %v4008
    %v4292 = vunpack.c.l.b16 %v4009
    %v4293 = vunpack.c.l.b16 %v4010
    %v4294 = vunpack.c.l.b16 %v4011
    %v4295 = vunpack.c.l.b16 %v4012
    %v4296 = vunpack.c.l.b16 %v4013
    %v4297 = vunpack.c.l.b16 %v4014
    %v4298 = vunpack.c.l.b16 %v4015
    %v4299 = vunpack.c.l.b16 %v4016
    %v4300 = vunpack.c.l.b16 %v4017
    %v4301 = vunpack.c.l.b16 %v4018
    %v4302 = vunpack.c.l.b16 %v4019
    %v4303 = vunpack.c.l.b16 %v4020
    %v4304 = vunpack.c.l.b16 %v4021
    %v4305 = vunpack.c.l.b16 %v4022
    %v4306 = vunpack.c.l.b16 %v4023
    %v4307 = vunpack.c.l.b16 %v4024
    %v4308 = vunpack.c.l.b16 %v4025
    %v4309 = vunpack.c.l.b16 %v4026
    %v4310 = vunpack.c.l.b16 %v4027
    %v4311 = vunpack.c.l.b16 %v4028
    %v4312 = vunpack.c.l.b16 %v4029
    %v4313 = vunpack.c.l.b16 %v4030
    %v4314 = vunpack.c.l.b16 %v4031
    %v4315 = vunpack.c.l.b16 %v4032
    %v4316 = vunpack.c.l.b16 %v4033
    %v4317 = vunpack.c.l.b16 %v4034
    %v4318 = vunpack.c.l.b16 %v4035
    %v4319 = vunpack.c.l.b16 %v4036
    %v4320 = vunpack.c.l.b16 %v4037
    %v4321 = vunpack.c.l.b16 %v4038
    %v4322 = vunpack.c.l.b16 %v4039
    %v4323 = vunpack.c.l.b16 %v4040
    %v4324 = vunpack.c.l.b16 %v4041
    %v4325 = vunpack.c.l.b16 %v4042
    %v4326 = vunpack.c.l.b16 %v4043
    %v4327 = vunpack.c.l.b16 %v4044
    %v4328 = vunpack.c.l.b16 %v4045
    %v4329 = vunpack.c.l.b16 %v4046
    %v4330 = vunpack.c.l.b16 %v4047
    %v4331 = vunpack.c.l.b16 %v4048
    %v4332 = vunpack.c.l.b16 %v4049
    %v4333 = vunpack.c.l.b16 %v4050
    %v4334 = vunpack.c.l.b16 %v4051
    %v4335 = vunpack.c.l.b16 %v4052
    %v4336 = vunpack.c.l.b16 %v4053
    %v4337 = vunpack.c.l.b16 %v4054
    %v4338 = vunpack.c.l.b16 %v4055
    %v4339 = vunpack.c.l.b16 %v4056
    %v4340 = vunpack.c.l.b16 %v4057
    %v4341 = vunpack.c.l.b16 %v4058
    %v4342 = vunpack.c.l.b16 %v4059
    %v4343 = vunpack.c.l.b16 %v4060
    %v4344 = vunpack.c.l.b16 %v4061
    %v4345 = vunpack.c.l.b16 %v4062
    %v4346 = vunpack.c.l.b16 %v4063
    %v4347 = vunpack.c.l.b16 %v4064
    %v4348 = vunpack.c.l.b16 %v4065
    %v4349 = vunpack.c.l.b16 %v4066
    %v4350 = vunpack.c.l.b16 %v4067
    %v4351 = vunpack.c.l.b16 %v4068
    %v4352 = vunpack.c.l.b16 %v4069
    %v4353 = vunpack.c.l.b16 %v4070
    %v4354 = vunpack.c.l.b16 %v4071
    %v4355 = vunpack.c.l.b16 %v4072
    %v4356 = vunpack.c.l.b16 %v4073
    %v4357 = vunpack.c.l.b16 %v4074
    %v4358 = vunpack.c.l.b16 %v4075
    %v4359 = vunpack.c.l.b16 %v4076
    %v4360 = vunpack.c.l.b16 %v4077
    %v4361 = vunpack.c.l.b16 %v4078
    %v4362 = vunpack.c.l.b16 %v4079
    %v4363 = vunpack.c.l.b16 %v4080
    %v4364 = vunpack.c.l.b16 %v4081
    %v4365 = vunpack.c.l.b16 %v4082
    %v4366 = vunpack.c.l.b16 %v4083
    %v4367 = vunpack.c.l.b16 %v4084
    %v4368 = vunpack.c.l.b16 %v4085
    %v4369 = vunpack.c.l.b16 %v4086
    %v4370 = vunpack.c.l.b16 %v4087
    %v4371 = vunpack.c.l.b16 %v4088
    %v4372 = vunpack.c.l.b16 %v4089
    %v4373 = vunpack.c.l.b16 %v4090
    %v4374 = vunpack.c.l.b16 %v4091
    %v4375 = vunpack.c.l.b16 %v4092
    %v4376 = vunpack.c.l.b16 %v4093
    %v4377 = vunpack.c.l.b16 %v4094
    %v4378 = vunpack.c.l.b16 %v4095
    %v4379 = vunpack.c.l.b16 %v4096
    %v4380 = vunpack.c.l.b16 %v4097
    %v4381 = vunpack.c.l.b16 %v4098
    %v4382 = vunpack.c.l.b16 %v4099
    %v4383 = vunpack.c.l.b16 %v4100
    %v4384 = vpack.c.b16 %v4247, %v4246
    %v4385 = vpack.c.b16 %v4249, %v4248
    %v4386 = vpack.c.b16 %v4251, %v4250
    %v4387 = vpack.c.b16 %v4253, %v4252
    %v4388 = vpack.c.b16 %v4255, %v4254
    %v4389 = vpack.c.b16 %v4257, %v4256
    %v4390 = vpack.c.b16 %v4259, %v4258
    %v4391 = vpack.c.b16 %v4261, %v4260
    %v4392 = vpack.c.b16 %v4263, %v4262
    %v4393 = vpack.c.b16 %v4265, %v4264
    %v4394 = vpack.c.b16 %v4267, %v4266
    %v4395 = vpack.c.b16 %v4269, %v4268
    %v4396 = vpack.c.b16 %v4271, %v4270
    %v4397 = vpack.c.b16 %v4273, %v4272
    %v4398 = vpack.c.b16 %v4275, %v4274
    %v4399 = vpack.c.b16 %v4277, %v4276
    %v4400 = vpack.c.b16 %v4279, %v4278
    %v4401 = vpack.c.b16 %v4281, %v4280
    %v4402 = vpack.c.b16 %v4283, %v4282
    %v4403 = vpack.c.b16 %v4285, %v4284
    %v4404 = vpack.c.b16 %v4287, %v4286
    %v4405 = vpack.c.b16 %v4289, %v4288
    %v4406 = vpack.c.b16 %v4291, %v4290
    %v4407 = vpack.c.b16 %v4293, %v4292
    %v4408 = vpack.c.b16 %v4295, %v4294
    %v4409 = vpack.c.b16 %v4297, %v4296
    %v4410 = vpack.c.b16 %v4299, %v4298
    %v4411 = vpack.c.b16 %v4301, %v4300
    %v4412 = vpack.c.b16 %v4303, %v4302
    %v4413 = vpack.c.b16 %v4305, %v4304
    %v4414 = vpack.c.b16 %v4307, %v4306
    %v4415 = vpack.c.b16 %v4309, %v4308
    %v4416 = vpack.c.b16 %v4311, %v4310
    %v4417 = vpack.c.b16 %v4313, %v4312
    %v4418 = vpack.c.b16 %v4315, %v4314
    %v4419 = vpack.c.b16 %v4317, %v4316
    %v4420 = vpack.c.b16 %v4319, %v4318
    %v4421 = vpack.c.b16 %v4321, %v4320
    %v4422 = vpack.c.b16 %v4323, %v4322
    %v4423 = vpack.c.b16 %v4325, %v4324
    %v4424 = vpack.c.b16 %v4327, %v4326
    %v4425 = vpack.c.b16 %v4329, %v4328
    %v4426 = vpack.c.b16 %v4331, %v4330
    %v4427 = vpack.c.b16 %v4333, %v4332
    %v4428 = vpack.c.b16 %v4335, %v4334
    %v4429 = vpack.c.b16 %v4337, %v4336
    %v4430 = vpack.c.b16 %v4339, %v4338
    %v4431 = vpack.c.b16 %v4341, %v4340
    %v4432 = vpack.c.b16 %v4343, %v4342
    %v4433 = vpack.c.b16 %v4345, %v4344
    %v4434 = vpack.c.b16 %v4347, %v4346
    %v4435 = vpack.c.b16 %v4349, %v4348
    %v4436 = vpack.c.b16 %v4351, %v4350
    %v4437 = vpack.c.b16 %v4353, %v4352
    %v4438 = vpack.c.b16 %v4355, %v4354
    %v4439 = vpack.c.b16 %v4357, %v4356
    %v4440 = vpack.c.b16 %v4359, %v4358
    %v4441 = vpack.c.b16 %v4361, %v4360
    %v4442 = vpack.c.b16 %v4363, %v4362
    %v4443 = vpack.c.b16 %v4365, %v4364
    %v4444 = vpack.c.b16 %v4367, %v4366
    %v4445 = vpack.c.b16 %v4369, %v4368
    %v4446 = vpack.c.b16 %v4371, %v4370
    %v4447 = vpack.c.b16 %v4373, %v4372
    %v4448 = vpack.c.b16 %v4375, %v4374
    %v4449 = vpack.c.b16 %v4377, %v4376
    %v4450 = vpack.c.b16 %v4379, %v4378
    %v4451 = vpack.c.b16 %v4381, %v4380
    %v4452 = vpack.c.b16 %v4383, %v4382
    %v4523 = vsel %vm1462, %v3962, 0
    %4525 = vmatprep.subr.bf16.mxu0 0
    %4526 = vmatpush1.bf16.msra.mxu0 %v4384
    %4527 = vmatprep.subr.bf16.mxu0 0
    %4528 = vmatpush1.bf16.msra.mxu0 %v4385
    %4529 = vmatprep.subr.bf16.mxu0 0
    %4530 = vmatpush1.bf16.msra.mxu0 %v4386
    %4531 = vmatprep.subr.bf16.mxu0 0
    %4532 = vmatpush1.bf16.msra.mxu0 %v4387
    %4533 = vmatprep.subr.bf16.mxu0 0
    %4534 = vmatpush1.bf16.msra.mxu0 %v4388
    %4535 = vmatprep.subr.bf16.mxu0 0
    %4536 = vmatpush1.bf16.msra.mxu0 %v4389
    %4537 = vmatprep.subr.bf16.mxu0 0
    %4538 = vmatpush1.bf16.msra.mxu0 %v4390
    %4539 = vmatprep.subr.bf16.mxu0 0
    %4540 = vmatpush1.bf16.msra.mxu0 %v4391
    %4541 = vmatprep.subr.bf16.mxu0 0
    %4542 = vmatpush1.bf16.msra.mxu0 %v4392
    %4543 = vmatprep.subr.bf16.mxu0 0
    %4544 = vmatpush1.bf16.msra.mxu0 %v4393
    %4545 = vmatprep.subr.bf16.mxu0 0
    %4546 = vmatpush1.bf16.msra.mxu0 %v4394
    %4547 = vmatprep.subr.bf16.mxu0 0
    %4548 = vmatpush1.bf16.msra.mxu0 %v4395
    %4549 = vmatprep.subr.bf16.mxu0 0
    %4550 = vmatpush1.bf16.msra.mxu0 %v4396
    %4551 = vmatprep.subr.bf16.mxu0 0
    %4552 = vmatpush1.bf16.msra.mxu0 %v4397
    %4553 = vmatprep.subr.bf16.mxu0 0
    %4554 = vmatpush1.bf16.msra.mxu0 %v4398
    %4555 = vmatprep.subr.bf16.mxu0 0
    %4556 = vmatpush1.bf16.msra.mxu0 %v4399
    %4557 = vmatprep.mubr.bf16.mxu0 %v3955
    %4558 = vmatmul.mubr.bf16.gmra.mrb[0].mxu0 %v3954
    %v4559 = vpop.f32.mrb[0].mxu0
    %v4560 = vadd.f32 %v4106, %v4559
    %v4561 = vpop.f32.mrb[0].mxu0
    %v4562 = vpop.f32.mrb[0].mxu0
    %v4563 = vpop.f32.mrb[0].mxu0
    %4564 = vdwg.mxu0
    %4565 = vmatprep.subr.bf16.mxu0 0
    %4566 = vmatpush1.bf16.msra.mxu0 %v4400
    %4567 = vmatprep.subr.bf16.mxu0 0
    %4568 = vmatpush1.bf16.msra.mxu0 %v4401
    %4569 = vmatprep.subr.bf16.mxu0 0
    %4570 = vmatpush1.bf16.msra.mxu0 %v4402
    %4571 = vmatprep.subr.bf16.mxu0 0
    %4572 = vmatpush1.bf16.msra.mxu0 %v4403
    %4573 = vmatprep.subr.bf16.mxu0 0
    %4574 = vmatpush1.bf16.msra.mxu0 %v4404
    %4575 = vmatprep.subr.bf16.mxu0 0
    %4576 = vmatpush1.bf16.msra.mxu0 %v4405
    %4577 = vmatprep.subr.bf16.mxu0 0
    %4578 = vmatpush1.bf16.msra.mxu0 %v4406
    %4579 = vmatprep.subr.bf16.mxu0 0
    %4580 = vmatpush1.bf16.msra.mxu0 %v4407
    %4581 = vmatprep.subr.bf16.mxu0 0
    %4582 = vmatpush1.bf16.msra.mxu0 %v4408
    %4583 = vmatprep.subr.bf16.mxu0 0
    %4584 = vmatpush1.bf16.msra.mxu0 %v4409
    %4585 = vmatprep.subr.bf16.mxu0 0
    %4586 = vmatpush1.bf16.msra.mxu0 %v4410
    %4587 = vmatprep.subr.bf16.mxu0 0
    %4588 = vmatpush1.bf16.msra.mxu0 %v4411
    %4589 = vmatprep.subr.bf16.mxu0 0
    %4590 = vmatpush1.bf16.msra.mxu0 %v4412
    %4591 = vmatprep.subr.bf16.mxu0 0
    %4592 = vmatpush1.bf16.msra.mxu0 %v4413
    %4593 = vmatprep.subr.bf16.mxu0 0
    %4594 = vmatpush1.bf16.msra.mxu0 %v4414
    %4595 = vmatprep.subr.bf16.mxu0 0
    %4596 = vmatpush1.bf16.msra.mxu0 %v4415
    %4597 = vmatprep.mubr.bf16.mxu0 %v3957
    %4598 = vmatmul.mubr.bf16.gmra.mrb[0].mxu0 %v3956
    %v4599 = vpop.f32.mrb[0].mxu0
    %v4600 = vadd.f32 %v4560, %v4599
    %v4601 = vpop.f32.mrb[0].mxu0
    %v4602 = vpop.f32.mrb[0].mxu0
    %v4603 = vpop.f32.mrb[0].mxu0
    %4604 = vdwg.mxu0
    %4605 = vmatprep.subr.bf16.mxu0 0
    %4606 = vmatpush1.bf16.msra.mxu0 %v4416
    %4607 = vmatprep.subr.bf16.mxu0 0
    %4608 = vmatpush1.bf16.msra.mxu0 %v4417
    %4609 = vmatprep.subr.bf16.mxu0 0
    %4610 = vmatpush1.bf16.msra.mxu0 %v4418
    %4611 = vmatprep.subr.bf16.mxu0 0
    %4612 = vmatpush1.bf16.msra.mxu0 %v4419
    %4613 = vmatprep.subr.bf16.mxu0 0
    %4614 = vmatpush1.bf16.msra.mxu0 %v4420
    %4615 = vmatprep.subr.bf16.mxu0 0
    %4616 = vmatpush1.bf16.msra.mxu0 %v4421
    %4617 = vmatprep.subr.bf16.mxu0 0
    %4618 = vmatpush1.bf16.msra.mxu0 %v4422
    %4619 = vmatprep.subr.bf16.mxu0 0
    %4620 = vmatpush1.bf16.msra.mxu0 %v4423
    %4621 = vmatprep.subr.bf16.mxu0 0
    %4622 = vmatpush1.bf16.msra.mxu0 %v4424
    %4623 = vmatprep.subr.bf16.mxu0 0
    %4624 = vmatpush1.bf16.msra.mxu0 %v4425
    %4625 = vmatprep.subr.bf16.mxu0 0
    %4626 = vmatpush1.bf16.msra.mxu0 %v4426
    %4627 = vmatprep.subr.bf16.mxu0 0
    %4628 = vmatpush1.bf16.msra.mxu0 %v4427
    %4629 = vmatprep.subr.bf16.mxu0 0
    %4630 = vmatpush1.bf16.msra.mxu0 %v4428
    %4631 = vmatprep.subr.bf16.mxu0 0
    %4632 = vmatpush1.bf16.msra.mxu0 %v4429
    %4633 = vmatprep.subr.bf16.mxu0 0
    %4634 = vmatpush1.bf16.msra.mxu0 %v4430
    %4635 = vmatprep.subr.bf16.mxu0 0
    %4636 = vmatpush1.bf16.msra.mxu0 %v4431
    %4637 = vmatprep.mubr.bf16.mxu0 %v3959
    %4638 = vmatmul.mubr.bf16.gmra.mrb[0].mxu0 %v3958
    %v4639 = vpop.f32.mrb[0].mxu0
    %v4640 = vadd.f32 %v4600, %v4639
    %v4641 = vpop.f32.mrb[0].mxu0
    %v4642 = vpop.f32.mrb[0].mxu0
    %v4643 = vpop.f32.mrb[0].mxu0
    %4644 = vdwg.mxu0
    %4645 = vmatprep.subr.bf16.mxu0 0
    %4646 = vmatpush1.bf16.msra.mxu0 %v4432
    %4647 = vmatprep.subr.bf16.mxu0 0
    %4648 = vmatpush1.bf16.msra.mxu0 %v4433
    %4649 = vmatprep.subr.bf16.mxu0 0
    %4650 = vmatpush1.bf16.msra.mxu0 %v4434
    %4651 = vmatprep.subr.bf16.mxu0 0
    %4652 = vmatpush1.bf16.msra.mxu0 %v4435
    %4653 = vmatprep.subr.bf16.mxu0 0
    %4654 = vmatpush1.bf16.msra.mxu0 %v4436
    %4655 = vmatprep.subr.bf16.mxu0 0
    %4656 = vmatpush1.bf16.msra.mxu0 %v4437
    %4657 = vmatprep.subr.bf16.mxu0 0
    %4658 = vmatpush1.bf16.msra.mxu0 %v4438
    %4659 = vmatprep.subr.bf16.mxu0 0
    %4660 = vmatpush1.bf16.msra.mxu0 %v4439
    %4661 = vmatprep.subr.bf16.mxu0 0
    %4662 = vmatpush1.bf16.msra.mxu0 %v4440
    %4663 = vmatprep.subr.bf16.mxu0 0
    %4664 = vmatpush1.bf16.msra.mxu0 %v4441
    %4665 = vmatprep.subr.bf16.mxu0 0
    %4666 = vmatpush1.bf16.msra.mxu0 %v4442
    %4667 = vmatprep.subr.bf16.mxu0 0
    %4668 = vmatpush1.bf16.msra.mxu0 %v4443
    %4669 = vmatprep.subr.bf16.mxu0 0
    %4670 = vmatpush1.bf16.msra.mxu0 %v4444
    %4671 = vmatprep.subr.bf16.mxu0 0
    %4672 = vmatpush1.bf16.msra.mxu0 %v4445
    %4673 = vmatprep.subr.bf16.mxu0 0
    %4674 = vmatpush1.bf16.msra.mxu0 %v4446
    %4675 = vmatprep.subr.bf16.mxu0 0
    %4676 = vmatpush1.bf16.msra.mxu0 %v4447
    %4677 = vmatprep.mubr.bf16.mxu0 %v3961
    %4678 = vmatmul.mubr.bf16.gmra.mrb[0].mxu0 %v3960
    %v4679 = vpop.f32.mrb[0].mxu0
    %v4680 = vadd.f32 %v4640, %v4679
    %v4681 = vpop.f32.mrb[0].mxu0
    %v4682 = vpop.f32.mrb[0].mxu0
    %v4683 = vpop.f32.mrb[0].mxu0
    %4684 = vdwg.mxu0
    %4685 = vmatprep.subr.bf16.mxu0 0
    %4686 = vmatpush1.bf16.msra.mxu0 %v4448
    %4687 = vmatprep.subr.bf16.mxu0 0
    %4688 = vmatpush1.bf16.msra.mxu0 %v4449
    %4689 = vmatprep.subr.bf16.mxu0 0
    %4690 = vmatpush1.bf16.msra.mxu0 %v4450
    %4691 = vmatprep.subr.bf16.mxu0 0
    %4692 = vmatpush1.bf16.msra.mxu0 %v4451
    %4693 = vmatprep.subr.bf16.mxu0 0
    %4694 = vmatpush1.bf16.msra.mxu0 %v4452
    %4695 = vmatprep.subr.bf16.mxu0 0
    %4696 = vmatpush1.bf16.msra.mxu0 0
    %4697 = vmatprep.subr.bf16.mxu0 0
    %4698 = vmatpush1.bf16.msra.mxu0 0
    %4699 = vmatprep.subr.bf16.mxu0 0
    %4700 = vmatpush1.bf16.msra.mxu0 0
    %4701 = vmatprep.subr.bf16.mxu0 0
    %4702 = vmatpush1.bf16.msra.mxu0 0
    %4703 = vmatprep.subr.bf16.mxu0 0
    %4704 = vmatpush1.bf16.msra.mxu0 0
    %4705 = vmatprep.subr.bf16.mxu0 0
    %4706 = vmatpush1.bf16.msra.mxu0 0
    %4707 = vmatprep.subr.bf16.mxu0 0
    %4708 = vmatpush1.bf16.msra.mxu0 0
    %4709 = vmatprep.subr.bf16.mxu0 0
    %4710 = vmatpush1.bf16.msra.mxu0 0
    %4711 = vmatprep.subr.bf16.mxu0 0
    %4712 = vmatpush1.bf16.msra.mxu0 0
    %4713 = vmatprep.subr.bf16.mxu0 0
    %4714 = vmatpush1.bf16.msra.mxu0 0
    %4715 = vmatprep.subr.bf16.mxu0 0
    %4716 = vmatpush1.bf16.msra.mxu0 0
    %4717 = vmatprep.mubr.bf16.mxu0 0
    %4718 = vmatmul.mubr.bf16.gmra.mrb[0].mxu0 %v4523
    %v4719 = vpop.f32.mrb[0].mxu0
    %v4720 = vadd.f32 %v4680, %v4719
    %v4721 = vpop.f32.mrb[0].mxu0
    %v4722 = vpop.f32.mrb[0].mxu0
    %v4723 = vpop.f32.mrb[0].mxu0
    %4724 = vdwg.mxu0
    %vm4725 = vcmask 80896
    %v4726 = vsel %vm4725, %v4720, 0.0
    %4727 = vst [vmem:[#allocation2] sm:$0x3] %v4726
    // Predicated region
    $region58: #{simple_cnn_forward.1} parent=1 // pred_check
      _
    $region59: #{simple_cnn_forward.1} parent=1 // pred_check_branch
      %4729 = sbr.rel (0) target = $region61
    $region60: #{simple_cnn_forward.1} parent=1 // pred_region
      %s4731 = ssub.s32 32, 32
      %4732 = vsyncadd [#allocation3], %s4731
      %s4734 = sshll.u32 [#allocation2], 4
      %s4735 = int_to_ptr.vmem [resolvable:$true] %s4734
      %4737 = dma.vmem_to_hbm [thread:$0]  %s4735, 32, %s14, [#allocation3]
    $region61: #{simple_cnn_forward.1} parent=1 // pred_fallthru
      _
    // Predicated region
    $region62: #{simple_cnn_forward.1} parent=1 // pred_check
      _
    $region63: #{simple_cnn_forward.1} parent=1 // pred_check_branch
      %4739 = sbr.rel (0) target = $region65
    $region64: #{simple_cnn_forward.1} parent=1 // pred_region
      %4740 = dma.done [#allocation3], 32
    $region65: #{simple_cnn_forward.1} parent=1 // pred_fallthru
      _
    %4741 = vsyncpa [#allocation3], 1

</llo_original>
